<compile_context>
chip_gen: v5e
topology: v5e:2x2
jax: 0.10.0
libtpu: 0.0.40
codegen_flags: <defaults>
</compile_context>

<pallas_src>
import jax
import jax.numpy as jnp
from jax import lax
from jax.experimental import pallas as pl
from jax.experimental.pallas import tpu as pltpu

CNN_CHANNELS = 16
LSTM_HIDDEN = 32
LSTM_NUM_LAYERS = 2          # hard-wired as two explicit layers in the kernel
OUTPUT_SIZE = 4

# Recurrences at or below this many timesteps run as a fully unrolled Python
# loop indexing the in-register input projection (no VMEM scratch).
MAX_UNROLLED_T = 32


def _make_kernel(unrolled):
    def kernel(x_ref, w1_ref, b1_ref, w2_ref, b2_ref,
               wih0_ref, whh0_ref, bg0_ref,
               wih1_ref, whh1_ref, bg1_ref,
               wfc_ref, bfc_ref,
               out_ref, *scratch):
        f32 = jnp.float32
        x = x_ref[...]                                   # (L, B), batch on lanes
        L, B = x.shape
        C1 = w1_ref.shape[-1]
        C2 = w2_ref.shape[-1]
        H4 = wih0_ref.shape[-1]                          # 4 * hidden (=128)
        H = H4 // 4
        Lh = L // 2
        T = Lh // 2

        def pool2(v):                                    # maxpool(k=2,s=2), axis 0
            n, b, c = v.shape
            vr = v.reshape(n // 2, 2, b, c)
            return jnp.maximum(vr[:, 0], vr[:, 1])

        # ---- Conv1d(1 -> C1, k=3, pad=1) + ReLU + MaxPool1d(2) ----
        # Cin = 1: three broadcast multiply-adds on the VPU.
        w1 = w1_ref[...]                                 # (3, C1)
        zr = jnp.zeros((1, B), f32)
        x_m1 = jnp.concatenate([zr, x[:-1]], axis=0)     # x[t-1]
        x_p1 = jnp.concatenate([x[1:], zr], axis=0)      # x[t+1]
        y1 = (x_m1[:, :, None] * w1[0] + x[:, :, None] * w1[1]
              + x_p1[:, :, None] * w1[2] + b1_ref[...])  # (L, B, C1)
        y1 = jnp.maximum(y1, 0.0)
        y1 = pool2(y1)                                   # (Lh, B, C1)

        # ---- Conv1d(C1 -> C2, k=3, pad=1): 3 shifted K=16 dots (no concat) ----
        z2 = jnp.zeros((1, B, C1), f32)
        y_m1 = jnp.concatenate([z2, y1[:-1]], axis=0)
        y_p1 = jnp.concatenate([y1[1:], z2], axis=0)
        w2 = w2_ref[...]                                 # (3*C1, C2), rows k*C1+ci
        y2 = (jnp.dot(y_m1.reshape(Lh * B, C1), w2[:C1],
                      preferred_element_type=f32)
              + jnp.dot(y1.reshape(Lh * B, C1), w2[C1:2 * C1],
                        preferred_element_type=f32)
              + jnp.dot(y_p1.reshape(Lh * B, C1), w2[2 * C1:],
                        preferred_element_type=f32))     # (Lh*B, C2)
        y2 = jnp.maximum(y2.reshape(Lh, B, C2) + b2_ref[...], 0.0)
        y2 = pool2(y2)                                   # (T, B, C2)

        # ---- LSTM layer-0 input projection hoisted out of the time loop ----
        # One (T*B, C2) @ (C2, 4H) matmul; stays in registers when T is small.
        xproj = (jnp.dot(y2.reshape(T * B, C2), wih0_ref[...],
                         preferred_element_type=f32) + bg0_ref[...])  # (T*B, 4H)

        whh0 = whh0_ref[...]                             # (H, 4H)
        wih1 = wih1_ref[...]                             # (H, 4H)
        whh1 = whh1_ref[...]                             # (H, 4H)
        bg1 = bg1_ref[...]                               # (1, 4H)

        # Full-width gate activation: one sigmoid + one tanh over all 128
        # lanes, g-block (lanes [2H, 3H)) selected with an iota mask.
        lane = lax.broadcasted_iota(jnp.int32, (1, H4), 1)
        g_mask = (lane >= 2 * H) & (lane < 3 * H)

        def act(z):                                      # z: (B, 4H), order i|f|g|o
            return jnp.where(g_mask, jnp.tanh(z), jax.nn.sigmoid(z))

        def cell(a, c):
            i, f, g, o = a[:, :H], a[:, H:2 * H], a[:, 2 * H:3 * H], a[:, 3 * H:]
            c = f * c + i * g
            return o * jnp.tanh(c), c

        def lstm_step(xp_t, h0, c0, h1, c1):
            # layer 0: precomputed input proj + one recurrent dot
            z0 = xp_t + jnp.dot(h0, whh0, preferred_element_type=f32)
            h0, c0 = cell(act(z0), c0)
            # layer 1: two K=32 dots, no per-step concatenation
            z1 = (jnp.dot(h0, wih1, preferred_element_type=f32)
                  + jnp.dot(h1, whh1, preferred_element_type=f32) + bg1)
            h1, c1 = cell(act(z1), c1)
            return h0, c0, h1, c1

        zeros_bh = jnp.zeros((B, H), f32)
        if unrolled:
            # Fully unrolled; xproj rows sliced statically (no VMEM round-trip).
            h0 = c0 = h1 = c1 = zeros_bh
            for t in range(T):
                h0, c0, h1, c1 = lstm_step(xproj[t * B:(t + 1) * B],
                                           h0, c0, h1, c1)
        else:
            # Long sequences: park the projection in VMEM, capped unroll.
            xp_ref = scratch[0]
            xp_ref[...] = xproj.reshape(T, B, H4)

            def body(t, carry):
                return lstm_step(xp_ref[t], *carry)

            _, _, h1, _ = lax.fori_loop(0, T, body, (zeros_bh,) * 4,
                                        unroll=min(8, T))

        # ---- fc on the top layer's last hidden state ----
        out_ref[...] = (jnp.dot(h1, wfc_ref[...], preferred_element_type=f32)
                        + bfc_ref[...])                  # (B, 4)

    return kernel


def hybrid_cnn_lstm(x, params, *, batch_block=None):
    """x: (B, L) float32 (same as the PyTorch module's input before unsqueeze)."""
    B, L = x.shape
    assert L % 4 == 0, "sequence length must be divisible by 4 (two maxpools)"
    T = L // 4
    H4 = 4 * LSTM_HIDDEN

    if batch_block is None:
        batch_block = B        # single grid step for small batches (v5e/v6e)
    assert B % batch_block == 0
    # Batch rides on the lane axis: a partial batch block must be lane-aligned.
    assert batch_block == B or batch_block % 128 == 0, (
        "batch_block < B must be a multiple of 128 (lane tiling)")

    unrolled = T <= MAX_UNROLLED_T

    x_k = jnp.transpose(x, (1, 0))                       # (L, B), lane-dense batch

    weight_names = ("w1", "b1", "w2", "b2", "wih0", "whh0", "bg0",
                    "wih1", "whh1", "bg1", "wfc", "bfc")
    weights = [params[n] for n in weight_names]

    def full_spec(a):
        zeros = (0,) * a.ndim
        return pl.BlockSpec(a.shape, lambda b, _z=zeros: _z)

    in_specs = [pl.BlockSpec((L, batch_block), lambda b: (0, b))]
    in_specs += [full_spec(w) for w in weights]

    scratch_shapes = []
    if not unrolled:
        scratch_shapes = [pltpu.VMEM((T, batch_block, H4), jnp.float32)]

    # Explicit VMEM budget (v7x: 64 MiB physical / 32 MiB default scoped).
    weight_bytes = sum(int(w.size) * 4 for w in weights)
    act_bytes = 4 * batch_block * (
        2 * L                                      # double-buffered input block
        + 4 * L * CNN_CHANNELS                     # conv1/pool working set
        + 4 * (L // 2) * 2 * CNN_CHANNELS          # conv2/pool working set
        + (2 if not unrolled else 1) * T * H4)     # xproj (+ scratch copy)
    vmem_limit = int(max(32 << 20, min(64 << 20, 2 * (weight_bytes + act_bytes))))

    return pl.pallas_call(
        _make_kernel(unrolled),
        out_shape=jax.ShapeDtypeStruct((B, OUTPUT_SIZE), jnp.float32),
        grid=(B // batch_block,),
        in_specs=in_specs,
        out_specs=pl.BlockSpec((batch_block, OUTPUT_SIZE), lambda b: (b, 0)),
        scratch_shapes=scratch_shapes,
        compiler_params=pltpu.CompilerParams(
            dimension_semantics=("parallel",),
            vmem_limit_bytes=vmem_limit),
    )(x_k, *weights)


def init_params(key):
    """Deterministic synthetic parameters, created in PyTorch shapes then
    rearranged to the fused kernel layout."""
    H = LSTM_HIDDEN
    C1 = CNN_CHANNELS
    C2 = 2 * CNN_CHANNELS
    ks = jax.random.split(key, 14)
    scale = 0.1

    def nrm(k, shape):
        return scale * jax.random.normal(k, shape, jnp.float32)

    # torch shapes
    w1_t = nrm(ks[0], (C1, 1, 3));   b1_t = nrm(ks[1], (C1,))
    w2_t = nrm(ks[2], (C2, C1, 3));  b2_t = nrm(ks[3], (C2,))
    wih0_t = nrm(ks[4], (4 * H, C2)); whh0_t = nrm(ks[5], (4 * H, H))
    bih0_t = nrm(ks[6], (4 * H,));    bhh0_t = nrm(ks[7], (4 * H,))
    wih1_t = nrm(ks[8], (4 * H, H));  whh1_t = nrm(ks[9], (4 * H, H))
    bih1_t = nrm(ks[10], (4 * H,));   bhh1_t = nrm(ks[11], (4 * H,))
    wfc_t = nrm(ks[12], (OUTPUT_SIZE, H)); bfc_t = nrm(ks[13], (OUTPUT_SIZE,))

    return dict(
        # conv1: (C1, 1, 3) -> (3, C1);   w1[k, co] = w1_t[co, 0, k]
        w1=jnp.transpose(w1_t[:, 0, :], (1, 0)),
        b1=b1_t.reshape(1, 1, C1),
        # conv2: (C2, C1, 3) -> (3*C1, C2); row k*C1+ci = w2_t[:, ci, k]
        w2=jnp.transpose(w2_t, (2, 1, 0)).reshape(3 * C1, C2),
        b2=b2_t.reshape(1, 1, C2),
        # LSTM layer 0: fused gate weights (In, 4H), gate order i|f|g|o
        wih0=jnp.transpose(wih0_t),                  # (C2, 4H)
        whh0=jnp.transpose(whh0_t),                  # (H, 4H)
        bg0=(bih0_t + bhh0_t).reshape(1, 4 * H),
        # LSTM layer 1: separate recurrent / input weights (no concat in-loop)
        wih1=jnp.transpose(wih1_t),                  # (H, 4H)
        whh1=jnp.transpose(whh1_t),                  # (H, 4H)
        bg1=(bih1_t + bhh1_t).reshape(1, 4 * H),
        wfc=jnp.transpose(wfc_t),                    # (H, 4)
        bfc=bfc_t.reshape(1, OUTPUT_SIZE),
    )


def reference_forward(x, p):
    """Pure-JAX reference mirroring the PyTorch forward (batch-first)."""
    H = LSTM_HIDDEN
    xc = x[:, :, None]                               # (B, L, 1)

    def conv1(v):                                    # Cin = 1
        Lv = v.shape[1]
        vp = jnp.pad(v, ((0, 0), (1, 1), (0, 0)))
        y = sum(vp[:, k:k + Lv, :] * p["w1"][k] for k in range(3))
        return y + p["b1"]

    def conv2(v):                                    # im2col form
        Lv = v.shape[1]
        vp = jnp.pad(v, ((0, 0), (1, 1), (0, 0)))
        col = jnp.concatenate([vp[:, k:k + Lv, :] for k in range(3)], axis=-1)
        return col @ p["w2"] + p["b2"]

    def maxpool(v):
        Bv, Lv, Cv = v.shape
        return jnp.max(v.reshape(Bv, Lv // 2, 2, Cv), axis=2)

    y = maxpool(jax.nn.relu(conv1(xc)))
    y = maxpool(jax.nn.relu(conv2(y)))               # (B, T, C2)

    def lstm_layer(xs, wih, whh, bg):
        Bv = xs.shape[0]

        def step(carry, x_t):
            h, c = carry
            z = x_t @ wih + h @ whh + bg             # (B, 4H), order i|f|g|o
            i = jax.nn.sigmoid(z[:, :H]); f = jax.nn.sigmoid(z[:, H:2 * H])
            g = jnp.tanh(z[:, 2 * H:3 * H]); o = jax.nn.sigmoid(z[:, 3 * H:])
            c = f * c + i * g
            h = o * jnp.tanh(c)
            return (h, c), h

        init = (jnp.zeros((Bv, H), jnp.float32), jnp.zeros((Bv, H), jnp.float32))
        _, hs = lax.scan(step, init, jnp.swapaxes(xs, 0, 1))
        return jnp.swapaxes(hs, 0, 1)

    y = lstm_layer(y, p["wih0"], p["whh0"], p["bg0"])
    y = lstm_layer(y, p["wih1"], p["whh1"], p["bg1"])
    return y[:, -1, :] @ p["wfc"] + p["bfc"]


if __name__ == "__main__":
    key = jax.random.PRNGKey(0)
    k_x, k_p = jax.random.split(key)

    B, input_size = 2, 32                            # seq len after 2x pooling = 8
    x = jax.random.normal(k_x, (B, input_size), jnp.float32)
    params = init_params(k_p)

    out = hybrid_cnn_lstm(x, params)
    out = jax.block_until_ready(out)
    assert out.shape == (B, OUTPUT_SIZE)

    ref = reference_forward(x, params)
    if not jnp.allclose(out, ref, rtol=2e-3, atol=5e-4):
        raise AssertionError(f"Pallas/reference mismatch:\n{out}\nvs\n{ref}")

    print("KERNEL_OK")
</pallas_src>

<mosaic_0001>
module attributes {stable_mosaic.version = 11 : i64} {
  func.func @kernel(%arg0: i32, %arg1: memref<32x2xf32, #tpu.memory_space<vmem>>, %arg2: memref<3x16xf32, #tpu.memory_space<vmem>>, %arg3: memref<1x1x16xf32, #tpu.memory_space<vmem>>, %arg4: memref<48x32xf32, #tpu.memory_space<vmem>>, %arg5: memref<1x1x32xf32, #tpu.memory_space<vmem>>, %arg6: memref<32x128xf32, #tpu.memory_space<vmem>>, %arg7: memref<32x128xf32, #tpu.memory_space<vmem>>, %arg8: memref<1x128xf32, #tpu.memory_space<vmem>>, %arg9: memref<32x128xf32, #tpu.memory_space<vmem>>, %arg10: memref<32x128xf32, #tpu.memory_space<vmem>>, %arg11: memref<1x128xf32, #tpu.memory_space<vmem>>, %arg12: memref<32x4xf32, #tpu.memory_space<vmem>>, %arg13: memref<1x4xf32, #tpu.memory_space<vmem>>, %arg14: memref<2x4xf32, #tpu.memory_space<vmem>>) attributes {dimension_semantics = [#tpu.dimension_semantics<parallel>], iteration_bounds = array<i64: 1>, scalar_prefetch = 0 : i64, scratch_operands = 0 : i64, tpu.core_type = #tpu.core_type<tc>, window_params = [{transform_indices = @transform_0, window_bounds = array<i64: 32, 2>}, {pipeline_mode = #tpu.pipeline_mode<synchronous>, transform_indices = @transform_1, window_bounds = array<i64: 3, 16>}, {pipeline_mode = #tpu.pipeline_mode<synchronous>, transform_indices = @transform_2, window_bounds = array<i64: 1, 1, 16>}, {pipeline_mode = #tpu.pipeline_mode<synchronous>, transform_indices = @transform_3, window_bounds = array<i64: 48, 32>}, {pipeline_mode = #tpu.pipeline_mode<synchronous>, transform_indices = @transform_4, window_bounds = array<i64: 1, 1, 32>}, {pipeline_mode = #tpu.pipeline_mode<synchronous>, transform_indices = @transform_5, window_bounds = array<i64: 32, 128>}, {pipeline_mode = #tpu.pipeline_mode<synchronous>, transform_indices = @transform_6, window_bounds = array<i64: 32, 128>}, {pipeline_mode = #tpu.pipeline_mode<synchronous>, transform_indices = @transform_7, window_bounds = array<i64: 1, 128>}, {pipeline_mode = #tpu.pipeline_mode<synchronous>, transform_indices = @transform_8, window_bounds = array<i64: 32, 128>}, {pipeline_mode = #tpu.pipeline_mode<synchronous>, transform_indices = @transform_9, window_bounds = array<i64: 32, 128>}, {pipeline_mode = #tpu.pipeline_mode<synchronous>, transform_indices = @transform_10, window_bounds = array<i64: 1, 128>}, {pipeline_mode = #tpu.pipeline_mode<synchronous>, transform_indices = @transform_11, window_bounds = array<i64: 32, 4>}, {pipeline_mode = #tpu.pipeline_mode<synchronous>, transform_indices = @transform_12, window_bounds = array<i64: 1, 4>}, {transform_indices = @transform_13, window_bounds = array<i64: 2, 4>}]} {
    %c0 = arith.constant 0 : index
    %c0_0 = arith.constant 0 : index
    %0 = vector.load %arg1[%c0, %c0_0] : memref<32x2xf32, #tpu.memory_space<vmem>>, vector<32x2xf32>
    %c0_1 = arith.constant 0 : index
    %c0_2 = arith.constant 0 : index
    %1 = vector.load %arg2[%c0_1, %c0_2] : memref<3x16xf32, #tpu.memory_space<vmem>>, vector<3x16xf32>
    %cst = arith.constant 0.000000e+00 : f32
    %2 = vector.broadcast %cst : f32 to vector<1x2xf32>
    %3 = vector.extract_strided_slice %0 {offsets = [0, 0], sizes = [31, 2], strides = [1, 1]} : vector<32x2xf32> to vector<31x2xf32>
    %4 = tpu.concatenate %2, %3 in 0 : vector<1x2xf32>, vector<31x2xf32> -> vector<32x2xf32>
    %5 = vector.extract_strided_slice %0 {offsets = [1, 0], sizes = [31, 2], strides = [1, 1]} : vector<32x2xf32> to vector<31x2xf32>
    %6 = tpu.concatenate %5, %2 in 0 : vector<31x2xf32>, vector<1x2xf32> -> vector<32x2xf32>
    %7 = vector.shape_cast %4 : vector<32x2xf32> to vector<32x2x1xf32>
    %8 = vector.extract_strided_slice %1 {offsets = [0, 0], sizes = [1, 16], strides = [1, 1]} : vector<3x16xf32> to vector<1x16xf32>
    %9 = vector.shape_cast %8 : vector<1x16xf32> to vector<16xf32>
    %10 = vector.shape_cast %9 : vector<16xf32> to vector<1x1x16xf32>
    %11 = vector.broadcast %7 : vector<32x2x1xf32> to vector<32x2x16xf32>
    %12 = vector.broadcast %10 : vector<1x1x16xf32> to vector<32x2x16xf32>
    %13 = arith.mulf %11, %12 : vector<32x2x16xf32>
    %14 = vector.shape_cast %0 : vector<32x2xf32> to vector<32x2x1xf32>
    %15 = vector.extract_strided_slice %1 {offsets = [1, 0], sizes = [1, 16], strides = [1, 1]} : vector<3x16xf32> to vector<1x16xf32>
    %16 = vector.shape_cast %15 : vector<1x16xf32> to vector<16xf32>
    %17 = vector.shape_cast %16 : vector<16xf32> to vector<1x1x16xf32>
    %18 = vector.broadcast %14 : vector<32x2x1xf32> to vector<32x2x16xf32>
    %19 = vector.broadcast %17 : vector<1x1x16xf32> to vector<32x2x16xf32>
    %20 = arith.mulf %18, %19 : vector<32x2x16xf32>
    %21 = arith.addf %13, %20 : vector<32x2x16xf32>
    %22 = vector.shape_cast %6 : vector<32x2xf32> to vector<32x2x1xf32>
    %23 = vector.extract_strided_slice %1 {offsets = [2, 0], sizes = [1, 16], strides = [1, 1]} : vector<3x16xf32> to vector<1x16xf32>
    %24 = vector.shape_cast %23 : vector<1x16xf32> to vector<16xf32>
    %25 = vector.shape_cast %24 : vector<16xf32> to vector<1x1x16xf32>
    %26 = vector.broadcast %22 : vector<32x2x1xf32> to vector<32x2x16xf32>
    %27 = vector.broadcast %25 : vector<1x1x16xf32> to vector<32x2x16xf32>
    %28 = arith.mulf %26, %27 : vector<32x2x16xf32>
    %29 = arith.addf %21, %28 : vector<32x2x16xf32>
    %c0_3 = arith.constant 0 : index
    %c0_4 = arith.constant 0 : index
    %c0_5 = arith.constant 0 : index
    %30 = vector.load %arg3[%c0_3, %c0_4, %c0_5] : memref<1x1x16xf32, #tpu.memory_space<vmem>>, vector<1x1x16xf32>
    %31 = vector.broadcast %30 : vector<1x1x16xf32> to vector<32x2x16xf32>
    %32 = arith.addf %29, %31 : vector<32x2x16xf32>
    %cst_6 = arith.constant 0.000000e+00 : f32
    %33 = vector.broadcast %cst_6 : f32 to vector<32x2x16xf32>
    %34 = arith.maximumf %32, %33 : vector<32x2x16xf32>
    %35 = vector.shape_cast %34 : vector<32x2x16xf32> to vector<16x2x2x16xf32>
    %36 = vector.extract_strided_slice %35 {offsets = [0, 0, 0, 0], sizes = [16, 1, 2, 16], strides = [1, 1, 1, 1]} : vector<16x2x2x16xf32> to vector<16x1x2x16xf32>
    %37 = vector.shape_cast %36 : vector<16x1x2x16xf32> to vector<16x2x16xf32>
    %38 = vector.extract_strided_slice %35 {offsets = [0, 1, 0, 0], sizes = [16, 1, 2, 16], strides = [1, 1, 1, 1]} : vector<16x2x2x16xf32> to vector<16x1x2x16xf32>
    %39 = vector.shape_cast %38 : vector<16x1x2x16xf32> to vector<16x2x16xf32>
    %40 = arith.maximumf %37, %39 : vector<16x2x16xf32>
    %cst_7 = arith.constant 0.000000e+00 : f32
    %41 = vector.broadcast %cst_7 : f32 to vector<1x2x16xf32>
    %42 = vector.extract_strided_slice %40 {offsets = [0, 0, 0], sizes = [15, 2, 16], strides = [1, 1, 1]} : vector<16x2x16xf32> to vector<15x2x16xf32>
    %43 = tpu.concatenate %41, %42 in 0 : vector<1x2x16xf32>, vector<15x2x16xf32> -> vector<16x2x16xf32>
    %44 = vector.extract_strided_slice %40 {offsets = [1, 0, 0], sizes = [15, 2, 16], strides = [1, 1, 1]} : vector<16x2x16xf32> to vector<15x2x16xf32>
    %45 = tpu.concatenate %44, %41 in 0 : vector<15x2x16xf32>, vector<1x2x16xf32> -> vector<16x2x16xf32>
    %c0_8 = arith.constant 0 : index
    %c0_9 = arith.constant 0 : index
    %46 = vector.load %arg4[%c0_8, %c0_9] : memref<48x32xf32, #tpu.memory_space<vmem>>, vector<48x32xf32>
    %47 = vector.shape_cast %43 : vector<16x2x16xf32> to vector<32x16xf32>
    %48 = vector.extract_strided_slice %46 {offsets = [0, 0], sizes = [16, 32], strides = [1, 1]} : vector<48x32xf32> to vector<16x32xf32>
    %cst_10 = arith.constant dense<0.000000e+00> : vector<32x32xf32>
    %49 = tpu.matmul %47, %48, %cst_10 {dimension_numbers = #tpu.dot_dimension_numbers<[1], [0], [0], [1], [0, 0, 1, 1], [], []>} : vector<32x16xf32>, vector<16x32xf32>, vector<32x32xf32> -> vector<32x32xf32>
    %50 = vector.shape_cast %40 : vector<16x2x16xf32> to vector<32x16xf32>
    %51 = vector.extract_strided_slice %46 {offsets = [16, 0], sizes = [16, 32], strides = [1, 1]} : vector<48x32xf32> to vector<16x32xf32>
    %cst_11 = arith.constant dense<0.000000e+00> : vector<32x32xf32>
    %52 = tpu.matmul %50, %51, %cst_11 {dimension_numbers = #tpu.dot_dimension_numbers<[1], [0], [0], [1], [0, 0, 1, 1], [], []>} : vector<32x16xf32>, vector<16x32xf32>, vector<32x32xf32> -> vector<32x32xf32>
    %53 = arith.addf %49, %52 : vector<32x32xf32>
    %54 = vector.shape_cast %45 : vector<16x2x16xf32> to vector<32x16xf32>
    %55 = vector.extract_strided_slice %46 {offsets = [32, 0], sizes = [16, 32], strides = [1, 1]} : vector<48x32xf32> to vector<16x32xf32>
    %cst_12 = arith.constant dense<0.000000e+00> : vector<32x32xf32>
    %56 = tpu.matmul %54, %55, %cst_12 {dimension_numbers = #tpu.dot_dimension_numbers<[1], [0], [0], [1], [0, 0, 1, 1], [], []>} : vector<32x16xf32>, vector<16x32xf32>, vector<32x32xf32> -> vector<32x32xf32>
    %57 = arith.addf %53, %56 : vector<32x32xf32>
    %58 = vector.shape_cast %57 : vector<32x32xf32> to vector<16x2x32xf32>
    %c0_13 = arith.constant 0 : index
    %c0_14 = arith.constant 0 : index
    %c0_15 = arith.constant 0 : index
    %59 = vector.load %arg5[%c0_13, %c0_14, %c0_15] : memref<1x1x32xf32, #tpu.memory_space<vmem>>, vector<1x1x32xf32>
    %60 = vector.broadcast %59 : vector<1x1x32xf32> to vector<16x2x32xf32>
    %61 = arith.addf %58, %60 : vector<16x2x32xf32>
    %cst_16 = arith.constant 0.000000e+00 : f32
    %62 = vector.broadcast %cst_16 : f32 to vector<16x2x32xf32>
    %63 = arith.maximumf %61, %62 : vector<16x2x32xf32>
    %64 = vector.shape_cast %63 : vector<16x2x32xf32> to vector<8x2x2x32xf32>
    %65 = vector.extract_strided_slice %64 {offsets = [0, 0, 0, 0], sizes = [8, 1, 2, 32], strides = [1, 1, 1, 1]} : vector<8x2x2x32xf32> to vector<8x1x2x32xf32>
    %66 = vector.shape_cast %65 : vector<8x1x2x32xf32> to vector<8x2x32xf32>
    %67 = vector.extract_strided_slice %64 {offsets = [0, 1, 0, 0], sizes = [8, 1, 2, 32], strides = [1, 1, 1, 1]} : vector<8x2x2x32xf32> to vector<8x1x2x32xf32>
    %68 = vector.shape_cast %67 : vector<8x1x2x32xf32> to vector<8x2x32xf32>
    %69 = arith.maximumf %66, %68 : vector<8x2x32xf32>
    %70 = vector.shape_cast %69 : vector<8x2x32xf32> to vector<16x32xf32>
    %c0_17 = arith.constant 0 : index
    %c0_18 = arith.constant 0 : index
    %71 = vector.load %arg6[%c0_17, %c0_18] : memref<32x128xf32, #tpu.memory_space<vmem>>, vector<32x128xf32>
    %cst_19 = arith.constant dense<0.000000e+00> : vector<16x128xf32>
    %72 = tpu.matmul %70, %71, %cst_19 {dimension_numbers = #tpu.dot_dimension_numbers<[1], [0], [0], [1], [0, 0, 1, 1], [], []>} : vector<16x32xf32>, vector<32x128xf32>, vector<16x128xf32> -> vector<16x128xf32>
    %c0_20 = arith.constant 0 : index
    %c0_21 = arith.constant 0 : index
    %73 = vector.load %arg8[%c0_20, %c0_21] : memref<1x128xf32, #tpu.memory_space<vmem>>, vector<1x128xf32>
    %74 = vector.broadcast %73 : vector<1x128xf32> to vector<16x128xf32>
    %75 = arith.addf %72, %74 : vector<16x128xf32>
    %c0_22 = arith.constant 0 : index
    %c0_23 = arith.constant 0 : index
    %76 = vector.load %arg7[%c0_22, %c0_23] : memref<32x128xf32, #tpu.memory_space<vmem>>, vector<32x128xf32>
    %c0_24 = arith.constant 0 : index
    %c0_25 = arith.constant 0 : index
    %77 = vector.load %arg9[%c0_24, %c0_25] : memref<32x128xf32, #tpu.memory_space<vmem>>, vector<32x128xf32>
    %c0_26 = arith.constant 0 : index
    %c0_27 = arith.constant 0 : index
    %78 = vector.load %arg10[%c0_26, %c0_27] : memref<32x128xf32, #tpu.memory_space<vmem>>, vector<32x128xf32>
    %c0_28 = arith.constant 0 : index
    %c0_29 = arith.constant 0 : index
    %79 = vector.load %arg11[%c0_28, %c0_29] : memref<1x128xf32, #tpu.memory_space<vmem>>, vector<1x128xf32>
    %80 = tpu.iota {dimensions = array<i32: 1>} : vector<1x128xi32>
    %c64_i32 = arith.constant 64 : i32
    %81 = vector.broadcast %c64_i32 : i32 to vector<1x128xi32>
    %82 = arith.cmpi sge, %80, %81 : vector<1x128xi32>
    %c96_i32 = arith.constant 96 : i32
    %83 = vector.broadcast %c96_i32 : i32 to vector<1x128xi32>
    %84 = arith.cmpi slt, %80, %83 : vector<1x128xi32>
    %85 = arith.andi %82, %84 : vector<1x128xi1>
    %cst_30 = arith.constant 0.000000e+00 : f32
    %86 = vector.broadcast %cst_30 : f32 to vector<2x32xf32>
    %87 = vector.extract_strided_slice %75 {offsets = [0, 0], sizes = [2, 128], strides = [1, 1]} : vector<16x128xf32> to vector<2x128xf32>
    %cst_31 = arith.constant dense<0.000000e+00> : vector<2x128xf32>
    %88 = tpu.matmul %86, %76, %cst_31 {dimension_numbers = #tpu.dot_dimension_numbers<[1], [0], [0], [1], [0, 0, 1, 1], [], []>} : vector<2x32xf32>, vector<32x128xf32>, vector<2x128xf32> -> vector<2x128xf32>
    %89 = arith.addf %87, %88 : vector<2x128xf32>
    %90 = math.tanh %89 : vector<2x128xf32>
    %91 = arith.negf %89 : vector<2x128xf32>
    %92 = math.exp %91 : vector<2x128xf32>
    %cst_32 = arith.constant 1.000000e+00 : f32
    %93 = vector.broadcast %cst_32 : f32 to vector<2x128xf32>
    %94 = arith.addf %93, %92 : vector<2x128xf32>
    %95 = arith.divf %93, %94 : vector<2x128xf32>
    %96 = vector.shape_cast %85 : vector<1x128xi1> to vector<1x128xi1>
    %97 = vector.broadcast %96 : vector<1x128xi1> to vector<2x128xi1>
    %98 = arith.select %97, %90, %95 : vector<2x128xi1>, vector<2x128xf32>
    %99 = vector.extract_strided_slice %98 {offsets = [0, 0], sizes = [2, 32], strides = [1, 1]} : vector<2x128xf32> to vector<2x32xf32>
    %100 = vector.extract_strided_slice %98 {offsets = [0, 32], sizes = [2, 32], strides = [1, 1]} : vector<2x128xf32> to vector<2x32xf32>
    %101 = vector.extract_strided_slice %98 {offsets = [0, 64], sizes = [2, 32], strides = [1, 1]} : vector<2x128xf32> to vector<2x32xf32>
    %102 = vector.extract_strided_slice %98 {offsets = [0, 96], sizes = [2, 32], strides = [1, 1]} : vector<2x128xf32> to vector<2x32xf32>
    %103 = arith.mulf %100, %86 : vector<2x32xf32>
    %104 = arith.mulf %99, %101 : vector<2x32xf32>
    %105 = arith.addf %103, %104 : vector<2x32xf32>
    %106 = math.tanh %105 : vector<2x32xf32>
    %107 = arith.mulf %102, %106 : vector<2x32xf32>
    %cst_33 = arith.constant dense<0.000000e+00> : vector<2x128xf32>
    %108 = tpu.matmul %107, %77, %cst_33 {dimension_numbers = #tpu.dot_dimension_numbers<[1], [0], [0], [1], [0, 0, 1, 1], [], []>} : vector<2x32xf32>, vector<32x128xf32>, vector<2x128xf32> -> vector<2x128xf32>
    %cst_34 = arith.constant dense<0.000000e+00> : vector<2x128xf32>
    %109 = tpu.matmul %86, %78, %cst_34 {dimension_numbers = #tpu.dot_dimension_numbers<[1], [0], [0], [1], [0, 0, 1, 1], [], []>} : vector<2x32xf32>, vector<32x128xf32>, vector<2x128xf32> -> vector<2x128xf32>
    %110 = arith.addf %108, %109 : vector<2x128xf32>
    %111 = vector.broadcast %79 : vector<1x128xf32> to vector<2x128xf32>
    %112 = arith.addf %110, %111 : vector<2x128xf32>
    %113 = math.tanh %112 : vector<2x128xf32>
    %114 = arith.negf %112 : vector<2x128xf32>
    %115 = math.exp %114 : vector<2x128xf32>
    %cst_35 = arith.constant 1.000000e+00 : f32
    %116 = vector.broadcast %cst_35 : f32 to vector<2x128xf32>
    %117 = arith.addf %116, %115 : vector<2x128xf32>
    %118 = arith.divf %116, %117 : vector<2x128xf32>
    %119 = vector.shape_cast %85 : vector<1x128xi1> to vector<1x128xi1>
    %120 = vector.broadcast %119 : vector<1x128xi1> to vector<2x128xi1>
    %121 = arith.select %120, %113, %118 : vector<2x128xi1>, vector<2x128xf32>
    %122 = vector.extract_strided_slice %121 {offsets = [0, 0], sizes = [2, 32], strides = [1, 1]} : vector<2x128xf32> to vector<2x32xf32>
    %123 = vector.extract_strided_slice %121 {offsets = [0, 32], sizes = [2, 32], strides = [1, 1]} : vector<2x128xf32> to vector<2x32xf32>
    %124 = vector.extract_strided_slice %121 {offsets = [0, 64], sizes = [2, 32], strides = [1, 1]} : vector<2x128xf32> to vector<2x32xf32>
    %125 = vector.extract_strided_slice %121 {offsets = [0, 96], sizes = [2, 32], strides = [1, 1]} : vector<2x128xf32> to vector<2x32xf32>
    %126 = arith.mulf %123, %86 : vector<2x32xf32>
    %127 = arith.mulf %122, %124 : vector<2x32xf32>
    %128 = arith.addf %126, %127 : vector<2x32xf32>
    %129 = math.tanh %128 : vector<2x32xf32>
    %130 = arith.mulf %125, %129 : vector<2x32xf32>
    %131 = vector.extract_strided_slice %75 {offsets = [2, 0], sizes = [2, 128], strides = [1, 1]} : vector<16x128xf32> to vector<2x128xf32>
    %cst_36 = arith.constant dense<0.000000e+00> : vector<2x128xf32>
    %132 = tpu.matmul %107, %76, %cst_36 {dimension_numbers = #tpu.dot_dimension_numbers<[1], [0], [0], [1], [0, 0, 1, 1], [], []>} : vector<2x32xf32>, vector<32x128xf32>, vector<2x128xf32> -> vector<2x128xf32>
    %133 = arith.addf %131, %132 : vector<2x128xf32>
    %134 = math.tanh %133 : vector<2x128xf32>
    %135 = arith.negf %133 : vector<2x128xf32>
    %136 = math.exp %135 : vector<2x128xf32>
    %cst_37 = arith.constant 1.000000e+00 : f32
    %137 = vector.broadcast %cst_37 : f32 to vector<2x128xf32>
    %138 = arith.addf %137, %136 : vector<2x128xf32>
    %139 = arith.divf %137, %138 : vector<2x128xf32>
    %140 = vector.shape_cast %85 : vector<1x128xi1> to vector<1x128xi1>
    %141 = vector.broadcast %140 : vector<1x128xi1> to vector<2x128xi1>
    %142 = arith.select %141, %134, %139 : vector<2x128xi1>, vector<2x128xf32>
    %143 = vector.extract_strided_slice %142 {offsets = [0, 0], sizes = [2, 32], strides = [1, 1]} : vector<2x128xf32> to vector<2x32xf32>
    %144 = vector.extract_strided_slice %142 {offsets = [0, 32], sizes = [2, 32], strides = [1, 1]} : vector<2x128xf32> to vector<2x32xf32>
    %145 = vector.extract_strided_slice %142 {offsets = [0, 64], sizes = [2, 32], strides = [1, 1]} : vector<2x128xf32> to vector<2x32xf32>
    %146 = vector.extract_strided_slice %142 {offsets = [0, 96], sizes = [2, 32], strides = [1, 1]} : vector<2x128xf32> to vector<2x32xf32>
    %147 = arith.mulf %144, %105 : vector<2x32xf32>
    %148 = arith.mulf %143, %145 : vector<2x32xf32>
    %149 = arith.addf %147, %148 : vector<2x32xf32>
    %150 = math.tanh %149 : vector<2x32xf32>
    %151 = arith.mulf %146, %150 : vector<2x32xf32>
    %cst_38 = arith.constant dense<0.000000e+00> : vector<2x128xf32>
    %152 = tpu.matmul %151, %77, %cst_38 {dimension_numbers = #tpu.dot_dimension_numbers<[1], [0], [0], [1], [0, 0, 1, 1], [], []>} : vector<2x32xf32>, vector<32x128xf32>, vector<2x128xf32> -> vector<2x128xf32>
    %cst_39 = arith.constant dense<0.000000e+00> : vector<2x128xf32>
    %153 = tpu.matmul %130, %78, %cst_39 {dimension_numbers = #tpu.dot_dimension_numbers<[1], [0], [0], [1], [0, 0, 1, 1], [], []>} : vector<2x32xf32>, vector<32x128xf32>, vector<2x128xf32> -> vector<2x128xf32>
    %154 = arith.addf %152, %153 : vector<2x128xf32>
    %155 = vector.broadcast %79 : vector<1x128xf32> to vector<2x128xf32>
    %156 = arith.addf %154, %155 : vector<2x128xf32>
    %157 = math.tanh %156 : vector<2x128xf32>
    %158 = arith.negf %156 : vector<2x128xf32>
    %159 = math.exp %158 : vector<2x128xf32>
    %cst_40 = arith.constant 1.000000e+00 : f32
    %160 = vector.broadcast %cst_40 : f32 to vector<2x128xf32>
    %161 = arith.addf %160, %159 : vector<2x128xf32>
    %162 = arith.divf %160, %161 : vector<2x128xf32>
    %163 = vector.shape_cast %85 : vector<1x128xi1> to vector<1x128xi1>
    %164 = vector.broadcast %163 : vector<1x128xi1> to vector<2x128xi1>
    %165 = arith.select %164, %157, %162 : vector<2x128xi1>, vector<2x128xf32>
    %166 = vector.extract_strided_slice %165 {offsets = [0, 0], sizes = [2, 32], strides = [1, 1]} : vector<2x128xf32> to vector<2x32xf32>
    %167 = vector.extract_strided_slice %165 {offsets = [0, 32], sizes = [2, 32], strides = [1, 1]} : vector<2x128xf32> to vector<2x32xf32>
    %168 = vector.extract_strided_slice %165 {offsets = [0, 64], sizes = [2, 32], strides = [1, 1]} : vector<2x128xf32> to vector<2x32xf32>
    %169 = vector.extract_strided_slice %165 {offsets = [0, 96], sizes = [2, 32], strides = [1, 1]} : vector<2x128xf32> to vector<2x32xf32>
    %170 = arith.mulf %167, %128 : vector<2x32xf32>
    %171 = arith.mulf %166, %168 : vector<2x32xf32>
    %172 = arith.addf %170, %171 : vector<2x32xf32>
    %173 = math.tanh %172 : vector<2x32xf32>
    %174 = arith.mulf %169, %173 : vector<2x32xf32>
    %175 = vector.extract_strided_slice %75 {offsets = [4, 0], sizes = [2, 128], strides = [1, 1]} : vector<16x128xf32> to vector<2x128xf32>
    %cst_41 = arith.constant dense<0.000000e+00> : vector<2x128xf32>
    %176 = tpu.matmul %151, %76, %cst_41 {dimension_numbers = #tpu.dot_dimension_numbers<[1], [0], [0], [1], [0, 0, 1, 1], [], []>} : vector<2x32xf32>, vector<32x128xf32>, vector<2x128xf32> -> vector<2x128xf32>
    %177 = arith.addf %175, %176 : vector<2x128xf32>
    %178 = math.tanh %177 : vector<2x128xf32>
    %179 = arith.negf %177 : vector<2x128xf32>
    %180 = math.exp %179 : vector<2x128xf32>
    %cst_42 = arith.constant 1.000000e+00 : f32
    %181 = vector.broadcast %cst_42 : f32 to vector<2x128xf32>
    %182 = arith.addf %181, %180 : vector<2x128xf32>
    %183 = arith.divf %181, %182 : vector<2x128xf32>
    %184 = vector.shape_cast %85 : vector<1x128xi1> to vector<1x128xi1>
    %185 = vector.broadcast %184 : vector<1x128xi1> to vector<2x128xi1>
    %186 = arith.select %185, %178, %183 : vector<2x128xi1>, vector<2x128xf32>
    %187 = vector.extract_strided_slice %186 {offsets = [0, 0], sizes = [2, 32], strides = [1, 1]} : vector<2x128xf32> to vector<2x32xf32>
    %188 = vector.extract_strided_slice %186 {offsets = [0, 32], sizes = [2, 32], strides = [1, 1]} : vector<2x128xf32> to vector<2x32xf32>
    %189 = vector.extract_strided_slice %186 {offsets = [0, 64], sizes = [2, 32], strides = [1, 1]} : vector<2x128xf32> to vector<2x32xf32>
    %190 = vector.extract_strided_slice %186 {offsets = [0, 96], sizes = [2, 32], strides = [1, 1]} : vector<2x128xf32> to vector<2x32xf32>
    %191 = arith.mulf %188, %149 : vector<2x32xf32>
    %192 = arith.mulf %187, %189 : vector<2x32xf32>
    %193 = arith.addf %191, %192 : vector<2x32xf32>
    %194 = math.tanh %193 : vector<2x32xf32>
    %195 = arith.mulf %190, %194 : vector<2x32xf32>
    %cst_43 = arith.constant dense<0.000000e+00> : vector<2x128xf32>
    %196 = tpu.matmul %195, %77, %cst_43 {dimension_numbers = #tpu.dot_dimension_numbers<[1], [0], [0], [1], [0, 0, 1, 1], [], []>} : vector<2x32xf32>, vector<32x128xf32>, vector<2x128xf32> -> vector<2x128xf32>
    %cst_44 = arith.constant dense<0.000000e+00> : vector<2x128xf32>
    %197 = tpu.matmul %174, %78, %cst_44 {dimension_numbers = #tpu.dot_dimension_numbers<[1], [0], [0], [1], [0, 0, 1, 1], [], []>} : vector<2x32xf32>, vector<32x128xf32>, vector<2x128xf32> -> vector<2x128xf32>
    %198 = arith.addf %196, %197 : vector<2x128xf32>
    %199 = vector.broadcast %79 : vector<1x128xf32> to vector<2x128xf32>
    %200 = arith.addf %198, %199 : vector<2x128xf32>
    %201 = math.tanh %200 : vector<2x128xf32>
    %202 = arith.negf %200 : vector<2x128xf32>
    %203 = math.exp %202 : vector<2x128xf32>
    %cst_45 = arith.constant 1.000000e+00 : f32
    %204 = vector.broadcast %cst_45 : f32 to vector<2x128xf32>
    %205 = arith.addf %204, %203 : vector<2x128xf32>
    %206 = arith.divf %204, %205 : vector<2x128xf32>
    %207 = vector.shape_cast %85 : vector<1x128xi1> to vector<1x128xi1>
    %208 = vector.broadcast %207 : vector<1x128xi1> to vector<2x128xi1>
    %209 = arith.select %208, %201, %206 : vector<2x128xi1>, vector<2x128xf32>
    %210 = vector.extract_strided_slice %209 {offsets = [0, 0], sizes = [2, 32], strides = [1, 1]} : vector<2x128xf32> to vector<2x32xf32>
    %211 = vector.extract_strided_slice %209 {offsets = [0, 32], sizes = [2, 32], strides = [1, 1]} : vector<2x128xf32> to vector<2x32xf32>
    %212 = vector.extract_strided_slice %209 {offsets = [0, 64], sizes = [2, 32], strides = [1, 1]} : vector<2x128xf32> to vector<2x32xf32>
    %213 = vector.extract_strided_slice %209 {offsets = [0, 96], sizes = [2, 32], strides = [1, 1]} : vector<2x128xf32> to vector<2x32xf32>
    %214 = arith.mulf %211, %172 : vector<2x32xf32>
    %215 = arith.mulf %210, %212 : vector<2x32xf32>
    %216 = arith.addf %214, %215 : vector<2x32xf32>
    %217 = math.tanh %216 : vector<2x32xf32>
    %218 = arith.mulf %213, %217 : vector<2x32xf32>
    %219 = vector.extract_strided_slice %75 {offsets = [6, 0], sizes = [2, 128], strides = [1, 1]} : vector<16x128xf32> to vector<2x128xf32>
    %cst_46 = arith.constant dense<0.000000e+00> : vector<2x128xf32>
    %220 = tpu.matmul %195, %76, %cst_46 {dimension_numbers = #tpu.dot_dimension_numbers<[1], [0], [0], [1], [0, 0, 1, 1], [], []>} : vector<2x32xf32>, vector<32x128xf32>, vector<2x128xf32> -> vector<2x128xf32>
    %221 = arith.addf %219, %220 : vector<2x128xf32>
    %222 = math.tanh %221 : vector<2x128xf32>
    %223 = arith.negf %221 : vector<2x128xf32>
    %224 = math.exp %223 : vector<2x128xf32>
    %cst_47 = arith.constant 1.000000e+00 : f32
    %225 = vector.broadcast %cst_47 : f32 to vector<2x128xf32>
    %226 = arith.addf %225, %224 : vector<2x128xf32>
    %227 = arith.divf %225, %226 : vector<2x128xf32>
    %228 = vector.shape_cast %85 : vector<1x128xi1> to vector<1x128xi1>
    %229 = vector.broadcast %228 : vector<1x128xi1> to vector<2x128xi1>
    %230 = arith.select %229, %222, %227 : vector<2x128xi1>, vector<2x128xf32>
    %231 = vector.extract_strided_slice %230 {offsets = [0, 0], sizes = [2, 32], strides = [1, 1]} : vector<2x128xf32> to vector<2x32xf32>
    %232 = vector.extract_strided_slice %230 {offsets = [0, 32], sizes = [2, 32], strides = [1, 1]} : vector<2x128xf32> to vector<2x32xf32>
    %233 = vector.extract_strided_slice %230 {offsets = [0, 64], sizes = [2, 32], strides = [1, 1]} : vector<2x128xf32> to vector<2x32xf32>
    %234 = vector.extract_strided_slice %230 {offsets = [0, 96], sizes = [2, 32], strides = [1, 1]} : vector<2x128xf32> to vector<2x32xf32>
    %235 = arith.mulf %232, %193 : vector<2x32xf32>
    %236 = arith.mulf %231, %233 : vector<2x32xf32>
    %237 = arith.addf %235, %236 : vector<2x32xf32>
    %238 = math.tanh %237 : vector<2x32xf32>
    %239 = arith.mulf %234, %238 : vector<2x32xf32>
    %cst_48 = arith.constant dense<0.000000e+00> : vector<2x128xf32>
    %240 = tpu.matmul %239, %77, %cst_48 {dimension_numbers = #tpu.dot_dimension_numbers<[1], [0], [0], [1], [0, 0, 1, 1], [], []>} : vector<2x32xf32>, vector<32x128xf32>, vector<2x128xf32> -> vector<2x128xf32>
    %cst_49 = arith.constant dense<0.000000e+00> : vector<2x128xf32>
    %241 = tpu.matmul %218, %78, %cst_49 {dimension_numbers = #tpu.dot_dimension_numbers<[1], [0], [0], [1], [0, 0, 1, 1], [], []>} : vector<2x32xf32>, vector<32x128xf32>, vector<2x128xf32> -> vector<2x128xf32>
    %242 = arith.addf %240, %241 : vector<2x128xf32>
    %243 = vector.broadcast %79 : vector<1x128xf32> to vector<2x128xf32>
    %244 = arith.addf %242, %243 : vector<2x128xf32>
    %245 = math.tanh %244 : vector<2x128xf32>
    %246 = arith.negf %244 : vector<2x128xf32>
    %247 = math.exp %246 : vector<2x128xf32>
    %cst_50 = arith.constant 1.000000e+00 : f32
    %248 = vector.broadcast %cst_50 : f32 to vector<2x128xf32>
    %249 = arith.addf %248, %247 : vector<2x128xf32>
    %250 = arith.divf %248, %249 : vector<2x128xf32>
    %251 = vector.shape_cast %85 : vector<1x128xi1> to vector<1x128xi1>
    %252 = vector.broadcast %251 : vector<1x128xi1> to vector<2x128xi1>
    %253 = arith.select %252, %245, %250 : vector<2x128xi1>, vector<2x128xf32>
    %254 = vector.extract_strided_slice %253 {offsets = [0, 0], sizes = [2, 32], strides = [1, 1]} : vector<2x128xf32> to vector<2x32xf32>
    %255 = vector.extract_strided_slice %253 {offsets = [0, 32], sizes = [2, 32], strides = [1, 1]} : vector<2x128xf32> to vector<2x32xf32>
    %256 = vector.extract_strided_slice %253 {offsets = [0, 64], sizes = [2, 32], strides = [1, 1]} : vector<2x128xf32> to vector<2x32xf32>
    %257 = vector.extract_strided_slice %253 {offsets = [0, 96], sizes = [2, 32], strides = [1, 1]} : vector<2x128xf32> to vector<2x32xf32>
    %258 = arith.mulf %255, %216 : vector<2x32xf32>
    %259 = arith.mulf %254, %256 : vector<2x32xf32>
    %260 = arith.addf %258, %259 : vector<2x32xf32>
    %261 = math.tanh %260 : vector<2x32xf32>
    %262 = arith.mulf %257, %261 : vector<2x32xf32>
    %263 = vector.extract_strided_slice %75 {offsets = [8, 0], sizes = [2, 128], strides = [1, 1]} : vector<16x128xf32> to vector<2x128xf32>
    %cst_51 = arith.constant dense<0.000000e+00> : vector<2x128xf32>
    %264 = tpu.matmul %239, %76, %cst_51 {dimension_numbers = #tpu.dot_dimension_numbers<[1], [0], [0], [1], [0, 0, 1, 1], [], []>} : vector<2x32xf32>, vector<32x128xf32>, vector<2x128xf32> -> vector<2x128xf32>
    %265 = arith.addf %263, %264 : vector<2x128xf32>
    %266 = math.tanh %265 : vector<2x128xf32>
    %267 = arith.negf %265 : vector<2x128xf32>
    %268 = math.exp %267 : vector<2x128xf32>
    %cst_52 = arith.constant 1.000000e+00 : f32
    %269 = vector.broadcast %cst_52 : f32 to vector<2x128xf32>
    %270 = arith.addf %269, %268 : vector<2x128xf32>
    %271 = arith.divf %269, %270 : vector<2x128xf32>
    %272 = vector.shape_cast %85 : vector<1x128xi1> to vector<1x128xi1>
    %273 = vector.broadcast %272 : vector<1x128xi1> to vector<2x128xi1>
    %274 = arith.select %273, %266, %271 : vector<2x128xi1>, vector<2x128xf32>
    %275 = vector.extract_strided_slice %274 {offsets = [0, 0], sizes = [2, 32], strides = [1, 1]} : vector<2x128xf32> to vector<2x32xf32>
    %276 = vector.extract_strided_slice %274 {offsets = [0, 32], sizes = [2, 32], strides = [1, 1]} : vector<2x128xf32> to vector<2x32xf32>
    %277 = vector.extract_strided_slice %274 {offsets = [0, 64], sizes = [2, 32], strides = [1, 1]} : vector<2x128xf32> to vector<2x32xf32>
    %278 = vector.extract_strided_slice %274 {offsets = [0, 96], sizes = [2, 32], strides = [1, 1]} : vector<2x128xf32> to vector<2x32xf32>
    %279 = arith.mulf %276, %237 : vector<2x32xf32>
    %280 = arith.mulf %275, %277 : vector<2x32xf32>
    %281 = arith.addf %279, %280 : vector<2x32xf32>
    %282 = math.tanh %281 : vector<2x32xf32>
    %283 = arith.mulf %278, %282 : vector<2x32xf32>
    %cst_53 = arith.constant dense<0.000000e+00> : vector<2x128xf32>
    %284 = tpu.matmul %283, %77, %cst_53 {dimension_numbers = #tpu.dot_dimension_numbers<[1], [0], [0], [1], [0, 0, 1, 1], [], []>} : vector<2x32xf32>, vector<32x128xf32>, vector<2x128xf32> -> vector<2x128xf32>
    %cst_54 = arith.constant dense<0.000000e+00> : vector<2x128xf32>
    %285 = tpu.matmul %262, %78, %cst_54 {dimension_numbers = #tpu.dot_dimension_numbers<[1], [0], [0], [1], [0, 0, 1, 1], [], []>} : vector<2x32xf32>, vector<32x128xf32>, vector<2x128xf32> -> vector<2x128xf32>
    %286 = arith.addf %284, %285 : vector<2x128xf32>
    %287 = vector.broadcast %79 : vector<1x128xf32> to vector<2x128xf32>
    %288 = arith.addf %286, %287 : vector<2x128xf32>
    %289 = math.tanh %288 : vector<2x128xf32>
    %290 = arith.negf %288 : vector<2x128xf32>
    %291 = math.exp %290 : vector<2x128xf32>
    %cst_55 = arith.constant 1.000000e+00 : f32
    %292 = vector.broadcast %cst_55 : f32 to vector<2x128xf32>
    %293 = arith.addf %292, %291 : vector<2x128xf32>
    %294 = arith.divf %292, %293 : vector<2x128xf32>
    %295 = vector.shape_cast %85 : vector<1x128xi1> to vector<1x128xi1>
    %296 = vector.broadcast %295 : vector<1x128xi1> to vector<2x128xi1>
    %297 = arith.select %296, %289, %294 : vector<2x128xi1>, vector<2x128xf32>
    %298 = vector.extract_strided_slice %297 {offsets = [0, 0], sizes = [2, 32], strides = [1, 1]} : vector<2x128xf32> to vector<2x32xf32>
    %299 = vector.extract_strided_slice %297 {offsets = [0, 32], sizes = [2, 32], strides = [1, 1]} : vector<2x128xf32> to vector<2x32xf32>
    %300 = vector.extract_strided_slice %297 {offsets = [0, 64], sizes = [2, 32], strides = [1, 1]} : vector<2x128xf32> to vector<2x32xf32>
    %301 = vector.extract_strided_slice %297 {offsets = [0, 96], sizes = [2, 32], strides = [1, 1]} : vector<2x128xf32> to vector<2x32xf32>
    %302 = arith.mulf %299, %260 : vector<2x32xf32>
    %303 = arith.mulf %298, %300 : vector<2x32xf32>
    %304 = arith.addf %302, %303 : vector<2x32xf32>
    %305 = math.tanh %304 : vector<2x32xf32>
    %306 = arith.mulf %301, %305 : vector<2x32xf32>
    %307 = vector.extract_strided_slice %75 {offsets = [10, 0], sizes = [2, 128], strides = [1, 1]} : vector<16x128xf32> to vector<2x128xf32>
    %cst_56 = arith.constant dense<0.000000e+00> : vector<2x128xf32>
    %308 = tpu.matmul %283, %76, %cst_56 {dimension_numbers = #tpu.dot_dimension_numbers<[1], [0], [0], [1], [0, 0, 1, 1], [], []>} : vector<2x32xf32>, vector<32x128xf32>, vector<2x128xf32> -> vector<2x128xf32>
    %309 = arith.addf %307, %308 : vector<2x128xf32>
    %310 = math.tanh %309 : vector<2x128xf32>
    %311 = arith.negf %309 : vector<2x128xf32>
    %312 = math.exp %311 : vector<2x128xf32>
    %cst_57 = arith.constant 1.000000e+00 : f32
    %313 = vector.broadcast %cst_57 : f32 to vector<2x128xf32>
    %314 = arith.addf %313, %312 : vector<2x128xf32>
    %315 = arith.divf %313, %314 : vector<2x128xf32>
    %316 = vector.shape_cast %85 : vector<1x128xi1> to vector<1x128xi1>
    %317 = vector.broadcast %316 : vector<1x128xi1> to vector<2x128xi1>
    %318 = arith.select %317, %310, %315 : vector<2x128xi1>, vector<2x128xf32>
    %319 = vector.extract_strided_slice %318 {offsets = [0, 0], sizes = [2, 32], strides = [1, 1]} : vector<2x128xf32> to vector<2x32xf32>
    %320 = vector.extract_strided_slice %318 {offsets = [0, 32], sizes = [2, 32], strides = [1, 1]} : vector<2x128xf32> to vector<2x32xf32>
    %321 = vector.extract_strided_slice %318 {offsets = [0, 64], sizes = [2, 32], strides = [1, 1]} : vector<2x128xf32> to vector<2x32xf32>
    %322 = vector.extract_strided_slice %318 {offsets = [0, 96], sizes = [2, 32], strides = [1, 1]} : vector<2x128xf32> to vector<2x32xf32>
    %323 = arith.mulf %320, %281 : vector<2x32xf32>
    %324 = arith.mulf %319, %321 : vector<2x32xf32>
    %325 = arith.addf %323, %324 : vector<2x32xf32>
    %326 = math.tanh %325 : vector<2x32xf32>
    %327 = arith.mulf %322, %326 : vector<2x32xf32>
    %cst_58 = arith.constant dense<0.000000e+00> : vector<2x128xf32>
    %328 = tpu.matmul %327, %77, %cst_58 {dimension_numbers = #tpu.dot_dimension_numbers<[1], [0], [0], [1], [0, 0, 1, 1], [], []>} : vector<2x32xf32>, vector<32x128xf32>, vector<2x128xf32> -> vector<2x128xf32>
    %cst_59 = arith.constant dense<0.000000e+00> : vector<2x128xf32>
    %329 = tpu.matmul %306, %78, %cst_59 {dimension_numbers = #tpu.dot_dimension_numbers<[1], [0], [0], [1], [0, 0, 1, 1], [], []>} : vector<2x32xf32>, vector<32x128xf32>, vector<2x128xf32> -> vector<2x128xf32>
    %330 = arith.addf %328, %329 : vector<2x128xf32>
    %331 = vector.broadcast %79 : vector<1x128xf32> to vector<2x128xf32>
    %332 = arith.addf %330, %331 : vector<2x128xf32>
    %333 = math.tanh %332 : vector<2x128xf32>
    %334 = arith.negf %332 : vector<2x128xf32>
    %335 = math.exp %334 : vector<2x128xf32>
    %cst_60 = arith.constant 1.000000e+00 : f32
    %336 = vector.broadcast %cst_60 : f32 to vector<2x128xf32>
    %337 = arith.addf %336, %335 : vector<2x128xf32>
    %338 = arith.divf %336, %337 : vector<2x128xf32>
    %339 = vector.shape_cast %85 : vector<1x128xi1> to vector<1x128xi1>
    %340 = vector.broadcast %339 : vector<1x128xi1> to vector<2x128xi1>
    %341 = arith.select %340, %333, %338 : vector<2x128xi1>, vector<2x128xf32>
    %342 = vector.extract_strided_slice %341 {offsets = [0, 0], sizes = [2, 32], strides = [1, 1]} : vector<2x128xf32> to vector<2x32xf32>
    %343 = vector.extract_strided_slice %341 {offsets = [0, 32], sizes = [2, 32], strides = [1, 1]} : vector<2x128xf32> to vector<2x32xf32>
    %344 = vector.extract_strided_slice %341 {offsets = [0, 64], sizes = [2, 32], strides = [1, 1]} : vector<2x128xf32> to vector<2x32xf32>
    %345 = vector.extract_strided_slice %341 {offsets = [0, 96], sizes = [2, 32], strides = [1, 1]} : vector<2x128xf32> to vector<2x32xf32>
    %346 = arith.mulf %343, %304 : vector<2x32xf32>
    %347 = arith.mulf %342, %344 : vector<2x32xf32>
    %348 = arith.addf %346, %347 : vector<2x32xf32>
    %349 = math.tanh %348 : vector<2x32xf32>
    %350 = arith.mulf %345, %349 : vector<2x32xf32>
    %351 = vector.extract_strided_slice %75 {offsets = [12, 0], sizes = [2, 128], strides = [1, 1]} : vector<16x128xf32> to vector<2x128xf32>
    %cst_61 = arith.constant dense<0.000000e+00> : vector<2x128xf32>
    %352 = tpu.matmul %327, %76, %cst_61 {dimension_numbers = #tpu.dot_dimension_numbers<[1], [0], [0], [1], [0, 0, 1, 1], [], []>} : vector<2x32xf32>, vector<32x128xf32>, vector<2x128xf32> -> vector<2x128xf32>
    %353 = arith.addf %351, %352 : vector<2x128xf32>
    %354 = math.tanh %353 : vector<2x128xf32>
    %355 = arith.negf %353 : vector<2x128xf32>
    %356 = math.exp %355 : vector<2x128xf32>
    %cst_62 = arith.constant 1.000000e+00 : f32
    %357 = vector.broadcast %cst_62 : f32 to vector<2x128xf32>
    %358 = arith.addf %357, %356 : vector<2x128xf32>
    %359 = arith.divf %357, %358 : vector<2x128xf32>
    %360 = vector.shape_cast %85 : vector<1x128xi1> to vector<1x128xi1>
    %361 = vector.broadcast %360 : vector<1x128xi1> to vector<2x128xi1>
    %362 = arith.select %361, %354, %359 : vector<2x128xi1>, vector<2x128xf32>
    %363 = vector.extract_strided_slice %362 {offsets = [0, 0], sizes = [2, 32], strides = [1, 1]} : vector<2x128xf32> to vector<2x32xf32>
    %364 = vector.extract_strided_slice %362 {offsets = [0, 32], sizes = [2, 32], strides = [1, 1]} : vector<2x128xf32> to vector<2x32xf32>
    %365 = vector.extract_strided_slice %362 {offsets = [0, 64], sizes = [2, 32], strides = [1, 1]} : vector<2x128xf32> to vector<2x32xf32>
    %366 = vector.extract_strided_slice %362 {offsets = [0, 96], sizes = [2, 32], strides = [1, 1]} : vector<2x128xf32> to vector<2x32xf32>
    %367 = arith.mulf %364, %325 : vector<2x32xf32>
    %368 = arith.mulf %363, %365 : vector<2x32xf32>
    %369 = arith.addf %367, %368 : vector<2x32xf32>
    %370 = math.tanh %369 : vector<2x32xf32>
    %371 = arith.mulf %366, %370 : vector<2x32xf32>
    %cst_63 = arith.constant dense<0.000000e+00> : vector<2x128xf32>
    %372 = tpu.matmul %371, %77, %cst_63 {dimension_numbers = #tpu.dot_dimension_numbers<[1], [0], [0], [1], [0, 0, 1, 1], [], []>} : vector<2x32xf32>, vector<32x128xf32>, vector<2x128xf32> -> vector<2x128xf32>
    %cst_64 = arith.constant dense<0.000000e+00> : vector<2x128xf32>
    %373 = tpu.matmul %350, %78, %cst_64 {dimension_numbers = #tpu.dot_dimension_numbers<[1], [0], [0], [1], [0, 0, 1, 1], [], []>} : vector<2x32xf32>, vector<32x128xf32>, vector<2x128xf32> -> vector<2x128xf32>
    %374 = arith.addf %372, %373 : vector<2x128xf32>
    %375 = vector.broadcast %79 : vector<1x128xf32> to vector<2x128xf32>
    %376 = arith.addf %374, %375 : vector<2x128xf32>
    %377 = math.tanh %376 : vector<2x128xf32>
    %378 = arith.negf %376 : vector<2x128xf32>
    %379 = math.exp %378 : vector<2x128xf32>
    %cst_65 = arith.constant 1.000000e+00 : f32
    %380 = vector.broadcast %cst_65 : f32 to vector<2x128xf32>
    %381 = arith.addf %380, %379 : vector<2x128xf32>
    %382 = arith.divf %380, %381 : vector<2x128xf32>
    %383 = vector.shape_cast %85 : vector<1x128xi1> to vector<1x128xi1>
    %384 = vector.broadcast %383 : vector<1x128xi1> to vector<2x128xi1>
    %385 = arith.select %384, %377, %382 : vector<2x128xi1>, vector<2x128xf32>
    %386 = vector.extract_strided_slice %385 {offsets = [0, 0], sizes = [2, 32], strides = [1, 1]} : vector<2x128xf32> to vector<2x32xf32>
    %387 = vector.extract_strided_slice %385 {offsets = [0, 32], sizes = [2, 32], strides = [1, 1]} : vector<2x128xf32> to vector<2x32xf32>
    %388 = vector.extract_strided_slice %385 {offsets = [0, 64], sizes = [2, 32], strides = [1, 1]} : vector<2x128xf32> to vector<2x32xf32>
    %389 = vector.extract_strided_slice %385 {offsets = [0, 96], sizes = [2, 32], strides = [1, 1]} : vector<2x128xf32> to vector<2x32xf32>
    %390 = arith.mulf %387, %348 : vector<2x32xf32>
    %391 = arith.mulf %386, %388 : vector<2x32xf32>
    %392 = arith.addf %390, %391 : vector<2x32xf32>
    %393 = math.tanh %392 : vector<2x32xf32>
    %394 = arith.mulf %389, %393 : vector<2x32xf32>
    %395 = vector.extract_strided_slice %75 {offsets = [14, 0], sizes = [2, 128], strides = [1, 1]} : vector<16x128xf32> to vector<2x128xf32>
    %cst_66 = arith.constant dense<0.000000e+00> : vector<2x128xf32>
    %396 = tpu.matmul %371, %76, %cst_66 {dimension_numbers = #tpu.dot_dimension_numbers<[1], [0], [0], [1], [0, 0, 1, 1], [], []>} : vector<2x32xf32>, vector<32x128xf32>, vector<2x128xf32> -> vector<2x128xf32>
    %397 = arith.addf %395, %396 : vector<2x128xf32>
    %398 = math.tanh %397 : vector<2x128xf32>
    %399 = arith.negf %397 : vector<2x128xf32>
    %400 = math.exp %399 : vector<2x128xf32>
    %cst_67 = arith.constant 1.000000e+00 : f32
    %401 = vector.broadcast %cst_67 : f32 to vector<2x128xf32>
    %402 = arith.addf %401, %400 : vector<2x128xf32>
    %403 = arith.divf %401, %402 : vector<2x128xf32>
    %404 = vector.shape_cast %85 : vector<1x128xi1> to vector<1x128xi1>
    %405 = vector.broadcast %404 : vector<1x128xi1> to vector<2x128xi1>
    %406 = arith.select %405, %398, %403 : vector<2x128xi1>, vector<2x128xf32>
    %407 = vector.extract_strided_slice %406 {offsets = [0, 0], sizes = [2, 32], strides = [1, 1]} : vector<2x128xf32> to vector<2x32xf32>
    %408 = vector.extract_strided_slice %406 {offsets = [0, 32], sizes = [2, 32], strides = [1, 1]} : vector<2x128xf32> to vector<2x32xf32>
    %409 = vector.extract_strided_slice %406 {offsets = [0, 64], sizes = [2, 32], strides = [1, 1]} : vector<2x128xf32> to vector<2x32xf32>
    %410 = vector.extract_strided_slice %406 {offsets = [0, 96], sizes = [2, 32], strides = [1, 1]} : vector<2x128xf32> to vector<2x32xf32>
    %411 = arith.mulf %408, %369 : vector<2x32xf32>
    %412 = arith.mulf %407, %409 : vector<2x32xf32>
    %413 = arith.addf %411, %412 : vector<2x32xf32>
    %414 = math.tanh %413 : vector<2x32xf32>
    %415 = arith.mulf %410, %414 : vector<2x32xf32>
    %cst_68 = arith.constant dense<0.000000e+00> : vector<2x128xf32>
    %416 = tpu.matmul %415, %77, %cst_68 {dimension_numbers = #tpu.dot_dimension_numbers<[1], [0], [0], [1], [0, 0, 1, 1], [], []>} : vector<2x32xf32>, vector<32x128xf32>, vector<2x128xf32> -> vector<2x128xf32>
    %cst_69 = arith.constant dense<0.000000e+00> : vector<2x128xf32>
    %417 = tpu.matmul %394, %78, %cst_69 {dimension_numbers = #tpu.dot_dimension_numbers<[1], [0], [0], [1], [0, 0, 1, 1], [], []>} : vector<2x32xf32>, vector<32x128xf32>, vector<2x128xf32> -> vector<2x128xf32>
    %418 = arith.addf %416, %417 : vector<2x128xf32>
    %419 = vector.broadcast %79 : vector<1x128xf32> to vector<2x128xf32>
    %420 = arith.addf %418, %419 : vector<2x128xf32>
    %421 = math.tanh %420 : vector<2x128xf32>
    %422 = arith.negf %420 : vector<2x128xf32>
    %423 = math.exp %422 : vector<2x128xf32>
    %cst_70 = arith.constant 1.000000e+00 : f32
    %424 = vector.broadcast %cst_70 : f32 to vector<2x128xf32>
    %425 = arith.addf %424, %423 : vector<2x128xf32>
    %426 = arith.divf %424, %425 : vector<2x128xf32>
    %427 = vector.shape_cast %85 : vector<1x128xi1> to vector<1x128xi1>
    %428 = vector.broadcast %427 : vector<1x128xi1> to vector<2x128xi1>
    %429 = arith.select %428, %421, %426 : vector<2x128xi1>, vector<2x128xf32>
    %430 = vector.extract_strided_slice %429 {offsets = [0, 0], sizes = [2, 32], strides = [1, 1]} : vector<2x128xf32> to vector<2x32xf32>
    %431 = vector.extract_strided_slice %429 {offsets = [0, 32], sizes = [2, 32], strides = [1, 1]} : vector<2x128xf32> to vector<2x32xf32>
    %432 = vector.extract_strided_slice %429 {offsets = [0, 64], sizes = [2, 32], strides = [1, 1]} : vector<2x128xf32> to vector<2x32xf32>
    %433 = vector.extract_strided_slice %429 {offsets = [0, 96], sizes = [2, 32], strides = [1, 1]} : vector<2x128xf32> to vector<2x32xf32>
    %434 = arith.mulf %431, %392 : vector<2x32xf32>
    %435 = arith.mulf %430, %432 : vector<2x32xf32>
    %436 = arith.addf %434, %435 : vector<2x32xf32>
    %437 = math.tanh %436 : vector<2x32xf32>
    %438 = arith.mulf %433, %437 : vector<2x32xf32>
    %c0_71 = arith.constant 0 : index
    %c0_72 = arith.constant 0 : index
    %439 = vector.load %arg12[%c0_71, %c0_72] : memref<32x4xf32, #tpu.memory_space<vmem>>, vector<32x4xf32>
    %cst_73 = arith.constant dense<0.000000e+00> : vector<2x4xf32>
    %440 = tpu.matmul %438, %439, %cst_73 {dimension_numbers = #tpu.dot_dimension_numbers<[1], [0], [0], [1], [0, 0, 1, 1], [], []>} : vector<2x32xf32>, vector<32x4xf32>, vector<2x4xf32> -> vector<2x4xf32>
    %c0_74 = arith.constant 0 : index
    %c0_75 = arith.constant 0 : index
    %441 = vector.load %arg13[%c0_74, %c0_75] : memref<1x4xf32, #tpu.memory_space<vmem>>, vector<1x4xf32>
    %442 = vector.broadcast %441 : vector<1x4xf32> to vector<2x4xf32>
    %443 = arith.addf %440, %442 : vector<2x4xf32>
    %c0_76 = arith.constant 0 : index
    %c0_77 = arith.constant 0 : index
    %444 = vector.load %arg14[%c0_76, %c0_77] : memref<2x4xf32, #tpu.memory_space<vmem>>, vector<2x4xf32>
    tpu.vector_store %arg14[%c0_76, %c0_77], %443 {strides = array<i32>} : memref<2x4xf32, #tpu.memory_space<vmem>>, vector<2x4xf32>,
    return
  }
  func.func @transform_0(%arg0: i32) -> (i32, i32) {
    %c0_i32 = arith.constant 0 : i32
    %c0_i32_0 = arith.constant 0 : i32
    return %c0_i32, %arg0 : i32, i32
  }
  func.func @transform_1(%arg0: i32) -> (i32, i32) {
    %c0_i32 = arith.constant 0 : i32
    %c0_i32_0 = arith.constant 0 : i32
    %c0_i32_1 = arith.constant 0 : i32
    return %c0_i32, %c0_i32_0 : i32, i32
  }
  func.func @transform_2(%arg0: i32) -> (i32, i32, i32) {
    %c0_i32 = arith.constant 0 : i32
    %c0_i32_0 = arith.constant 0 : i32
    %c0_i32_1 = arith.constant 0 : i32
    %c0_i32_2 = arith.constant 0 : i32
    return %c0_i32, %c0_i32_0, %c0_i32_1 : i32, i32, i32
  }
  func.func @transform_3(%arg0: i32) -> (i32, i32) {
    %c0_i32 = arith.constant 0 : i32
    %c0_i32_0 = arith.constant 0 : i32
    %c0_i32_1 = arith.constant 0 : i32
    return %c0_i32, %c0_i32_0 : i32, i32
  }
  func.func @transform_4(%arg0: i32) -> (i32, i32, i32) {
    %c0_i32 = arith.constant 0 : i32
    %c0_i32_0 = arith.constant 0 : i32
    %c0_i32_1 = arith.constant 0 : i32
    %c0_i32_2 = arith.constant 0 : i32
    return %c0_i32, %c0_i32_0, %c0_i32_1 : i32, i32, i32
  }
  func.func @transform_5(%arg0: i32) -> (i32, i32) {
    %c0_i32 = arith.constant 0 : i32
    %c0_i32_0 = arith.constant 0 : i32
    %c0_i32_1 = arith.constant 0 : i32
    return %c0_i32, %c0_i32_0 : i32, i32
  }
  func.func @transform_6(%arg0: i32) -> (i32, i32) {
    %c0_i32 = arith.constant 0 : i32
    %c0_i32_0 = arith.constant 0 : i32
    %c0_i32_1 = arith.constant 0 : i32
    return %c0_i32, %c0_i32_0 : i32, i32
  }
  func.func @transform_7(%arg0: i32) -> (i32, i32) {
    %c0_i32 = arith.constant 0 : i32
    %c0_i32_0 = arith.constant 0 : i32
    %c0_i32_1 = arith.constant 0 : i32
    return %c0_i32, %c0_i32_0 : i32, i32
  }
  func.func @transform_8(%arg0: i32) -> (i32, i32) {
    %c0_i32 = arith.constant 0 : i32
    %c0_i32_0 = arith.constant 0 : i32
    %c0_i32_1 = arith.constant 0 : i32
    return %c0_i32, %c0_i32_0 : i32, i32
  }
  func.func @transform_9(%arg0: i32) -> (i32, i32) {
    %c0_i32 = arith.constant 0 : i32
    %c0_i32_0 = arith.constant 0 : i32
    %c0_i32_1 = arith.constant 0 : i32
    return %c0_i32, %c0_i32_0 : i32, i32
  }
  func.func @transform_10(%arg0: i32) -> (i32, i32) {
    %c0_i32 = arith.constant 0 : i32
    %c0_i32_0 = arith.constant 0 : i32
    %c0_i32_1 = arith.constant 0 : i32
    return %c0_i32, %c0_i32_0 : i32, i32
  }
  func.func @transform_11(%arg0: i32) -> (i32, i32) {
    %c0_i32 = arith.constant 0 : i32
    %c0_i32_0 = arith.constant 0 : i32
    %c0_i32_1 = arith.constant 0 : i32
    return %c0_i32, %c0_i32_0 : i32, i32
  }
  func.func @transform_12(%arg0: i32) -> (i32, i32) {
    %c0_i32 = arith.constant 0 : i32
    %c0_i32_0 = arith.constant 0 : i32
    %c0_i32_1 = arith.constant 0 : i32
    return %c0_i32, %c0_i32_0 : i32, i32
  }
  func.func @transform_13(%arg0: i32) -> (i32, i32) {
    %c0_i32 = arith.constant 0 : i32
    %c0_i32_0 = arith.constant 0 : i32
    return %arg0, %c0_i32 : i32, i32
  }
}

</mosaic_0001>

<llo_original>
// kernel: tpu_custom_call.1
$region0: #{tpu_custom_call.1}
  #allocation0 [shape = 'u32[]', space=smem, size = 0x4, offset = 0x4, fixed_abs, tag = 'smem constant byte address 0x4 - core index']
  #allocation1 [shape = 'u32[72,128]{1,0:T(1,128)}', space=vmem, size = 0x9000, scoped, tag = 'internal scratch']
  %s0 = inlined_call_operand.vmem [shape: f32[32,2], index: 0, kind: input, shape index: {}]
  %s1 = inlined_call_operand.vmem [shape: f32[3,16], index: 1, kind: input, shape index: {}]
  %s2 = inlined_call_operand.vmem [shape: f32[1,1,16], index: 2, kind: input, shape index: {}]
  %s3 = inlined_call_operand.vmem [shape: f32[48,32], index: 3, kind: input, shape index: {}]
  %s4 = inlined_call_operand.vmem [shape: f32[1,1,32], index: 4, kind: input, shape index: {}]
  %s5 = inlined_call_operand.vmem [shape: f32[32,128], index: 5, kind: input, shape index: {}]
  %s6 = inlined_call_operand.vmem [shape: f32[32,128], index: 6, kind: input, shape index: {}]
  %s7 = inlined_call_operand.vmem [shape: f32[1,128], index: 7, kind: input, shape index: {}]
  %s8 = inlined_call_operand.vmem [shape: f32[32,128], index: 8, kind: input, shape index: {}]
  %s9 = inlined_call_operand.hbm [shape: f32[32,128], index: 9, kind: input, shape index: {}]
  %s10 = inlined_call_operand.vmem [shape: f32[1,128], index: 10, kind: input, shape index: {}]
  %s11 = inlined_call_operand.vmem [shape: f32[32,4], index: 11, kind: input, shape index: {}]
  %s12 = inlined_call_operand.vmem [shape: f32[1,4], index: 12, kind: input, shape index: {}]
  %s13 = inlined_call_operand.hbm [shape: f32[2,4], index: 13, kind: output, shape index: {}]
  %s14 = sld [smem:[#allocation0]]
  $region66: #{tpu_custom_call.1} parent=0
    _
  %s16 = ssub.s32 1, %s14
  %s17 = scalar_select 0, %s16, %s14
  $region1: #{tpu_custom_call.1} parent=0
    #allocation2 [shape = 'u8[16384]{0}', space=vmem, size = 0x4000, scoped, tag = 'input window, operand 9, single buffered']
    #allocation3 [shape = 's32[1]{0}', space=sflag, size = 0x4, scoped, tag = 'scoped memory for tpu_custom_call.1']
    #allocation4 [shape = 's32[1]{0}', space=sflag, size = 0x4, scoped, tag = 'scoped memory for tpu_custom_call.1']
    #allocation5 [shape = 'u8[1024]{0}', space=vmem, size = 0x400, scoped, tag = 'output window, operand 0, single buffered']
    %18 = vsyncpa [#allocation3], 0
    %19 = vsyncpa [#allocation4], 0
    // Predicated region
    $region2: #{tpu_custom_call.1} parent=1 // pred_check
      _
    $region3: #{tpu_custom_call.1} parent=1 // pred_check_branch
      %21 = sbr.rel (0) target = $region5
    $region4: #{tpu_custom_call.1} parent=1 // pred_region
      _
    $region5: #{tpu_custom_call.1} parent=1 // pred_fallthru
      _
    // Predicated region
    $region6: #{tpu_custom_call.1} parent=1 // pred_check
      _
    $region7: #{tpu_custom_call.1} parent=1 // pred_check_branch
      %23 = sbr.rel (0) target = $region9
    $region8: #{tpu_custom_call.1} parent=1 // pred_region
      _
    $region9: #{tpu_custom_call.1} parent=1 // pred_fallthru
      _
    // Predicated region
    $region10: #{tpu_custom_call.1} parent=1 // pred_check
      _
    $region11: #{tpu_custom_call.1} parent=1 // pred_check_branch
      %25 = sbr.rel (0) target = $region13
    $region12: #{tpu_custom_call.1} parent=1 // pred_region
      _
    $region13: #{tpu_custom_call.1} parent=1 // pred_fallthru
      _
    // Predicated region
    $region14: #{tpu_custom_call.1} parent=1 // pred_check
      _
    $region15: #{tpu_custom_call.1} parent=1 // pred_check_branch
      %27 = sbr.rel (0) target = $region17
    $region16: #{tpu_custom_call.1} parent=1 // pred_region
      _
    $region17: #{tpu_custom_call.1} parent=1 // pred_fallthru
      _
    // Predicated region
    $region18: #{tpu_custom_call.1} parent=1 // pred_check
      _
    $region19: #{tpu_custom_call.1} parent=1 // pred_check_branch
      %29 = sbr.rel (0) target = $region21
    $region20: #{tpu_custom_call.1} parent=1 // pred_region
      _
    $region21: #{tpu_custom_call.1} parent=1 // pred_fallthru
      _
    // Predicated region
    $region22: #{tpu_custom_call.1} parent=1 // pred_check
      _
    $region23: #{tpu_custom_call.1} parent=1 // pred_check_branch
      %31 = sbr.rel (0) target = $region25
    $region24: #{tpu_custom_call.1} parent=1 // pred_region
      _
    $region25: #{tpu_custom_call.1} parent=1 // pred_fallthru
      _
    // Predicated region
    $region26: #{tpu_custom_call.1} parent=1 // pred_check
      _
    $region27: #{tpu_custom_call.1} parent=1 // pred_check_branch
      %33 = sbr.rel (0) target = $region29
    $region28: #{tpu_custom_call.1} parent=1 // pred_region
      _
    $region29: #{tpu_custom_call.1} parent=1 // pred_fallthru
      _
    // Predicated region
    $region30: #{tpu_custom_call.1} parent=1 // pred_check
      _
    $region31: #{tpu_custom_call.1} parent=1 // pred_check_branch
      %35 = sbr.rel (0) target = $region33
    $region32: #{tpu_custom_call.1} parent=1 // pred_region
      _
    $region33: #{tpu_custom_call.1} parent=1 // pred_fallthru
      _
    // Predicated region
    $region34: #{tpu_custom_call.1} parent=1 // pred_check
      _
    $region35: #{tpu_custom_call.1} parent=1 // pred_check_branch
      %37 = sbr.rel (0) target = $region37
    $region36: #{tpu_custom_call.1} parent=1 // pred_region
      _
    $region37: #{tpu_custom_call.1} parent=1 // pred_fallthru
      _
    // Predicated region
    $region38: #{tpu_custom_call.1} parent=1 // pred_check
      _
    $region39: #{tpu_custom_call.1} parent=1 // pred_check_branch
      %39 = sbr.rel (0) target = $region41
    $region40: #{tpu_custom_call.1} parent=1 // pred_region
      %41 = vsyncadd [#allocation3], 0
      %s42 = sshll.u32 %s9, 4
      %s43 = int_to_ptr.hbm [resolvable:$true] %s42
      %s44 = sshll.u32 [#allocation2], 4
      %s45 = int_to_ptr.vmem [resolvable:$true] %s44
      %50 = dma.hbm_to_vmem [thread:$0]  %s43, 512, %s45, [#allocation3], 128, 128, 8
    $region41: #{tpu_custom_call.1} parent=1 // pred_fallthru
      _
    // Predicated region
    $region42: #{tpu_custom_call.1} parent=1 // pred_check
      _
    $region43: #{tpu_custom_call.1} parent=1 // pred_check_branch
      %52 = sbr.rel (0) target = $region45
    $region44: #{tpu_custom_call.1} parent=1 // pred_region
      _
    $region45: #{tpu_custom_call.1} parent=1 // pred_fallthru
      _
    // Predicated region
    $region46: #{tpu_custom_call.1} parent=1 // pred_check
      _
    $region47: #{tpu_custom_call.1} parent=1 // pred_check_branch
      %54 = sbr.rel (0) target = $region49
    $region48: #{tpu_custom_call.1} parent=1 // pred_region
      _
    $region49: #{tpu_custom_call.1} parent=1 // pred_fallthru
      _
    // Predicated region
    $region50: #{tpu_custom_call.1} parent=1 // pred_check
      _
    $region51: #{tpu_custom_call.1} parent=1 // pred_check_branch
      %56 = sbr.rel (0) target = $region53
    $region52: #{tpu_custom_call.1} parent=1 // pred_region
      _
    $region53: #{tpu_custom_call.1} parent=1 // pred_fallthru
      _
    // Predicated region
    $region54: #{tpu_custom_call.1} parent=1 // pred_check
      _
    $region55: #{tpu_custom_call.1} parent=1 // pred_check_branch
      %58 = sbr.rel (0) target = $region57
    $region56: #{tpu_custom_call.1} parent=1 // pred_region
      %60 = dma.done [#allocation3], 512
    $region57: #{tpu_custom_call.1} parent=1 // pred_fallthru
      _
    %v61 = vld [vmem:[%s0] sm:$0xff]
    %v62 = vld [vmem:[%s0 + $0x8] sm:$0xff]
    %v63 = vld [vmem:[%s0 + $0x10] sm:$0xff]
    %v64 = vld [vmem:[%s0 + $0x18] sm:$0xff]
    %v65 = vld [vmem:[%s1] sm:$0x7]
    %vm70 = vcmask 1040384
    %v71 = vrot.slane %v61, 7
    %v72 = vrot.slane %v62, 7
    %v73 = vsel %vm70, %v71, %v72
    %v74 = vrot.slane %v63, 7
    %v75 = vsel %vm70, %v72, %v74
    %v76 = vrot.slane %v64, 7
    %v77 = vsel %vm70, %v74, %v76
    %v82 = vsel %vm70, 0.0, %v71
    %vm83 = vcmask 1046528
    %v84 = vrot.slane %v61, 1
    %v85 = vrot.slane %v62, 1
    %v86 = vsel %vm83, %v84, %v85
    %v87 = vrot.slane %v63, 1
    %v88 = vsel %vm83, %v85, %v87
    %v89 = vrot.slane %v64, 1
    %v90 = vsel %vm83, %v87, %v89
    %v95 = vsel %vm83, %v89, 0.0
    %v96 = vperm.slane %v82, 0
    %v97 = vlaneseq
    %v98 = vshrl.u32 %v97, 7
    %100 = vset.pattern.permute.xlu0 %v98
    %101 = vperm.xlu0 %100, %v96
    %v102 = vpop.permute.xlu0 %101
    %v103 = vperm.slane %v82, 1
    %v104 = vlaneseq
    %v105 = vshrl.u32 %v104, 7
    %107 = vset.pattern.permute.xlu0 %v105
    %108 = vperm.xlu0 %107, %v103
    %v109 = vpop.permute.xlu0 %108
    %v110 = vperm.slane %v82, 2
    %v111 = vlaneseq
    %v112 = vshrl.u32 %v111, 7
    %114 = vset.pattern.permute.xlu0 %v112
    %115 = vperm.xlu0 %114, %v110
    %v116 = vpop.permute.xlu0 %115
    %v117 = vperm.slane %v82, 3
    %v118 = vlaneseq
    %v119 = vshrl.u32 %v118, 7
    %121 = vset.pattern.permute.xlu0 %v119
    %122 = vperm.xlu0 %121, %v117
    %v123 = vpop.permute.xlu0 %122
    %v124 = vperm.slane %v82, 4
    %v125 = vlaneseq
    %v126 = vshrl.u32 %v125, 7
    %128 = vset.pattern.permute.xlu0 %v126
    %129 = vperm.xlu0 %128, %v124
    %v130 = vpop.permute.xlu0 %129
    %v131 = vperm.slane %v82, 5
    %v132 = vlaneseq
    %v133 = vshrl.u32 %v132, 7
    %135 = vset.pattern.permute.xlu0 %v133
    %136 = vperm.xlu0 %135, %v131
    %v137 = vpop.permute.xlu0 %136
    %v138 = vperm.slane %v82, 6
    %v139 = vlaneseq
    %v140 = vshrl.u32 %v139, 7
    %142 = vset.pattern.permute.xlu0 %v140
    %143 = vperm.xlu0 %142, %v138
    %v144 = vpop.permute.xlu0 %143
    %v145 = vperm.slane %v82, 7
    %v146 = vlaneseq
    %v147 = vshrl.u32 %v146, 7
    %149 = vset.pattern.permute.xlu0 %v147
    %150 = vperm.xlu0 %149, %v145
    %v151 = vpop.permute.xlu0 %150
    %v152 = vperm.slane %v73, 0
    %v153 = vlaneseq
    %v154 = vshrl.u32 %v153, 7
    %156 = vset.pattern.permute.xlu0 %v154
    %157 = vperm.xlu0 %156, %v152
    %v158 = vpop.permute.xlu0 %157
    %v159 = vperm.slane %v73, 1
    %v160 = vlaneseq
    %v161 = vshrl.u32 %v160, 7
    %163 = vset.pattern.permute.xlu0 %v161
    %164 = vperm.xlu0 %163, %v159
    %v165 = vpop.permute.xlu0 %164
    %v166 = vperm.slane %v73, 2
    %v167 = vlaneseq
    %v168 = vshrl.u32 %v167, 7
    %170 = vset.pattern.permute.xlu0 %v168
    %171 = vperm.xlu0 %170, %v166
    %v172 = vpop.permute.xlu0 %171
    %v173 = vperm.slane %v73, 3
    %v174 = vlaneseq
    %v175 = vshrl.u32 %v174, 7
    %177 = vset.pattern.permute.xlu0 %v175
    %178 = vperm.xlu0 %177, %v173
    %v179 = vpop.permute.xlu0 %178
    %v180 = vperm.slane %v73, 4
    %v181 = vlaneseq
    %v182 = vshrl.u32 %v181, 7
    %184 = vset.pattern.permute.xlu0 %v182
    %185 = vperm.xlu0 %184, %v180
    %v186 = vpop.permute.xlu0 %185
    %v187 = vperm.slane %v73, 5
    %v188 = vlaneseq
    %v189 = vshrl.u32 %v188, 7
    %191 = vset.pattern.permute.xlu0 %v189
    %192 = vperm.xlu0 %191, %v187
    %v193 = vpop.permute.xlu0 %192
    %v194 = vperm.slane %v73, 6
    %v195 = vlaneseq
    %v196 = vshrl.u32 %v195, 7
    %198 = vset.pattern.permute.xlu0 %v196
    %199 = vperm.xlu0 %198, %v194
    %v200 = vpop.permute.xlu0 %199
    %v201 = vperm.slane %v73, 7
    %v202 = vlaneseq
    %v203 = vshrl.u32 %v202, 7
    %205 = vset.pattern.permute.xlu0 %v203
    %206 = vperm.xlu0 %205, %v201
    %v207 = vpop.permute.xlu0 %206
    %v208 = vperm.slane %v75, 0
    %v209 = vlaneseq
    %v210 = vshrl.u32 %v209, 7
    %212 = vset.pattern.permute.xlu0 %v210
    %213 = vperm.xlu0 %212, %v208
    %v214 = vpop.permute.xlu0 %213
    %v215 = vperm.slane %v75, 1
    %v216 = vlaneseq
    %v217 = vshrl.u32 %v216, 7
    %219 = vset.pattern.permute.xlu0 %v217
    %220 = vperm.xlu0 %219, %v215
    %v221 = vpop.permute.xlu0 %220
    %v222 = vperm.slane %v75, 2
    %v223 = vlaneseq
    %v224 = vshrl.u32 %v223, 7
    %226 = vset.pattern.permute.xlu0 %v224
    %227 = vperm.xlu0 %226, %v222
    %v228 = vpop.permute.xlu0 %227
    %v229 = vperm.slane %v75, 3
    %v230 = vlaneseq
    %v231 = vshrl.u32 %v230, 7
    %233 = vset.pattern.permute.xlu0 %v231
    %234 = vperm.xlu0 %233, %v229
    %v235 = vpop.permute.xlu0 %234
    %v236 = vperm.slane %v75, 4
    %v237 = vlaneseq
    %v238 = vshrl.u32 %v237, 7
    %240 = vset.pattern.permute.xlu0 %v238
    %241 = vperm.xlu0 %240, %v236
    %v242 = vpop.permute.xlu0 %241
    %v243 = vperm.slane %v75, 5
    %v244 = vlaneseq
    %v245 = vshrl.u32 %v244, 7
    %247 = vset.pattern.permute.xlu0 %v245
    %248 = vperm.xlu0 %247, %v243
    %v249 = vpop.permute.xlu0 %248
    %v250 = vperm.slane %v75, 6
    %v251 = vlaneseq
    %v252 = vshrl.u32 %v251, 7
    %254 = vset.pattern.permute.xlu0 %v252
    %255 = vperm.xlu0 %254, %v250
    %v256 = vpop.permute.xlu0 %255
    %v257 = vperm.slane %v75, 7
    %v258 = vlaneseq
    %v259 = vshrl.u32 %v258, 7
    %261 = vset.pattern.permute.xlu0 %v259
    %262 = vperm.xlu0 %261, %v257
    %v263 = vpop.permute.xlu0 %262
    %v264 = vperm.slane %v77, 0
    %v265 = vlaneseq
    %v266 = vshrl.u32 %v265, 7
    %268 = vset.pattern.permute.xlu0 %v266
    %269 = vperm.xlu0 %268, %v264
    %v270 = vpop.permute.xlu0 %269
    %v271 = vperm.slane %v77, 1
    %v272 = vlaneseq
    %v273 = vshrl.u32 %v272, 7
    %275 = vset.pattern.permute.xlu0 %v273
    %276 = vperm.xlu0 %275, %v271
    %v277 = vpop.permute.xlu0 %276
    %v278 = vperm.slane %v77, 2
    %v279 = vlaneseq
    %v280 = vshrl.u32 %v279, 7
    %282 = vset.pattern.permute.xlu0 %v280
    %283 = vperm.xlu0 %282, %v278
    %v284 = vpop.permute.xlu0 %283
    %v285 = vperm.slane %v77, 3
    %v286 = vlaneseq
    %v287 = vshrl.u32 %v286, 7
    %289 = vset.pattern.permute.xlu0 %v287
    %290 = vperm.xlu0 %289, %v285
    %v291 = vpop.permute.xlu0 %290
    %v292 = vperm.slane %v77, 4
    %v293 = vlaneseq
    %v294 = vshrl.u32 %v293, 7
    %296 = vset.pattern.permute.xlu0 %v294
    %297 = vperm.xlu0 %296, %v292
    %v298 = vpop.permute.xlu0 %297
    %v299 = vperm.slane %v77, 5
    %v300 = vlaneseq
    %v301 = vshrl.u32 %v300, 7
    %303 = vset.pattern.permute.xlu0 %v301
    %304 = vperm.xlu0 %303, %v299
    %v305 = vpop.permute.xlu0 %304
    %v306 = vperm.slane %v77, 6
    %v307 = vlaneseq
    %v308 = vshrl.u32 %v307, 7
    %310 = vset.pattern.permute.xlu0 %v308
    %311 = vperm.xlu0 %310, %v306
    %v312 = vpop.permute.xlu0 %311
    %v313 = vperm.slane %v77, 7
    %v314 = vlaneseq
    %v315 = vshrl.u32 %v314, 7
    %317 = vset.pattern.permute.xlu0 %v315
    %318 = vperm.xlu0 %317, %v313
    %v319 = vpop.permute.xlu0 %318
    %v320 = vperm.slane %v65, 0
    %v321 = vmul.f32 %v102, %v320
    %v322 = vmul.f32 %v109, %v320
    %v323 = vmul.f32 %v116, %v320
    %v324 = vmul.f32 %v123, %v320
    %v325 = vmul.f32 %v130, %v320
    %v326 = vmul.f32 %v137, %v320
    %v327 = vmul.f32 %v144, %v320
    %v328 = vmul.f32 %v151, %v320
    %v329 = vmul.f32 %v158, %v320
    %v330 = vmul.f32 %v165, %v320
    %v331 = vmul.f32 %v172, %v320
    %v332 = vmul.f32 %v179, %v320
    %v333 = vmul.f32 %v186, %v320
    %v334 = vmul.f32 %v193, %v320
    %v335 = vmul.f32 %v200, %v320
    %v336 = vmul.f32 %v207, %v320
    %v337 = vmul.f32 %v214, %v320
    %v338 = vmul.f32 %v221, %v320
    %v339 = vmul.f32 %v228, %v320
    %v340 = vmul.f32 %v235, %v320
    %v341 = vmul.f32 %v242, %v320
    %v342 = vmul.f32 %v249, %v320
    %v343 = vmul.f32 %v256, %v320
    %v344 = vmul.f32 %v263, %v320
    %v345 = vmul.f32 %v270, %v320
    %v346 = vmul.f32 %v277, %v320
    %v347 = vmul.f32 %v284, %v320
    %v348 = vmul.f32 %v291, %v320
    %v349 = vmul.f32 %v298, %v320
    %v350 = vmul.f32 %v305, %v320
    %v351 = vmul.f32 %v312, %v320
    %v352 = vmul.f32 %v319, %v320
    %v353 = vperm.slane %v61, 0
    %v354 = vlaneseq
    %v355 = vshrl.u32 %v354, 7
    %357 = vset.pattern.permute.xlu0 %v355
    %358 = vperm.xlu0 %357, %v353
    %v359 = vpop.permute.xlu0 %358
    %v360 = vperm.slane %v61, 1
    %v361 = vlaneseq
    %v362 = vshrl.u32 %v361, 7
    %364 = vset.pattern.permute.xlu0 %v362
    %365 = vperm.xlu0 %364, %v360
    %v366 = vpop.permute.xlu0 %365
    %v367 = vperm.slane %v61, 2
    %v368 = vlaneseq
    %v369 = vshrl.u32 %v368, 7
    %371 = vset.pattern.permute.xlu0 %v369
    %372 = vperm.xlu0 %371, %v367
    %v373 = vpop.permute.xlu0 %372
    %v374 = vperm.slane %v61, 3
    %v375 = vlaneseq
    %v376 = vshrl.u32 %v375, 7
    %378 = vset.pattern.permute.xlu0 %v376
    %379 = vperm.xlu0 %378, %v374
    %v380 = vpop.permute.xlu0 %379
    %v381 = vperm.slane %v61, 4
    %v382 = vlaneseq
    %v383 = vshrl.u32 %v382, 7
    %385 = vset.pattern.permute.xlu0 %v383
    %386 = vperm.xlu0 %385, %v381
    %v387 = vpop.permute.xlu0 %386
    %v388 = vperm.slane %v61, 5
    %v389 = vlaneseq
    %v390 = vshrl.u32 %v389, 7
    %392 = vset.pattern.permute.xlu0 %v390
    %393 = vperm.xlu0 %392, %v388
    %v394 = vpop.permute.xlu0 %393
    %v395 = vperm.slane %v61, 6
    %v396 = vlaneseq
    %v397 = vshrl.u32 %v396, 7
    %399 = vset.pattern.permute.xlu0 %v397
    %400 = vperm.xlu0 %399, %v395
    %v401 = vpop.permute.xlu0 %400
    %v402 = vperm.slane %v61, 7
    %v403 = vlaneseq
    %v404 = vshrl.u32 %v403, 7
    %406 = vset.pattern.permute.xlu0 %v404
    %407 = vperm.xlu0 %406, %v402
    %v408 = vpop.permute.xlu0 %407
    %v409 = vperm.slane %v62, 0
    %v410 = vlaneseq
    %v411 = vshrl.u32 %v410, 7
    %413 = vset.pattern.permute.xlu0 %v411
    %414 = vperm.xlu0 %413, %v409
    %v415 = vpop.permute.xlu0 %414
    %v416 = vperm.slane %v62, 1
    %v417 = vlaneseq
    %v418 = vshrl.u32 %v417, 7
    %420 = vset.pattern.permute.xlu0 %v418
    %421 = vperm.xlu0 %420, %v416
    %v422 = vpop.permute.xlu0 %421
    %v423 = vperm.slane %v62, 2
    %v424 = vlaneseq
    %v425 = vshrl.u32 %v424, 7
    %427 = vset.pattern.permute.xlu0 %v425
    %428 = vperm.xlu0 %427, %v423
    %v429 = vpop.permute.xlu0 %428
    %v430 = vperm.slane %v62, 3
    %v431 = vlaneseq
    %v432 = vshrl.u32 %v431, 7
    %434 = vset.pattern.permute.xlu0 %v432
    %435 = vperm.xlu0 %434, %v430
    %v436 = vpop.permute.xlu0 %435
    %v437 = vperm.slane %v62, 4
    %v438 = vlaneseq
    %v439 = vshrl.u32 %v438, 7
    %441 = vset.pattern.permute.xlu0 %v439
    %442 = vperm.xlu0 %441, %v437
    %v443 = vpop.permute.xlu0 %442
    %v444 = vperm.slane %v62, 5
    %v445 = vlaneseq
    %v446 = vshrl.u32 %v445, 7
    %448 = vset.pattern.permute.xlu0 %v446
    %449 = vperm.xlu0 %448, %v444
    %v450 = vpop.permute.xlu0 %449
    %v451 = vperm.slane %v62, 6
    %v452 = vlaneseq
    %v453 = vshrl.u32 %v452, 7
    %455 = vset.pattern.permute.xlu0 %v453
    %456 = vperm.xlu0 %455, %v451
    %v457 = vpop.permute.xlu0 %456
    %v458 = vperm.slane %v62, 7
    %v459 = vlaneseq
    %v460 = vshrl.u32 %v459, 7
    %462 = vset.pattern.permute.xlu0 %v460
    %463 = vperm.xlu0 %462, %v458
    %v464 = vpop.permute.xlu0 %463
    %v465 = vperm.slane %v63, 0
    %v466 = vlaneseq
    %v467 = vshrl.u32 %v466, 7
    %469 = vset.pattern.permute.xlu0 %v467
    %470 = vperm.xlu0 %469, %v465
    %v471 = vpop.permute.xlu0 %470
    %v472 = vperm.slane %v63, 1
    %v473 = vlaneseq
    %v474 = vshrl.u32 %v473, 7
    %476 = vset.pattern.permute.xlu0 %v474
    %477 = vperm.xlu0 %476, %v472
    %v478 = vpop.permute.xlu0 %477
    %v479 = vperm.slane %v63, 2
    %v480 = vlaneseq
    %v481 = vshrl.u32 %v480, 7
    %483 = vset.pattern.permute.xlu0 %v481
    %484 = vperm.xlu0 %483, %v479
    %v485 = vpop.permute.xlu0 %484
    %v486 = vperm.slane %v63, 3
    %v487 = vlaneseq
    %v488 = vshrl.u32 %v487, 7
    %490 = vset.pattern.permute.xlu0 %v488
    %491 = vperm.xlu0 %490, %v486
    %v492 = vpop.permute.xlu0 %491
    %v493 = vperm.slane %v63, 4
    %v494 = vlaneseq
    %v495 = vshrl.u32 %v494, 7
    %497 = vset.pattern.permute.xlu0 %v495
    %498 = vperm.xlu0 %497, %v493
    %v499 = vpop.permute.xlu0 %498
    %v500 = vperm.slane %v63, 5
    %v501 = vlaneseq
    %v502 = vshrl.u32 %v501, 7
    %504 = vset.pattern.permute.xlu0 %v502
    %505 = vperm.xlu0 %504, %v500
    %v506 = vpop.permute.xlu0 %505
    %v507 = vperm.slane %v63, 6
    %v508 = vlaneseq
    %v509 = vshrl.u32 %v508, 7
    %511 = vset.pattern.permute.xlu0 %v509
    %512 = vperm.xlu0 %511, %v507
    %v513 = vpop.permute.xlu0 %512
    %v514 = vperm.slane %v63, 7
    %v515 = vlaneseq
    %v516 = vshrl.u32 %v515, 7
    %518 = vset.pattern.permute.xlu0 %v516
    %519 = vperm.xlu0 %518, %v514
    %v520 = vpop.permute.xlu0 %519
    %v521 = vperm.slane %v64, 0
    %v522 = vlaneseq
    %v523 = vshrl.u32 %v522, 7
    %525 = vset.pattern.permute.xlu0 %v523
    %526 = vperm.xlu0 %525, %v521
    %v527 = vpop.permute.xlu0 %526
    %v528 = vperm.slane %v64, 1
    %v529 = vlaneseq
    %v530 = vshrl.u32 %v529, 7
    %532 = vset.pattern.permute.xlu0 %v530
    %533 = vperm.xlu0 %532, %v528
    %v534 = vpop.permute.xlu0 %533
    %v535 = vperm.slane %v64, 2
    %v536 = vlaneseq
    %v537 = vshrl.u32 %v536, 7
    %539 = vset.pattern.permute.xlu0 %v537
    %540 = vperm.xlu0 %539, %v535
    %v541 = vpop.permute.xlu0 %540
    %v542 = vperm.slane %v64, 3
    %v543 = vlaneseq
    %v544 = vshrl.u32 %v543, 7
    %546 = vset.pattern.permute.xlu0 %v544
    %547 = vperm.xlu0 %546, %v542
    %v548 = vpop.permute.xlu0 %547
    %v549 = vperm.slane %v64, 4
    %v550 = vlaneseq
    %v551 = vshrl.u32 %v550, 7
    %553 = vset.pattern.permute.xlu0 %v551
    %554 = vperm.xlu0 %553, %v549
    %v555 = vpop.permute.xlu0 %554
    %v556 = vperm.slane %v64, 5
    %v557 = vlaneseq
    %v558 = vshrl.u32 %v557, 7
    %560 = vset.pattern.permute.xlu0 %v558
    %561 = vperm.xlu0 %560, %v556
    %v562 = vpop.permute.xlu0 %561
    %v563 = vperm.slane %v64, 6
    %v564 = vlaneseq
    %v565 = vshrl.u32 %v564, 7
    %567 = vset.pattern.permute.xlu0 %v565
    %568 = vperm.xlu0 %567, %v563
    %v569 = vpop.permute.xlu0 %568
    %v570 = vperm.slane %v64, 7
    %v571 = vlaneseq
    %v572 = vshrl.u32 %v571, 7
    %574 = vset.pattern.permute.xlu0 %v572
    %575 = vperm.xlu0 %574, %v570
    %v576 = vpop.permute.xlu0 %575
    %v577 = vperm.slane %v65, 1
    %v578 = vmul.f32 %v359, %v577
    %v579 = vmul.f32 %v366, %v577
    %v580 = vmul.f32 %v373, %v577
    %v581 = vmul.f32 %v380, %v577
    %v582 = vmul.f32 %v387, %v577
    %v583 = vmul.f32 %v394, %v577
    %v584 = vmul.f32 %v401, %v577
    %v585 = vmul.f32 %v408, %v577
    %v586 = vmul.f32 %v415, %v577
    %v587 = vmul.f32 %v422, %v577
    %v588 = vmul.f32 %v429, %v577
    %v589 = vmul.f32 %v436, %v577
    %v590 = vmul.f32 %v443, %v577
    %v591 = vmul.f32 %v450, %v577
    %v592 = vmul.f32 %v457, %v577
    %v593 = vmul.f32 %v464, %v577
    %v594 = vmul.f32 %v471, %v577
    %v595 = vmul.f32 %v478, %v577
    %v596 = vmul.f32 %v485, %v577
    %v597 = vmul.f32 %v492, %v577
    %v598 = vmul.f32 %v499, %v577
    %v599 = vmul.f32 %v506, %v577
    %v600 = vmul.f32 %v513, %v577
    %v601 = vmul.f32 %v520, %v577
    %v602 = vmul.f32 %v527, %v577
    %v603 = vmul.f32 %v534, %v577
    %v604 = vmul.f32 %v541, %v577
    %v605 = vmul.f32 %v548, %v577
    %v606 = vmul.f32 %v555, %v577
    %v607 = vmul.f32 %v562, %v577
    %v608 = vmul.f32 %v569, %v577
    %v609 = vmul.f32 %v576, %v577
    %v610 = vadd.f32 %v321, %v578
    %v611 = vadd.f32 %v322, %v579
    %v612 = vadd.f32 %v323, %v580
    %v613 = vadd.f32 %v324, %v581
    %v614 = vadd.f32 %v325, %v582
    %v615 = vadd.f32 %v326, %v583
    %v616 = vadd.f32 %v327, %v584
    %v617 = vadd.f32 %v328, %v585
    %v618 = vadd.f32 %v329, %v586
    %v619 = vadd.f32 %v330, %v587
    %v620 = vadd.f32 %v331, %v588
    %v621 = vadd.f32 %v332, %v589
    %v622 = vadd.f32 %v333, %v590
    %v623 = vadd.f32 %v334, %v591
    %v624 = vadd.f32 %v335, %v592
    %v625 = vadd.f32 %v336, %v593
    %v626 = vadd.f32 %v337, %v594
    %v627 = vadd.f32 %v338, %v595
    %v628 = vadd.f32 %v339, %v596
    %v629 = vadd.f32 %v340, %v597
    %v630 = vadd.f32 %v341, %v598
    %v631 = vadd.f32 %v342, %v599
    %v632 = vadd.f32 %v343, %v600
    %v633 = vadd.f32 %v344, %v601
    %v634 = vadd.f32 %v345, %v602
    %v635 = vadd.f32 %v346, %v603
    %v636 = vadd.f32 %v347, %v604
    %v637 = vadd.f32 %v348, %v605
    %v638 = vadd.f32 %v349, %v606
    %v639 = vadd.f32 %v350, %v607
    %v640 = vadd.f32 %v351, %v608
    %v641 = vadd.f32 %v352, %v609
    %v642 = vperm.slane %v86, 0
    %v643 = vlaneseq
    %v644 = vshrl.u32 %v643, 7
    %646 = vset.pattern.permute.xlu0 %v644
    %647 = vperm.xlu0 %646, %v642
    %v648 = vpop.permute.xlu0 %647
    %v649 = vperm.slane %v86, 1
    %v650 = vlaneseq
    %v651 = vshrl.u32 %v650, 7
    %653 = vset.pattern.permute.xlu0 %v651
    %654 = vperm.xlu0 %653, %v649
    %v655 = vpop.permute.xlu0 %654
    %v656 = vperm.slane %v86, 2
    %v657 = vlaneseq
    %v658 = vshrl.u32 %v657, 7
    %660 = vset.pattern.permute.xlu0 %v658
    %661 = vperm.xlu0 %660, %v656
    %v662 = vpop.permute.xlu0 %661
    %v663 = vperm.slane %v86, 3
    %v664 = vlaneseq
    %v665 = vshrl.u32 %v664, 7
    %667 = vset.pattern.permute.xlu0 %v665
    %668 = vperm.xlu0 %667, %v663
    %v669 = vpop.permute.xlu0 %668
    %v670 = vperm.slane %v86, 4
    %v671 = vlaneseq
    %v672 = vshrl.u32 %v671, 7
    %674 = vset.pattern.permute.xlu0 %v672
    %675 = vperm.xlu0 %674, %v670
    %v676 = vpop.permute.xlu0 %675
    %v677 = vperm.slane %v86, 5
    %v678 = vlaneseq
    %v679 = vshrl.u32 %v678, 7
    %681 = vset.pattern.permute.xlu0 %v679
    %682 = vperm.xlu0 %681, %v677
    %v683 = vpop.permute.xlu0 %682
    %v684 = vperm.slane %v86, 6
    %v685 = vlaneseq
    %v686 = vshrl.u32 %v685, 7
    %688 = vset.pattern.permute.xlu0 %v686
    %689 = vperm.xlu0 %688, %v684
    %v690 = vpop.permute.xlu0 %689
    %v691 = vperm.slane %v86, 7
    %v692 = vlaneseq
    %v693 = vshrl.u32 %v692, 7
    %695 = vset.pattern.permute.xlu0 %v693
    %696 = vperm.xlu0 %695, %v691
    %v697 = vpop.permute.xlu0 %696
    %v698 = vperm.slane %v88, 0
    %v699 = vlaneseq
    %v700 = vshrl.u32 %v699, 7
    %702 = vset.pattern.permute.xlu0 %v700
    %703 = vperm.xlu0 %702, %v698
    %v704 = vpop.permute.xlu0 %703
    %v705 = vperm.slane %v88, 1
    %v706 = vlaneseq
    %v707 = vshrl.u32 %v706, 7
    %709 = vset.pattern.permute.xlu0 %v707
    %710 = vperm.xlu0 %709, %v705
    %v711 = vpop.permute.xlu0 %710
    %v712 = vperm.slane %v88, 2
    %v713 = vlaneseq
    %v714 = vshrl.u32 %v713, 7
    %716 = vset.pattern.permute.xlu0 %v714
    %717 = vperm.xlu0 %716, %v712
    %v718 = vpop.permute.xlu0 %717
    %v719 = vperm.slane %v88, 3
    %v720 = vlaneseq
    %v721 = vshrl.u32 %v720, 7
    %723 = vset.pattern.permute.xlu0 %v721
    %724 = vperm.xlu0 %723, %v719
    %v725 = vpop.permute.xlu0 %724
    %v726 = vperm.slane %v88, 4
    %v727 = vlaneseq
    %v728 = vshrl.u32 %v727, 7
    %730 = vset.pattern.permute.xlu0 %v728
    %731 = vperm.xlu0 %730, %v726
    %v732 = vpop.permute.xlu0 %731
    %v733 = vperm.slane %v88, 5
    %v734 = vlaneseq
    %v735 = vshrl.u32 %v734, 7
    %737 = vset.pattern.permute.xlu0 %v735
    %738 = vperm.xlu0 %737, %v733
    %v739 = vpop.permute.xlu0 %738
    %v740 = vperm.slane %v88, 6
    %v741 = vlaneseq
    %v742 = vshrl.u32 %v741, 7
    %744 = vset.pattern.permute.xlu0 %v742
    %745 = vperm.xlu0 %744, %v740
    %v746 = vpop.permute.xlu0 %745
    %v747 = vperm.slane %v88, 7
    %v748 = vlaneseq
    %v749 = vshrl.u32 %v748, 7
    %751 = vset.pattern.permute.xlu0 %v749
    %752 = vperm.xlu0 %751, %v747
    %v753 = vpop.permute.xlu0 %752
    %v754 = vperm.slane %v90, 0
    %v755 = vlaneseq
    %v756 = vshrl.u32 %v755, 7
    %758 = vset.pattern.permute.xlu0 %v756
    %759 = vperm.xlu0 %758, %v754
    %v760 = vpop.permute.xlu0 %759
    %v761 = vperm.slane %v90, 1
    %v762 = vlaneseq
    %v763 = vshrl.u32 %v762, 7
    %765 = vset.pattern.permute.xlu0 %v763
    %766 = vperm.xlu0 %765, %v761
    %v767 = vpop.permute.xlu0 %766
    %v768 = vperm.slane %v90, 2
    %v769 = vlaneseq
    %v770 = vshrl.u32 %v769, 7
    %772 = vset.pattern.permute.xlu0 %v770
    %773 = vperm.xlu0 %772, %v768
    %v774 = vpop.permute.xlu0 %773
    %v775 = vperm.slane %v90, 3
    %v776 = vlaneseq
    %v777 = vshrl.u32 %v776, 7
    %779 = vset.pattern.permute.xlu0 %v777
    %780 = vperm.xlu0 %779, %v775
    %v781 = vpop.permute.xlu0 %780
    %v782 = vperm.slane %v90, 4
    %v783 = vlaneseq
    %v784 = vshrl.u32 %v783, 7
    %786 = vset.pattern.permute.xlu0 %v784
    %787 = vperm.xlu0 %786, %v782
    %v788 = vpop.permute.xlu0 %787
    %v789 = vperm.slane %v90, 5
    %v790 = vlaneseq
    %v791 = vshrl.u32 %v790, 7
    %793 = vset.pattern.permute.xlu0 %v791
    %794 = vperm.xlu0 %793, %v789
    %v795 = vpop.permute.xlu0 %794
    %v796 = vperm.slane %v90, 6
    %v797 = vlaneseq
    %v798 = vshrl.u32 %v797, 7
    %800 = vset.pattern.permute.xlu0 %v798
    %801 = vperm.xlu0 %800, %v796
    %v802 = vpop.permute.xlu0 %801
    %v803 = vperm.slane %v90, 7
    %v804 = vlaneseq
    %v805 = vshrl.u32 %v804, 7
    %807 = vset.pattern.permute.xlu0 %v805
    %808 = vperm.xlu0 %807, %v803
    %v809 = vpop.permute.xlu0 %808
    %v810 = vperm.slane %v95, 0
    %v811 = vlaneseq
    %v812 = vshrl.u32 %v811, 7
    %814 = vset.pattern.permute.xlu0 %v812
    %815 = vperm.xlu0 %814, %v810
    %v816 = vpop.permute.xlu0 %815
    %v817 = vperm.slane %v95, 1
    %v818 = vlaneseq
    %v819 = vshrl.u32 %v818, 7
    %821 = vset.pattern.permute.xlu0 %v819
    %822 = vperm.xlu0 %821, %v817
    %v823 = vpop.permute.xlu0 %822
    %v824 = vperm.slane %v95, 2
    %v825 = vlaneseq
    %v826 = vshrl.u32 %v825, 7
    %828 = vset.pattern.permute.xlu0 %v826
    %829 = vperm.xlu0 %828, %v824
    %v830 = vpop.permute.xlu0 %829
    %v831 = vperm.slane %v95, 3
    %v832 = vlaneseq
    %v833 = vshrl.u32 %v832, 7
    %835 = vset.pattern.permute.xlu0 %v833
    %836 = vperm.xlu0 %835, %v831
    %v837 = vpop.permute.xlu0 %836
    %v838 = vperm.slane %v95, 4
    %v839 = vlaneseq
    %v840 = vshrl.u32 %v839, 7
    %842 = vset.pattern.permute.xlu0 %v840
    %843 = vperm.xlu0 %842, %v838
    %v844 = vpop.permute.xlu0 %843
    %v845 = vperm.slane %v95, 5
    %v846 = vlaneseq
    %v847 = vshrl.u32 %v846, 7
    %849 = vset.pattern.permute.xlu0 %v847
    %850 = vperm.xlu0 %849, %v845
    %v851 = vpop.permute.xlu0 %850
    %v852 = vperm.slane %v95, 6
    %v853 = vlaneseq
    %v854 = vshrl.u32 %v853, 7
    %856 = vset.pattern.permute.xlu0 %v854
    %857 = vperm.xlu0 %856, %v852
    %v858 = vpop.permute.xlu0 %857
    %v859 = vperm.slane %v95, 7
    %v860 = vlaneseq
    %v861 = vshrl.u32 %v860, 7
    %863 = vset.pattern.permute.xlu0 %v861
    %864 = vperm.xlu0 %863, %v859
    %v865 = vpop.permute.xlu0 %864
    %v866 = vperm.slane %v65, 2
    %v867 = vmul.f32 %v648, %v866
    %v868 = vmul.f32 %v655, %v866
    %v869 = vmul.f32 %v662, %v866
    %v870 = vmul.f32 %v669, %v866
    %v871 = vmul.f32 %v676, %v866
    %v872 = vmul.f32 %v683, %v866
    %v873 = vmul.f32 %v690, %v866
    %v874 = vmul.f32 %v697, %v866
    %v875 = vmul.f32 %v704, %v866
    %v876 = vmul.f32 %v711, %v866
    %v877 = vmul.f32 %v718, %v866
    %v878 = vmul.f32 %v725, %v866
    %v879 = vmul.f32 %v732, %v866
    %v880 = vmul.f32 %v739, %v866
    %v881 = vmul.f32 %v746, %v866
    %v882 = vmul.f32 %v753, %v866
    %v883 = vmul.f32 %v760, %v866
    %v884 = vmul.f32 %v767, %v866
    %v885 = vmul.f32 %v774, %v866
    %v886 = vmul.f32 %v781, %v866
    %v887 = vmul.f32 %v788, %v866
    %v888 = vmul.f32 %v795, %v866
    %v889 = vmul.f32 %v802, %v866
    %v890 = vmul.f32 %v809, %v866
    %v891 = vmul.f32 %v816, %v866
    %v892 = vmul.f32 %v823, %v866
    %v893 = vmul.f32 %v830, %v866
    %v894 = vmul.f32 %v837, %v866
    %v895 = vmul.f32 %v844, %v866
    %v896 = vmul.f32 %v851, %v866
    %v897 = vmul.f32 %v858, %v866
    %v898 = vmul.f32 %v865, %v866
    %v899 = vadd.f32 %v610, %v867
    %v900 = vadd.f32 %v611, %v868
    %v901 = vadd.f32 %v612, %v869
    %v902 = vadd.f32 %v613, %v870
    %v903 = vadd.f32 %v614, %v871
    %v904 = vadd.f32 %v615, %v872
    %v905 = vadd.f32 %v616, %v873
    %v906 = vadd.f32 %v617, %v874
    %v907 = vadd.f32 %v618, %v875
    %v908 = vadd.f32 %v619, %v876
    %v909 = vadd.f32 %v620, %v877
    %v910 = vadd.f32 %v621, %v878
    %v911 = vadd.f32 %v622, %v879
    %v912 = vadd.f32 %v623, %v880
    %v913 = vadd.f32 %v624, %v881
    %v914 = vadd.f32 %v625, %v882
    %v915 = vadd.f32 %v626, %v883
    %v916 = vadd.f32 %v627, %v884
    %v917 = vadd.f32 %v628, %v885
    %v918 = vadd.f32 %v629, %v886
    %v919 = vadd.f32 %v630, %v887
    %v920 = vadd.f32 %v631, %v888
    %v921 = vadd.f32 %v632, %v889
    %v922 = vadd.f32 %v633, %v890
    %v923 = vadd.f32 %v634, %v891
    %v924 = vadd.f32 %v635, %v892
    %v925 = vadd.f32 %v636, %v893
    %v926 = vadd.f32 %v637, %v894
    %v927 = vadd.f32 %v638, %v895
    %v928 = vadd.f32 %v639, %v896
    %v929 = vadd.f32 %v640, %v897
    %v930 = vadd.f32 %v641, %v898
    %v931 = vld [vmem:[%s2] sm:$0x1]
    %v933 = vperm.slane %v931, 0
    %v935 = vadd.f32 %v899, %v933
    %v936 = vadd.f32 %v900, %v933
    %v937 = vadd.f32 %v901, %v933
    %v938 = vadd.f32 %v902, %v933
    %v939 = vadd.f32 %v903, %v933
    %v940 = vadd.f32 %v904, %v933
    %v941 = vadd.f32 %v905, %v933
    %v942 = vadd.f32 %v906, %v933
    %v943 = vadd.f32 %v907, %v933
    %v944 = vadd.f32 %v908, %v933
    %v945 = vadd.f32 %v909, %v933
    %v946 = vadd.f32 %v910, %v933
    %v947 = vadd.f32 %v911, %v933
    %v948 = vadd.f32 %v912, %v933
    %v949 = vadd.f32 %v913, %v933
    %v950 = vadd.f32 %v914, %v933
    %v951 = vadd.f32 %v915, %v933
    %v952 = vadd.f32 %v916, %v933
    %v953 = vadd.f32 %v917, %v933
    %v954 = vadd.f32 %v918, %v933
    %v955 = vadd.f32 %v919, %v933
    %v956 = vadd.f32 %v920, %v933
    %v957 = vadd.f32 %v921, %v933
    %v958 = vadd.f32 %v922, %v933
    %v959 = vadd.f32 %v923, %v933
    %v960 = vadd.f32 %v924, %v933
    %v961 = vadd.f32 %v925, %v933
    %v962 = vadd.f32 %v926, %v933
    %v963 = vadd.f32 %v927, %v933
    %v964 = vadd.f32 %v928, %v933
    %v965 = vadd.f32 %v929, %v933
    %v966 = vadd.f32 %v930, %v933
    %v967 = vmax.f32 %v935, 0.0
    %v968 = vmax.f32 %v936, 0.0
    %v969 = vmax.f32 %v937, 0.0
    %v970 = vmax.f32 %v938, 0.0
    %v971 = vmax.f32 %v939, 0.0
    %v972 = vmax.f32 %v940, 0.0
    %v973 = vmax.f32 %v941, 0.0
    %v974 = vmax.f32 %v942, 0.0
    %v975 = vmax.f32 %v943, 0.0
    %v976 = vmax.f32 %v944, 0.0
    %v977 = vmax.f32 %v945, 0.0
    %v978 = vmax.f32 %v946, 0.0
    %v979 = vmax.f32 %v947, 0.0
    %v980 = vmax.f32 %v948, 0.0
    %v981 = vmax.f32 %v949, 0.0
    %v982 = vmax.f32 %v950, 0.0
    %v983 = vmax.f32 %v951, 0.0
    %v984 = vmax.f32 %v952, 0.0
    %v985 = vmax.f32 %v953, 0.0
    %v986 = vmax.f32 %v954, 0.0
    %v987 = vmax.f32 %v955, 0.0
    %v988 = vmax.f32 %v956, 0.0
    %v989 = vmax.f32 %v957, 0.0
    %v990 = vmax.f32 %v958, 0.0
    %v991 = vmax.f32 %v959, 0.0
    %v992 = vmax.f32 %v960, 0.0
    %v993 = vmax.f32 %v961, 0.0
    %v994 = vmax.f32 %v962, 0.0
    %v995 = vmax.f32 %v963, 0.0
    %v996 = vmax.f32 %v964, 0.0
    %v997 = vmax.f32 %v965, 0.0
    %v998 = vmax.f32 %v966, 0.0
    %v999 = vmax.f32 %v967, %v968
    %v1000 = vmax.f32 %v969, %v970
    %v1001 = vmax.f32 %v971, %v972
    %v1002 = vmax.f32 %v973, %v974
    %v1003 = vmax.f32 %v975, %v976
    %v1004 = vmax.f32 %v977, %v978
    %v1005 = vmax.f32 %v979, %v980
    %v1006 = vmax.f32 %v981, %v982
    %v1007 = vmax.f32 %v983, %v984
    %v1008 = vmax.f32 %v985, %v986
    %v1009 = vmax.f32 %v987, %v988
    %v1010 = vmax.f32 %v989, %v990
    %v1011 = vmax.f32 %v991, %v992
    %v1012 = vmax.f32 %v993, %v994
    %v1013 = vmax.f32 %v995, %v996
    %v1014 = vmax.f32 %v997, %v998
    %v1015 = vld [vmem:[%s3] sm:$0xff]
    %v1016 = vld [vmem:[%s3 + $0x8] sm:$0xff]
    %v1017 = vld [vmem:[%s3 + $0x10] sm:$0xff]
    %v1018 = vld [vmem:[%s3 + $0x18] sm:$0xff]
    %v1019 = vld [vmem:[%s3 + $0x20] sm:$0xff]
    %v1020 = vld [vmem:[%s3 + $0x28] sm:$0xff]
    %1037 = vst [vmem:[#allocation1] ss:$4 sm:$0xff] %v999
    %s1038 = scalar_lea.vmem [#allocation1], 1
    %1039 = vst [vmem:[%s1038] ss:$4 sm:$0xff] %v1000
    %s1040 = scalar_lea.vmem [#allocation1], 2
    %1041 = vst [vmem:[%s1040] ss:$4 sm:$0xff] %v1001
    %s1042 = scalar_lea.vmem [#allocation1], 3
    %1043 = vst [vmem:[%s1042] ss:$4 sm:$0xff] %v1002
    %s1044 = scalar_lea.vmem [#allocation1], 32
    %1045 = vst [vmem:[%s1044] ss:$4 sm:$0xff] %v1003
    %s1046 = scalar_lea.vmem [#allocation1], 33
    %1047 = vst [vmem:[%s1046] ss:$4 sm:$0xff] %v1004
    %s1048 = scalar_lea.vmem [#allocation1], 34
    %1049 = vst [vmem:[%s1048] ss:$4 sm:$0xff] %v1005
    %s1050 = scalar_lea.vmem [#allocation1], 35
    %1051 = vst [vmem:[%s1050] ss:$4 sm:$0xff] %v1006
    %v1052 = vld.sshfl [vmem:[#allocation1] sm:$0xff pattern:$0x73625140]
    %v1053 = vld.sshfl [vmem:[#allocation1 + $0x20] sm:$0xff pattern:$0x73625140]
    %1054 = vst [vmem:[#allocation1] ss:$4 sm:$0xff] %v1007
    %1055 = vst [vmem:[%s1038] ss:$4 sm:$0xff] %v1008
    %1056 = vst [vmem:[%s1040] ss:$4 sm:$0xff] %v1009
    %1057 = vst [vmem:[%s1042] ss:$4 sm:$0xff] %v1010
    %1058 = vst [vmem:[%s1044] ss:$4 sm:$0xff] %v1011
    %1059 = vst [vmem:[%s1046] ss:$4 sm:$0xff] %v1012
    %1060 = vst [vmem:[%s1048] ss:$4 sm:$0xff] %v1013
    %1061 = vst [vmem:[%s1050] ss:$4 sm:$0xff] %v1014
    %v1062 = vld.sshfl [vmem:[#allocation1] sm:$0xff pattern:$0x73625140]
    %v1063 = vld.sshfl [vmem:[#allocation1 + $0x20] sm:$0xff pattern:$0x73625140]
    %vm1064 = vcmask 130048
    %v1065 = vsel %vm1064, %v1052, 0
    %v1067 = vsel %vm1064, %v1053, 0
    %v1069 = vsel %vm1064, %v1062, 0
    %v1071 = vsel %vm1064, %v1063, 0
    %1073 = vmatpush.msra.mxu0 0.0
    %1074 = vmatpush.msra.mxu0 0.0
    %1075 = vmatpush.msra.mxu0 0.0
    %1076 = vmatpush.msra.mxu0 0.0
    %1077 = vmatpush.msra.mxu0 0.0
    %1078 = vmatpush.msra.mxu0 0.0
    %1079 = vmatpush.msra.mxu0 0.0
    %1080 = vmatpush.msra.mxu0 0.0
    %1081 = vmatpush.msra.mxu0 0.0
    %1082 = vmatpush.msra.mxu0 0.0
    %1083 = vmatpush.msra.mxu0 0.0
    %1084 = vmatpush.msra.mxu0 0.0
    %1085 = vmatpush.msra.mxu0 0.0
    %1086 = vmatpush.msra.mxu0 0.0
    %1087 = vmatpush.msra.mxu0 %v1018
    %1088 = vmatpush.msra.mxu0 %v1017
    %1089 = vmatmul.f32.gmra.mxu0 %v1065
    %v1090 = vpop.f32.mrf.mxu0
    %v1091 = vadd.f32 0.0, %v1090
    %1092 = vmatmul.f32.gmra.mxu0 %v1067
    %v1093 = vpop.f32.mrf.mxu0
    %v1094 = vadd.f32 0.0, %v1093
    %1095 = vmatmul.f32.gmra.mxu0 %v1069
    %v1096 = vpop.f32.mrf.mxu0
    %v1097 = vadd.f32 0.0, %v1096
    %1098 = vmatmul.f32.gmra.mxu0 %v1071
    %v1099 = vpop.f32.mrf.mxu0
    %v1100 = vadd.f32 0.0, %v1099
    %1101 = vdwg.mxu0
    %1103 = vst [vmem:[#allocation1] ss:$4 sm:$0xff] 0.0
    %s1104 = scalar_lea.vmem [#allocation1], 1
    %1105 = vst [vmem:[%s1104] ss:$4 sm:$0xff] %v999
    %s1106 = scalar_lea.vmem [#allocation1], 2
    %1107 = vst [vmem:[%s1106] ss:$4 sm:$0xff] %v1000
    %s1108 = scalar_lea.vmem [#allocation1], 3
    %1109 = vst [vmem:[%s1108] ss:$4 sm:$0xff] %v1001
    %s1110 = scalar_lea.vmem [#allocation1], 32
    %1111 = vst [vmem:[%s1110] ss:$4 sm:$0xff] %v1002
    %s1112 = scalar_lea.vmem [#allocation1], 33
    %1113 = vst [vmem:[%s1112] ss:$4 sm:$0xff] %v1003
    %s1114 = scalar_lea.vmem [#allocation1], 34
    %1115 = vst [vmem:[%s1114] ss:$4 sm:$0xff] %v1004
    %s1116 = scalar_lea.vmem [#allocation1], 35
    %1117 = vst [vmem:[%s1116] ss:$4 sm:$0xff] %v1005
    %v1118 = vld.sshfl [vmem:[#allocation1] sm:$0xff pattern:$0x73625140]
    %v1119 = vld.sshfl [vmem:[#allocation1 + $0x20] sm:$0xff pattern:$0x73625140]
    %1120 = vst [vmem:[#allocation1] ss:$4 sm:$0xff] %v1006
    %1121 = vst [vmem:[%s1104] ss:$4 sm:$0xff] %v1007
    %1122 = vst [vmem:[%s1106] ss:$4 sm:$0xff] %v1008
    %1123 = vst [vmem:[%s1108] ss:$4 sm:$0xff] %v1009
    %1124 = vst [vmem:[%s1110] ss:$4 sm:$0xff] %v1010
    %1125 = vst [vmem:[%s1112] ss:$4 sm:$0xff] %v1011
    %1126 = vst [vmem:[%s1114] ss:$4 sm:$0xff] %v1012
    %1127 = vst [vmem:[%s1116] ss:$4 sm:$0xff] %v1013
    %v1128 = vld.sshfl [vmem:[#allocation1] sm:$0xff pattern:$0x73625140]
    %v1129 = vld.sshfl [vmem:[#allocation1 + $0x20] sm:$0xff pattern:$0x73625140]
    %v1130 = vsel %vm1064, %v1118, 0
    %v1132 = vsel %vm1064, %v1119, 0
    %v1134 = vsel %vm1064, %v1128, 0
    %v1136 = vsel %vm1064, %v1129, 0
    %1138 = vmatpush.msra.mxu0 0.0
    %1139 = vmatpush.msra.mxu0 0.0
    %1140 = vmatpush.msra.mxu0 0.0
    %1141 = vmatpush.msra.mxu0 0.0
    %1142 = vmatpush.msra.mxu0 0.0
    %1143 = vmatpush.msra.mxu0 0.0
    %1144 = vmatpush.msra.mxu0 0.0
    %1145 = vmatpush.msra.mxu0 0.0
    %1146 = vmatpush.msra.mxu0 0.0
    %1147 = vmatpush.msra.mxu0 0.0
    %1148 = vmatpush.msra.mxu0 0.0
    %1149 = vmatpush.msra.mxu0 0.0
    %1150 = vmatpush.msra.mxu0 0.0
    %1151 = vmatpush.msra.mxu0 0.0
    %1152 = vmatpush.msra.mxu0 %v1016
    %1153 = vmatpush.msra.mxu0 %v1015
    %1154 = vmatmul.f32.gmra.mxu0 %v1130
    %v1155 = vpop.f32.mrf.mxu0
    %v1156 = vadd.f32 %v1091, %v1155
    %1157 = vmatmul.f32.gmra.mxu0 %v1132
    %v1158 = vpop.f32.mrf.mxu0
    %v1159 = vadd.f32 %v1094, %v1158
    %1160 = vmatmul.f32.gmra.mxu0 %v1134
    %v1161 = vpop.f32.mrf.mxu0
    %v1162 = vadd.f32 %v1097, %v1161
    %1163 = vmatmul.f32.gmra.mxu0 %v1136
    %v1164 = vpop.f32.mrf.mxu0
    %v1165 = vadd.f32 %v1100, %v1164
    %1166 = vdwg.mxu0
    %1167 = vst [vmem:[#allocation1] ss:$4 sm:$0xff] %v1000
    %s1168 = scalar_lea.vmem [#allocation1], 1
    %1169 = vst [vmem:[%s1168] ss:$4 sm:$0xff] %v1001
    %s1170 = scalar_lea.vmem [#allocation1], 2
    %1171 = vst [vmem:[%s1170] ss:$4 sm:$0xff] %v1002
    %s1172 = scalar_lea.vmem [#allocation1], 3
    %1173 = vst [vmem:[%s1172] ss:$4 sm:$0xff] %v1003
    %s1174 = scalar_lea.vmem [#allocation1], 32
    %1175 = vst [vmem:[%s1174] ss:$4 sm:$0xff] %v1004
    %s1176 = scalar_lea.vmem [#allocation1], 33
    %1177 = vst [vmem:[%s1176] ss:$4 sm:$0xff] %v1005
    %s1178 = scalar_lea.vmem [#allocation1], 34
    %1179 = vst [vmem:[%s1178] ss:$4 sm:$0xff] %v1006
    %s1180 = scalar_lea.vmem [#allocation1], 35
    %1181 = vst [vmem:[%s1180] ss:$4 sm:$0xff] %v1007
    %v1182 = vld.sshfl [vmem:[#allocation1] sm:$0xff pattern:$0x73625140]
    %v1183 = vld.sshfl [vmem:[#allocation1 + $0x20] sm:$0xff pattern:$0x73625140]
    %1184 = vst [vmem:[#allocation1] ss:$4 sm:$0xff] %v1008
    %1185 = vst [vmem:[%s1168] ss:$4 sm:$0xff] %v1009
    %1186 = vst [vmem:[%s1170] ss:$4 sm:$0xff] %v1010
    %1187 = vst [vmem:[%s1172] ss:$4 sm:$0xff] %v1011
    %1188 = vst [vmem:[%s1174] ss:$4 sm:$0xff] %v1012
    %1189 = vst [vmem:[%s1176] ss:$4 sm:$0xff] %v1013
    %1190 = vst [vmem:[%s1178] ss:$4 sm:$0xff] %v1014
    %1191 = vst [vmem:[%s1180] ss:$4 sm:$0xff] 0.0
    %v1192 = vld.sshfl [vmem:[#allocation1] sm:$0xff pattern:$0x73625140]
    %v1193 = vld.sshfl [vmem:[#allocation1 + $0x20] sm:$0xff pattern:$0x73625140]
    %v1194 = vsel %vm1064, %v1182, 0
    %v1196 = vsel %vm1064, %v1183, 0
    %v1198 = vsel %vm1064, %v1192, 0
    %v1200 = vsel %vm1064, %v1193, 0
    %1202 = vmatpush.msra.mxu0 0.0
    %1203 = vmatpush.msra.mxu0 0.0
    %1204 = vmatpush.msra.mxu0 0.0
    %1205 = vmatpush.msra.mxu0 0.0
    %1206 = vmatpush.msra.mxu0 0.0
    %1207 = vmatpush.msra.mxu0 0.0
    %1208 = vmatpush.msra.mxu0 0.0
    %1209 = vmatpush.msra.mxu0 0.0
    %1210 = vmatpush.msra.mxu0 0.0
    %1211 = vmatpush.msra.mxu0 0.0
    %1212 = vmatpush.msra.mxu0 0.0
    %1213 = vmatpush.msra.mxu0 0.0
    %1214 = vmatpush.msra.mxu0 0.0
    %1215 = vmatpush.msra.mxu0 0.0
    %1216 = vmatpush.msra.mxu0 %v1020
    %1217 = vmatpush.msra.mxu0 %v1019
    %1218 = vmatmul.f32.gmra.mxu0 %v1194
    %v1219 = vpop.f32.mrf.mxu0
    %v1220 = vadd.f32 0.0, %v1219
    %1221 = vmatmul.f32.gmra.mxu0 %v1196
    %v1222 = vpop.f32.mrf.mxu0
    %v1223 = vadd.f32 0.0, %v1222
    %1224 = vmatmul.f32.gmra.mxu0 %v1198
    %v1225 = vpop.f32.mrf.mxu0
    %v1226 = vadd.f32 0.0, %v1225
    %1227 = vmatmul.f32.gmra.mxu0 %v1200
    %v1228 = vpop.f32.mrf.mxu0
    %v1229 = vadd.f32 0.0, %v1228
    %1230 = vdwg.mxu0
    %v1231 = vadd.f32 %v1156, %v1220
    %v1232 = vadd.f32 %v1159, %v1223
    %v1233 = vadd.f32 %v1162, %v1226
    %v1234 = vadd.f32 %v1165, %v1229
    %v1239 = vrot.slane %v1231, 2
    %v1240 = vrot.slane %v1231, 4
    %v1241 = vrot.slane %v1231, 6
    %v1242 = vrot.slane %v1232, 2
    %v1243 = vrot.slane %v1232, 4
    %v1244 = vrot.slane %v1232, 6
    %v1245 = vrot.slane %v1233, 2
    %v1246 = vrot.slane %v1233, 4
    %v1247 = vrot.slane %v1233, 6
    %v1248 = vrot.slane %v1234, 2
    %v1249 = vrot.slane %v1234, 4
    %v1250 = vrot.slane %v1234, 6
    %v1263 = vld [vmem:[%s4] sm:$0x1]
    %v1265 = vperm.slane %v1263, 0
    %v1267 = vadd.f32 %v1231, %v1265
    %v1268 = vadd.f32 %v1239, %v1265
    %v1269 = vadd.f32 %v1240, %v1265
    %v1270 = vadd.f32 %v1241, %v1265
    %v1271 = vadd.f32 %v1232, %v1265
    %v1272 = vadd.f32 %v1242, %v1265
    %v1273 = vadd.f32 %v1243, %v1265
    %v1274 = vadd.f32 %v1244, %v1265
    %v1275 = vadd.f32 %v1233, %v1265
    %v1276 = vadd.f32 %v1245, %v1265
    %v1277 = vadd.f32 %v1246, %v1265
    %v1278 = vadd.f32 %v1247, %v1265
    %v1279 = vadd.f32 %v1234, %v1265
    %v1280 = vadd.f32 %v1248, %v1265
    %v1281 = vadd.f32 %v1249, %v1265
    %v1282 = vadd.f32 %v1250, %v1265
    %v1283 = vmax.f32 %v1267, 0.0
    %v1284 = vmax.f32 %v1268, 0.0
    %v1285 = vmax.f32 %v1269, 0.0
    %v1286 = vmax.f32 %v1270, 0.0
    %v1287 = vmax.f32 %v1271, 0.0
    %v1288 = vmax.f32 %v1272, 0.0
    %v1289 = vmax.f32 %v1273, 0.0
    %v1290 = vmax.f32 %v1274, 0.0
    %v1291 = vmax.f32 %v1275, 0.0
    %v1292 = vmax.f32 %v1276, 0.0
    %v1293 = vmax.f32 %v1277, 0.0
    %v1294 = vmax.f32 %v1278, 0.0
    %v1295 = vmax.f32 %v1279, 0.0
    %v1296 = vmax.f32 %v1280, 0.0
    %v1297 = vmax.f32 %v1281, 0.0
    %v1298 = vmax.f32 %v1282, 0.0
    %v1299 = vmax.f32 %v1283, %v1284
    %v1300 = vmax.f32 %v1285, %v1286
    %v1301 = vmax.f32 %v1287, %v1288
    %v1302 = vmax.f32 %v1289, %v1290
    %v1303 = vmax.f32 %v1291, %v1292
    %v1304 = vmax.f32 %v1293, %v1294
    %v1305 = vmax.f32 %v1295, %v1296
    %v1306 = vmax.f32 %v1297, %v1298
    %v1307 = vld [vmem:[%s5] sm:$0xff]
    %v1308 = vld [vmem:[%s5 + $0x8] sm:$0xff]
    %v1309 = vld [vmem:[%s5 + $0x10] sm:$0xff]
    %v1310 = vld [vmem:[%s5 + $0x18] sm:$0xff]
    %v1311 = vld [vmem:[%s7] sm:$0x1]
    %v1313 = vperm.slane %v1311, 0
    %1323 = vst [vmem:[#allocation1] ss:$4 sm:$0xff] %v1299
    %s1324 = scalar_lea.vmem [#allocation1], 1
    %1325 = vst [vmem:[%s1324] ss:$4 sm:$0xff] %v1300
    %s1326 = scalar_lea.vmem [#allocation1], 2
    %1327 = vst [vmem:[%s1326] ss:$4 sm:$0xff] %v1301
    %s1328 = scalar_lea.vmem [#allocation1], 3
    %1329 = vst [vmem:[%s1328] ss:$4 sm:$0xff] %v1302
    %s1330 = scalar_lea.vmem [#allocation1], 32
    %1331 = vst [vmem:[%s1330] ss:$4 sm:$0xff] %v1303
    %s1332 = scalar_lea.vmem [#allocation1], 33
    %1333 = vst [vmem:[%s1332] ss:$4 sm:$0xff] %v1304
    %s1334 = scalar_lea.vmem [#allocation1], 34
    %1335 = vst [vmem:[%s1334] ss:$4 sm:$0xff] %v1305
    %s1336 = scalar_lea.vmem [#allocation1], 35
    %1337 = vst [vmem:[%s1336] ss:$4 sm:$0xff] %v1306
    %v1338 = vld.sshfl [vmem:[#allocation1] sm:$0xff pattern:$0x73625140]
    %v1339 = vld.sshfl [vmem:[#allocation1 + $0x20] sm:$0xff pattern:$0x73625140]
    %vm1340 = vcmask 261120
    %v1341 = vsel %vm1340, %v1338, 0
    %v1343 = vsel %vm1340, %v1339, 0
    %1345 = vmatpush.msra.mxu0 0.0
    %1346 = vmatpush.msra.mxu0 0.0
    %1347 = vmatpush.msra.mxu0 0.0
    %1348 = vmatpush.msra.mxu0 0.0
    %1349 = vmatpush.msra.mxu0 0.0
    %1350 = vmatpush.msra.mxu0 0.0
    %1351 = vmatpush.msra.mxu0 0.0
    %1352 = vmatpush.msra.mxu0 0.0
    %1353 = vmatpush.msra.mxu0 0.0
    %1354 = vmatpush.msra.mxu0 0.0
    %1355 = vmatpush.msra.mxu0 0.0
    %1356 = vmatpush.msra.mxu0 0.0
    %1357 = vmatpush.msra.mxu0 %v1310
    %1358 = vmatpush.msra.mxu0 %v1309
    %1359 = vmatpush.msra.mxu0 %v1308
    %1360 = vmatpush.msra.mxu0 %v1307
    %1361 = vmatmul.f32.gmra.mxu0 %v1341
    %v1362 = vpop.f32.mrf.mxu0
    %v1363 = vadd.f32 %v1313, %v1362
    %1364 = vmatmul.f32.gmra.mxu0 %v1343
    %v1365 = vpop.f32.mrf.mxu0
    %v1366 = vadd.f32 %v1313, %v1365
    %1367 = vdwg.mxu0
    %v1368 = vld [vmem:[%s6] sm:$0xff]
    %v1369 = vld [vmem:[%s6 + $0x8] sm:$0xff]
    %v1370 = vld [vmem:[%s6 + $0x10] sm:$0xff]
    %v1371 = vld [vmem:[%s6 + $0x18] sm:$0xff]
    %v1372 = vld [vmem:[%s8] sm:$0xff]
    %v1373 = vld [vmem:[%s8 + $0x8] sm:$0xff]
    %v1374 = vld [vmem:[%s8 + $0x10] sm:$0xff]
    %v1375 = vld [vmem:[%s8 + $0x18] sm:$0xff]
    %v1376 = vld [vmem:[#allocation2] sm:$0xff]
    %v1377 = vld [vmem:[#allocation2 + $0x8] sm:$0xff]
    %v1378 = vld [vmem:[#allocation2 + $0x10] sm:$0xff]
    %v1379 = vld [vmem:[#allocation2 + $0x18] sm:$0xff]
    %v1380 = vld [vmem:[%s10] sm:$0x1]
    %v1381 = vlaneseq
    %v1382 = vand.u32 %v1381, 127
    %vm1383 = vcmp.ge.s32.totalorder %v1382, 64
    %vm1384 = vcmp.lt.s32.totalorder %v1382, 96
    %vm1385 = vmand %vm1383, %vm1384
    %v1386 = vsel %vm1340, 0.0, 0
    %1388 = vmatpush.msra.mxu0 0.0
    %1389 = vmatpush.msra.mxu0 0.0
    %1390 = vmatpush.msra.mxu0 0.0
    %1391 = vmatpush.msra.mxu0 0.0
    %1392 = vmatpush.msra.mxu0 0.0
    %1393 = vmatpush.msra.mxu0 0.0
    %1394 = vmatpush.msra.mxu0 0.0
    %1395 = vmatpush.msra.mxu0 0.0
    %1396 = vmatpush.msra.mxu0 0.0
    %1397 = vmatpush.msra.mxu0 0.0
    %1398 = vmatpush.msra.mxu0 0.0
    %1399 = vmatpush.msra.mxu0 0.0
    %1400 = vmatpush.msra.mxu0 %v1371
    %1401 = vmatpush.msra.mxu0 %v1370
    %1402 = vmatpush.msra.mxu0 %v1369
    %1403 = vmatpush.msra.mxu0 %v1368
    %1404 = vmatmul.f32.gmra.mxu0 %v1386
    %v1405 = vpop.f32.mrf.mxu0
    %v1406 = vadd.f32 0.0, %v1405
    %1407 = vdwg.mxu0
    %v1408 = vadd.f32 %v1363, %v1406
    %v1409 = vtanh.pop %v1408
    %v1410 = vxor.u32 %v1408, 2147483648
    %v1411 = vmul.f32 %v1410, 1.442695
    %v1412 = vpow.pop %v1411
    %v1413 = vadd.f32 %v1412, 1.0
    %v1414 = vrcp.pop %v1413
    %v1415 = vmul.f32 %v1413, %v1414
    %v1416 = vsub.f32 1.0, %v1415
    %v1417 = vmul.f32 %v1414, %v1416
    %v1418 = vadd.f32 %v1414, %v1417
    %vm1419 = vweird.f32 %v1413
    %vm1420 = vweird.f32 %v1414
    %vm1421 = vmor %vm1419, %vm1420
    %v1422 = vsel %vm1421, %v1414, %v1418
    %v1423 = vand.u32 2147483647, %v1413
    %vm1424 = vcmp.eq.f32.partialorder %v1423, 8.507059e+37
    %v1425 = vand.u32 %v1413, 2147483648
    %v1426 = vor.u32 1.1754944e-38, %v1425
    %v1427 = vsel %vm1424, %v1426, %v1422
    %v1428 = vmul.f32 1.0, %v1427
    %v1429 = vsel %vm1385, 1, 0
    %vm1430 = vcmp.eq.s32.totalorder %v1429, 1
    %v1431 = vsel %vm1430, %v1409, %v1428
    %v1432 = vmul.f32 %v1431, 0.0
    %1434 = vrot.lane.b32.xlu0 %v1431, 64
    %v1435 = vpop.permute.xlu0 %1434
    %v1437 = vmul.f32 %v1431, %v1435
    %1439 = vrot.lane.b32.xlu0 %v1437, 32
    %v1440 = vpop.permute.xlu0 %1439
    %v1442 = vadd.f32 %v1432, %v1440
    %v1443 = vtanh.pop %v1442
    %1445 = vrot.lane.b32.xlu0 %v1443, 64
    %v1446 = vpop.permute.xlu0 %1445
    %v1448 = vmul.f32 %v1431, %v1446
    %1449 = vmatpush.msra.mxu0 0.0
    %1450 = vmatpush.msra.mxu0 0.0
    %1451 = vmatpush.msra.mxu0 0.0
    %1452 = vmatpush.msra.mxu0 0.0
    %1453 = vmatpush.msra.mxu0 0.0
    %1454 = vmatpush.msra.mxu0 0.0
    %1455 = vmatpush.msra.mxu0 0.0
    %1456 = vmatpush.msra.mxu0 0.0
    %1457 = vmatpush.msra.mxu0 0.0
    %1458 = vmatpush.msra.mxu0 0.0
    %1459 = vmatpush.msra.mxu0 0.0
    %1460 = vmatpush.msra.mxu0 0.0
    %1461 = vmatpush.msra.mxu0 %v1379
    %1462 = vmatpush.msra.mxu0 %v1378
    %1463 = vmatpush.msra.mxu0 %v1377
    %1464 = vmatpush.msra.mxu0 %v1376
    %1465 = vmatmul.f32.gmra.mxu0 %v1386
    %v1466 = vpop.f32.mrf.mxu0
    %v1467 = vadd.f32 0.0, %v1466
    %1468 = vdwg.mxu0
    %1470 = vrot.lane.b32.xlu0 %v1448, 32
    %v1471 = vpop.permute.xlu0 %1470
    %v1472 = vsel %vm1340, %v1471, 0
    %1474 = vmatpush.msra.mxu0 0.0
    %1475 = vmatpush.msra.mxu0 0.0
    %1476 = vmatpush.msra.mxu0 0.0
    %1477 = vmatpush.msra.mxu0 0.0
    %1478 = vmatpush.msra.mxu0 0.0
    %1479 = vmatpush.msra.mxu0 0.0
    %1480 = vmatpush.msra.mxu0 0.0
    %1481 = vmatpush.msra.mxu0 0.0
    %1482 = vmatpush.msra.mxu0 0.0
    %1483 = vmatpush.msra.mxu0 0.0
    %1484 = vmatpush.msra.mxu0 0.0
    %1485 = vmatpush.msra.mxu0 0.0
    %1486 = vmatpush.msra.mxu0 %v1375
    %1487 = vmatpush.msra.mxu0 %v1374
    %1488 = vmatpush.msra.mxu0 %v1373
    %1489 = vmatpush.msra.mxu0 %v1372
    %1490 = vmatmul.f32.gmra.mxu0 %v1472
    %v1491 = vpop.f32.mrf.mxu0
    %v1492 = vadd.f32 %v1467, %v1491
    %1493 = vdwg.mxu0
    %v1495 = vperm.slane %v1380, 0
    %v1497 = vadd.f32 %v1492, %v1495
    %v1498 = vtanh.pop %v1497
    %v1499 = vxor.u32 %v1497, 2147483648
    %v1500 = vmul.f32 %v1499, 1.442695
    %v1501 = vpow.pop %v1500
    %v1502 = vadd.f32 %v1501, 1.0
    %v1503 = vrcp.pop %v1502
    %v1504 = vmul.f32 %v1502, %v1503
    %v1505 = vsub.f32 1.0, %v1504
    %v1506 = vmul.f32 %v1503, %v1505
    %v1507 = vadd.f32 %v1503, %v1506
    %vm1508 = vweird.f32 %v1502
    %vm1509 = vweird.f32 %v1503
    %vm1510 = vmor %vm1508, %vm1509
    %v1511 = vsel %vm1510, %v1503, %v1507
    %v1512 = vand.u32 2147483647, %v1502
    %vm1513 = vcmp.eq.f32.partialorder %v1512, 8.507059e+37
    %v1514 = vand.u32 %v1502, 2147483648
    %v1515 = vor.u32 1.1754944e-38, %v1514
    %v1516 = vsel %vm1513, %v1515, %v1511
    %v1517 = vmul.f32 1.0, %v1516
    %v1518 = vsel %vm1430, %v1498, %v1517
    %v1519 = vmul.f32 %v1518, 0.0
    %1521 = vrot.lane.b32.xlu0 %v1518, 64
    %v1522 = vpop.permute.xlu0 %1521
    %v1524 = vmul.f32 %v1518, %v1522
    %1526 = vrot.lane.b32.xlu0 %v1524, 32
    %v1527 = vpop.permute.xlu0 %1526
    %v1529 = vadd.f32 %v1519, %v1527
    %v1530 = vtanh.pop %v1529
    %1532 = vrot.lane.b32.xlu0 %v1530, 64
    %v1533 = vpop.permute.xlu0 %1532
    %v1535 = vmul.f32 %v1518, %v1533
    %1536 = vmatpush.msra.mxu0 0.0
    %1537 = vmatpush.msra.mxu0 0.0
    %1538 = vmatpush.msra.mxu0 0.0
    %1539 = vmatpush.msra.mxu0 0.0
    %1540 = vmatpush.msra.mxu0 0.0
    %1541 = vmatpush.msra.mxu0 0.0
    %1542 = vmatpush.msra.mxu0 0.0
    %1543 = vmatpush.msra.mxu0 0.0
    %1544 = vmatpush.msra.mxu0 0.0
    %1545 = vmatpush.msra.mxu0 0.0
    %1546 = vmatpush.msra.mxu0 0.0
    %1547 = vmatpush.msra.mxu0 0.0
    %1548 = vmatpush.msra.mxu0 %v1371
    %1549 = vmatpush.msra.mxu0 %v1370
    %1550 = vmatpush.msra.mxu0 %v1369
    %1551 = vmatpush.msra.mxu0 %v1368
    %1552 = vmatmul.f32.gmra.mxu0 %v1472
    %v1553 = vpop.f32.mrf.mxu0
    %v1554 = vadd.f32 0.0, %v1553
    %1555 = vdwg.mxu0
    %v1557 = vrot.slane %v1554, 6
    %v1559 = vadd.f32 %v1363, %v1557
    %v1560 = vtanh.pop %v1559
    %v1561 = vxor.u32 %v1559, 2147483648
    %v1562 = vmul.f32 %v1561, 1.442695
    %v1563 = vpow.pop %v1562
    %v1564 = vadd.f32 %v1563, 1.0
    %v1565 = vrcp.pop %v1564
    %v1566 = vmul.f32 %v1564, %v1565
    %v1567 = vsub.f32 1.0, %v1566
    %v1568 = vmul.f32 %v1565, %v1567
    %v1569 = vadd.f32 %v1565, %v1568
    %vm1570 = vweird.f32 %v1564
    %vm1571 = vweird.f32 %v1565
    %vm1572 = vmor %vm1570, %vm1571
    %v1573 = vsel %vm1572, %v1565, %v1569
    %v1574 = vand.u32 2147483647, %v1564
    %vm1575 = vcmp.eq.f32.partialorder %v1574, 8.507059e+37
    %v1576 = vand.u32 %v1564, 2147483648
    %v1577 = vor.u32 1.1754944e-38, %v1576
    %v1578 = vsel %vm1575, %v1577, %v1573
    %v1579 = vmul.f32 1.0, %v1578
    %v1580 = vsel %vm1430, %v1560, %v1579
    %v1582 = vrot.slane %v1442, 6
    %v1584 = vmul.f32 %v1580, %v1582
    %1586 = vrot.lane.b32.xlu0 %v1580, 64
    %v1587 = vpop.permute.xlu0 %1586
    %v1589 = vmul.f32 %v1580, %v1587
    %1591 = vrot.lane.b32.xlu0 %v1589, 32
    %v1592 = vpop.permute.xlu0 %1591
    %v1594 = vadd.f32 %v1584, %v1592
    %v1595 = vtanh.pop %v1594
    %1597 = vrot.lane.b32.xlu0 %v1595, 64
    %v1598 = vpop.permute.xlu0 %1597
    %v1600 = vmul.f32 %v1580, %v1598
    %1602 = vrot.lane.b32.xlu0 %v1535, 32
    %v1603 = vpop.permute.xlu0 %1602
    %v1604 = vsel %vm1340, %v1603, 0
    %1606 = vmatpush.msra.mxu0 0.0
    %1607 = vmatpush.msra.mxu0 0.0
    %1608 = vmatpush.msra.mxu0 0.0
    %1609 = vmatpush.msra.mxu0 0.0
    %1610 = vmatpush.msra.mxu0 0.0
    %1611 = vmatpush.msra.mxu0 0.0
    %1612 = vmatpush.msra.mxu0 0.0
    %1613 = vmatpush.msra.mxu0 0.0
    %1614 = vmatpush.msra.mxu0 0.0
    %1615 = vmatpush.msra.mxu0 0.0
    %1616 = vmatpush.msra.mxu0 0.0
    %1617 = vmatpush.msra.mxu0 0.0
    %1618 = vmatpush.msra.mxu0 %v1379
    %1619 = vmatpush.msra.mxu0 %v1378
    %1620 = vmatpush.msra.mxu0 %v1377
    %1621 = vmatpush.msra.mxu0 %v1376
    %1622 = vmatmul.f32.gmra.mxu0 %v1604
    %v1623 = vpop.f32.mrf.mxu0
    %v1624 = vadd.f32 0.0, %v1623
    %1625 = vdwg.mxu0
    %v1627 = vrot.slane %v1600, 2
    %1628 = vrot.lane.b32.xlu0 %v1627, 32
    %v1629 = vpop.permute.xlu0 %1628
    %v1630 = vsel %vm1340, %v1629, 0
    %1632 = vmatpush.msra.mxu0 0.0
    %1633 = vmatpush.msra.mxu0 0.0
    %1634 = vmatpush.msra.mxu0 0.0
    %1635 = vmatpush.msra.mxu0 0.0
    %1636 = vmatpush.msra.mxu0 0.0
    %1637 = vmatpush.msra.mxu0 0.0
    %1638 = vmatpush.msra.mxu0 0.0
    %1639 = vmatpush.msra.mxu0 0.0
    %1640 = vmatpush.msra.mxu0 0.0
    %1641 = vmatpush.msra.mxu0 0.0
    %1642 = vmatpush.msra.mxu0 0.0
    %1643 = vmatpush.msra.mxu0 0.0
    %1644 = vmatpush.msra.mxu0 %v1375
    %1645 = vmatpush.msra.mxu0 %v1374
    %1646 = vmatpush.msra.mxu0 %v1373
    %1647 = vmatpush.msra.mxu0 %v1372
    %1648 = vmatmul.f32.gmra.mxu0 %v1630
    %v1649 = vpop.f32.mrf.mxu0
    %v1650 = vadd.f32 %v1624, %v1649
    %1651 = vdwg.mxu0
    %v1652 = vadd.f32 %v1650, %v1495
    %v1653 = vtanh.pop %v1652
    %v1654 = vxor.u32 %v1652, 2147483648
    %v1655 = vmul.f32 %v1654, 1.442695
    %v1656 = vpow.pop %v1655
    %v1657 = vadd.f32 %v1656, 1.0
    %v1658 = vrcp.pop %v1657
    %v1659 = vmul.f32 %v1657, %v1658
    %v1660 = vsub.f32 1.0, %v1659
    %v1661 = vmul.f32 %v1658, %v1660
    %v1662 = vadd.f32 %v1658, %v1661
    %vm1663 = vweird.f32 %v1657
    %vm1664 = vweird.f32 %v1658
    %vm1665 = vmor %vm1663, %vm1664
    %v1666 = vsel %vm1665, %v1658, %v1662
    %v1667 = vand.u32 2147483647, %v1657
    %vm1668 = vcmp.eq.f32.partialorder %v1667, 8.507059e+37
    %v1669 = vand.u32 %v1657, 2147483648
    %v1670 = vor.u32 1.1754944e-38, %v1669
    %v1671 = vsel %vm1668, %v1670, %v1666
    %v1672 = vmul.f32 1.0, %v1671
    %v1673 = vsel %vm1430, %v1653, %v1672
    %v1674 = vmul.f32 %v1673, %v1529
    %1676 = vrot.lane.b32.xlu0 %v1673, 64
    %v1677 = vpop.permute.xlu0 %1676
    %v1679 = vmul.f32 %v1673, %v1677
    %1681 = vrot.lane.b32.xlu0 %v1679, 32
    %v1682 = vpop.permute.xlu0 %1681
    %v1684 = vadd.f32 %v1674, %v1682
    %v1685 = vtanh.pop %v1684
    %1687 = vrot.lane.b32.xlu0 %v1685, 64
    %v1688 = vpop.permute.xlu0 %1687
    %v1690 = vmul.f32 %v1673, %v1688
    %1691 = vmatpush.msra.mxu0 0.0
    %1692 = vmatpush.msra.mxu0 0.0
    %1693 = vmatpush.msra.mxu0 0.0
    %1694 = vmatpush.msra.mxu0 0.0
    %1695 = vmatpush.msra.mxu0 0.0
    %1696 = vmatpush.msra.mxu0 0.0
    %1697 = vmatpush.msra.mxu0 0.0
    %1698 = vmatpush.msra.mxu0 0.0
    %1699 = vmatpush.msra.mxu0 0.0
    %1700 = vmatpush.msra.mxu0 0.0
    %1701 = vmatpush.msra.mxu0 0.0
    %1702 = vmatpush.msra.mxu0 0.0
    %1703 = vmatpush.msra.mxu0 %v1371
    %1704 = vmatpush.msra.mxu0 %v1370
    %1705 = vmatpush.msra.mxu0 %v1369
    %1706 = vmatpush.msra.mxu0 %v1368
    %1707 = vmatmul.f32.gmra.mxu0 %v1630
    %v1708 = vpop.f32.mrf.mxu0
    %v1709 = vadd.f32 0.0, %v1708
    %1710 = vdwg.mxu0
    %v1712 = vrot.slane %v1709, 4
    %v1714 = vadd.f32 %v1363, %v1712
    %v1715 = vtanh.pop %v1714
    %v1716 = vxor.u32 %v1714, 2147483648
    %v1717 = vmul.f32 %v1716, 1.442695
    %v1718 = vpow.pop %v1717
    %v1719 = vadd.f32 %v1718, 1.0
    %v1720 = vrcp.pop %v1719
    %v1721 = vmul.f32 %v1719, %v1720
    %v1722 = vsub.f32 1.0, %v1721
    %v1723 = vmul.f32 %v1720, %v1722
    %v1724 = vadd.f32 %v1720, %v1723
    %vm1725 = vweird.f32 %v1719
    %vm1726 = vweird.f32 %v1720
    %vm1727 = vmor %vm1725, %vm1726
    %v1728 = vsel %vm1727, %v1720, %v1724
    %v1729 = vand.u32 2147483647, %v1719
    %vm1730 = vcmp.eq.f32.partialorder %v1729, 8.507059e+37
    %v1731 = vand.u32 %v1719, 2147483648
    %v1732 = vor.u32 1.1754944e-38, %v1731
    %v1733 = vsel %vm1730, %v1732, %v1728
    %v1734 = vmul.f32 1.0, %v1733
    %v1735 = vsel %vm1430, %v1715, %v1734
    %v1737 = vrot.slane %v1594, 6
    %v1739 = vmul.f32 %v1735, %v1737
    %1741 = vrot.lane.b32.xlu0 %v1735, 64
    %v1742 = vpop.permute.xlu0 %1741
    %v1744 = vmul.f32 %v1735, %v1742
    %1746 = vrot.lane.b32.xlu0 %v1744, 32
    %v1747 = vpop.permute.xlu0 %1746
    %v1749 = vadd.f32 %v1739, %v1747
    %v1750 = vtanh.pop %v1749
    %1752 = vrot.lane.b32.xlu0 %v1750, 64
    %v1753 = vpop.permute.xlu0 %1752
    %v1755 = vmul.f32 %v1735, %v1753
    %1757 = vrot.lane.b32.xlu0 %v1690, 32
    %v1758 = vpop.permute.xlu0 %1757
    %v1759 = vsel %vm1340, %v1758, 0
    %1761 = vmatpush.msra.mxu0 0.0
    %1762 = vmatpush.msra.mxu0 0.0
    %1763 = vmatpush.msra.mxu0 0.0
    %1764 = vmatpush.msra.mxu0 0.0
    %1765 = vmatpush.msra.mxu0 0.0
    %1766 = vmatpush.msra.mxu0 0.0
    %1767 = vmatpush.msra.mxu0 0.0
    %1768 = vmatpush.msra.mxu0 0.0
    %1769 = vmatpush.msra.mxu0 0.0
    %1770 = vmatpush.msra.mxu0 0.0
    %1771 = vmatpush.msra.mxu0 0.0
    %1772 = vmatpush.msra.mxu0 0.0
    %1773 = vmatpush.msra.mxu0 %v1379
    %1774 = vmatpush.msra.mxu0 %v1378
    %1775 = vmatpush.msra.mxu0 %v1377
    %1776 = vmatpush.msra.mxu0 %v1376
    %1777 = vmatmul.f32.gmra.mxu0 %v1759
    %v1778 = vpop.f32.mrf.mxu0
    %v1779 = vadd.f32 0.0, %v1778
    %1780 = vdwg.mxu0
    %v1782 = vrot.slane %v1755, 4
    %1783 = vrot.lane.b32.xlu0 %v1782, 32
    %v1784 = vpop.permute.xlu0 %1783
    %v1785 = vsel %vm1340, %v1784, 0
    %1787 = vmatpush.msra.mxu0 0.0
    %1788 = vmatpush.msra.mxu0 0.0
    %1789 = vmatpush.msra.mxu0 0.0
    %1790 = vmatpush.msra.mxu0 0.0
    %1791 = vmatpush.msra.mxu0 0.0
    %1792 = vmatpush.msra.mxu0 0.0
    %1793 = vmatpush.msra.mxu0 0.0
    %1794 = vmatpush.msra.mxu0 0.0
    %1795 = vmatpush.msra.mxu0 0.0
    %1796 = vmatpush.msra.mxu0 0.0
    %1797 = vmatpush.msra.mxu0 0.0
    %1798 = vmatpush.msra.mxu0 0.0
    %1799 = vmatpush.msra.mxu0 %v1375
    %1800 = vmatpush.msra.mxu0 %v1374
    %1801 = vmatpush.msra.mxu0 %v1373
    %1802 = vmatpush.msra.mxu0 %v1372
    %1803 = vmatmul.f32.gmra.mxu0 %v1785
    %v1804 = vpop.f32.mrf.mxu0
    %v1805 = vadd.f32 %v1779, %v1804
    %1806 = vdwg.mxu0
    %v1807 = vadd.f32 %v1805, %v1495
    %v1808 = vtanh.pop %v1807
    %v1809 = vxor.u32 %v1807, 2147483648
    %v1810 = vmul.f32 %v1809, 1.442695
    %v1811 = vpow.pop %v1810
    %v1812 = vadd.f32 %v1811, 1.0
    %v1813 = vrcp.pop %v1812
    %v1814 = vmul.f32 %v1812, %v1813
    %v1815 = vsub.f32 1.0, %v1814
    %v1816 = vmul.f32 %v1813, %v1815
    %v1817 = vadd.f32 %v1813, %v1816
    %vm1818 = vweird.f32 %v1812
    %vm1819 = vweird.f32 %v1813
    %vm1820 = vmor %vm1818, %vm1819
    %v1821 = vsel %vm1820, %v1813, %v1817
    %v1822 = vand.u32 2147483647, %v1812
    %vm1823 = vcmp.eq.f32.partialorder %v1822, 8.507059e+37
    %v1824 = vand.u32 %v1812, 2147483648
    %v1825 = vor.u32 1.1754944e-38, %v1824
    %v1826 = vsel %vm1823, %v1825, %v1821
    %v1827 = vmul.f32 1.0, %v1826
    %v1828 = vsel %vm1430, %v1808, %v1827
    %v1829 = vmul.f32 %v1828, %v1684
    %1831 = vrot.lane.b32.xlu0 %v1828, 64
    %v1832 = vpop.permute.xlu0 %1831
    %v1834 = vmul.f32 %v1828, %v1832
    %1836 = vrot.lane.b32.xlu0 %v1834, 32
    %v1837 = vpop.permute.xlu0 %1836
    %v1839 = vadd.f32 %v1829, %v1837
    %v1840 = vtanh.pop %v1839
    %1842 = vrot.lane.b32.xlu0 %v1840, 64
    %v1843 = vpop.permute.xlu0 %1842
    %v1845 = vmul.f32 %v1828, %v1843
    %1846 = vmatpush.msra.mxu0 0.0
    %1847 = vmatpush.msra.mxu0 0.0
    %1848 = vmatpush.msra.mxu0 0.0
    %1849 = vmatpush.msra.mxu0 0.0
    %1850 = vmatpush.msra.mxu0 0.0
    %1851 = vmatpush.msra.mxu0 0.0
    %1852 = vmatpush.msra.mxu0 0.0
    %1853 = vmatpush.msra.mxu0 0.0
    %1854 = vmatpush.msra.mxu0 0.0
    %1855 = vmatpush.msra.mxu0 0.0
    %1856 = vmatpush.msra.mxu0 0.0
    %1857 = vmatpush.msra.mxu0 0.0
    %1858 = vmatpush.msra.mxu0 %v1371
    %1859 = vmatpush.msra.mxu0 %v1370
    %1860 = vmatpush.msra.mxu0 %v1369
    %1861 = vmatpush.msra.mxu0 %v1368
    %1862 = vmatmul.f32.gmra.mxu0 %v1785
    %v1863 = vpop.f32.mrf.mxu0
    %v1864 = vadd.f32 0.0, %v1863
    %1865 = vdwg.mxu0
    %v1867 = vrot.slane %v1864, 2
    %v1869 = vadd.f32 %v1363, %v1867
    %v1870 = vtanh.pop %v1869
    %v1871 = vxor.u32 %v1869, 2147483648
    %v1872 = vmul.f32 %v1871, 1.442695
    %v1873 = vpow.pop %v1872
    %v1874 = vadd.f32 %v1873, 1.0
    %v1875 = vrcp.pop %v1874
    %v1876 = vmul.f32 %v1874, %v1875
    %v1877 = vsub.f32 1.0, %v1876
    %v1878 = vmul.f32 %v1875, %v1877
    %v1879 = vadd.f32 %v1875, %v1878
    %vm1880 = vweird.f32 %v1874
    %vm1881 = vweird.f32 %v1875
    %vm1882 = vmor %vm1880, %vm1881
    %v1883 = vsel %vm1882, %v1875, %v1879
    %v1884 = vand.u32 2147483647, %v1874
    %vm1885 = vcmp.eq.f32.partialorder %v1884, 8.507059e+37
    %v1886 = vand.u32 %v1874, 2147483648
    %v1887 = vor.u32 1.1754944e-38, %v1886
    %v1888 = vsel %vm1885, %v1887, %v1883
    %v1889 = vmul.f32 1.0, %v1888
    %v1890 = vsel %vm1430, %v1870, %v1889
    %v1892 = vrot.slane %v1749, 6
    %v1894 = vmul.f32 %v1890, %v1892
    %1896 = vrot.lane.b32.xlu0 %v1890, 64
    %v1897 = vpop.permute.xlu0 %1896
    %v1899 = vmul.f32 %v1890, %v1897
    %1901 = vrot.lane.b32.xlu0 %v1899, 32
    %v1902 = vpop.permute.xlu0 %1901
    %v1904 = vadd.f32 %v1894, %v1902
    %v1905 = vtanh.pop %v1904
    %1907 = vrot.lane.b32.xlu0 %v1905, 64
    %v1908 = vpop.permute.xlu0 %1907
    %v1910 = vmul.f32 %v1890, %v1908
    %1912 = vrot.lane.b32.xlu0 %v1845, 32
    %v1913 = vpop.permute.xlu0 %1912
    %v1914 = vsel %vm1340, %v1913, 0
    %1916 = vmatpush.msra.mxu0 0.0
    %1917 = vmatpush.msra.mxu0 0.0
    %1918 = vmatpush.msra.mxu0 0.0
    %1919 = vmatpush.msra.mxu0 0.0
    %1920 = vmatpush.msra.mxu0 0.0
    %1921 = vmatpush.msra.mxu0 0.0
    %1922 = vmatpush.msra.mxu0 0.0
    %1923 = vmatpush.msra.mxu0 0.0
    %1924 = vmatpush.msra.mxu0 0.0
    %1925 = vmatpush.msra.mxu0 0.0
    %1926 = vmatpush.msra.mxu0 0.0
    %1927 = vmatpush.msra.mxu0 0.0
    %1928 = vmatpush.msra.mxu0 %v1379
    %1929 = vmatpush.msra.mxu0 %v1378
    %1930 = vmatpush.msra.mxu0 %v1377
    %1931 = vmatpush.msra.mxu0 %v1376
    %1932 = vmatmul.f32.gmra.mxu0 %v1914
    %v1933 = vpop.f32.mrf.mxu0
    %v1934 = vadd.f32 0.0, %v1933
    %1935 = vdwg.mxu0
    %v1937 = vrot.slane %v1910, 6
    %1938 = vrot.lane.b32.xlu0 %v1937, 32
    %v1939 = vpop.permute.xlu0 %1938
    %v1940 = vsel %vm1340, %v1939, 0
    %1942 = vmatpush.msra.mxu0 0.0
    %1943 = vmatpush.msra.mxu0 0.0
    %1944 = vmatpush.msra.mxu0 0.0
    %1945 = vmatpush.msra.mxu0 0.0
    %1946 = vmatpush.msra.mxu0 0.0
    %1947 = vmatpush.msra.mxu0 0.0
    %1948 = vmatpush.msra.mxu0 0.0
    %1949 = vmatpush.msra.mxu0 0.0
    %1950 = vmatpush.msra.mxu0 0.0
    %1951 = vmatpush.msra.mxu0 0.0
    %1952 = vmatpush.msra.mxu0 0.0
    %1953 = vmatpush.msra.mxu0 0.0
    %1954 = vmatpush.msra.mxu0 %v1375
    %1955 = vmatpush.msra.mxu0 %v1374
    %1956 = vmatpush.msra.mxu0 %v1373
    %1957 = vmatpush.msra.mxu0 %v1372
    %1958 = vmatmul.f32.gmra.mxu0 %v1940
    %v1959 = vpop.f32.mrf.mxu0
    %v1960 = vadd.f32 %v1934, %v1959
    %1961 = vdwg.mxu0
    %v1962 = vadd.f32 %v1960, %v1495
    %v1963 = vtanh.pop %v1962
    %v1964 = vxor.u32 %v1962, 2147483648
    %v1965 = vmul.f32 %v1964, 1.442695
    %v1966 = vpow.pop %v1965
    %v1967 = vadd.f32 %v1966, 1.0
    %v1968 = vrcp.pop %v1967
    %v1969 = vmul.f32 %v1967, %v1968
    %v1970 = vsub.f32 1.0, %v1969
    %v1971 = vmul.f32 %v1968, %v1970
    %v1972 = vadd.f32 %v1968, %v1971
    %vm1973 = vweird.f32 %v1967
    %vm1974 = vweird.f32 %v1968
    %vm1975 = vmor %vm1973, %vm1974
    %v1976 = vsel %vm1975, %v1968, %v1972
    %v1977 = vand.u32 2147483647, %v1967
    %vm1978 = vcmp.eq.f32.partialorder %v1977, 8.507059e+37
    %v1979 = vand.u32 %v1967, 2147483648
    %v1980 = vor.u32 1.1754944e-38, %v1979
    %v1981 = vsel %vm1978, %v1980, %v1976
    %v1982 = vmul.f32 1.0, %v1981
    %v1983 = vsel %vm1430, %v1963, %v1982
    %v1984 = vmul.f32 %v1983, %v1839
    %1986 = vrot.lane.b32.xlu0 %v1983, 64
    %v1987 = vpop.permute.xlu0 %1986
    %v1989 = vmul.f32 %v1983, %v1987
    %1991 = vrot.lane.b32.xlu0 %v1989, 32
    %v1992 = vpop.permute.xlu0 %1991
    %v1994 = vadd.f32 %v1984, %v1992
    %v1995 = vtanh.pop %v1994
    %1997 = vrot.lane.b32.xlu0 %v1995, 64
    %v1998 = vpop.permute.xlu0 %1997
    %v2000 = vmul.f32 %v1983, %v1998
    %2001 = vmatpush.msra.mxu0 0.0
    %2002 = vmatpush.msra.mxu0 0.0
    %2003 = vmatpush.msra.mxu0 0.0
    %2004 = vmatpush.msra.mxu0 0.0
    %2005 = vmatpush.msra.mxu0 0.0
    %2006 = vmatpush.msra.mxu0 0.0
    %2007 = vmatpush.msra.mxu0 0.0
    %2008 = vmatpush.msra.mxu0 0.0
    %2009 = vmatpush.msra.mxu0 0.0
    %2010 = vmatpush.msra.mxu0 0.0
    %2011 = vmatpush.msra.mxu0 0.0
    %2012 = vmatpush.msra.mxu0 0.0
    %2013 = vmatpush.msra.mxu0 %v1371
    %2014 = vmatpush.msra.mxu0 %v1370
    %2015 = vmatpush.msra.mxu0 %v1369
    %2016 = vmatpush.msra.mxu0 %v1368
    %2017 = vmatmul.f32.gmra.mxu0 %v1940
    %v2018 = vpop.f32.mrf.mxu0
    %v2019 = vadd.f32 0.0, %v2018
    %2020 = vdwg.mxu0
    %v2021 = vadd.f32 %v1366, %v2019
    %v2022 = vtanh.pop %v2021
    %v2023 = vxor.u32 %v2021, 2147483648
    %v2024 = vmul.f32 %v2023, 1.442695
    %v2025 = vpow.pop %v2024
    %v2026 = vadd.f32 %v2025, 1.0
    %v2027 = vrcp.pop %v2026
    %v2028 = vmul.f32 %v2026, %v2027
    %v2029 = vsub.f32 1.0, %v2028
    %v2030 = vmul.f32 %v2027, %v2029
    %v2031 = vadd.f32 %v2027, %v2030
    %vm2032 = vweird.f32 %v2026
    %vm2033 = vweird.f32 %v2027
    %vm2034 = vmor %vm2032, %vm2033
    %v2035 = vsel %vm2034, %v2027, %v2031
    %v2036 = vand.u32 2147483647, %v2026
    %vm2037 = vcmp.eq.f32.partialorder %v2036, 8.507059e+37
    %v2038 = vand.u32 %v2026, 2147483648
    %v2039 = vor.u32 1.1754944e-38, %v2038
    %v2040 = vsel %vm2037, %v2039, %v2035
    %v2041 = vmul.f32 1.0, %v2040
    %v2042 = vsel %vm1430, %v2022, %v2041
    %v2044 = vrot.slane %v1904, 6
    %v2046 = vmul.f32 %v2042, %v2044
    %2048 = vrot.lane.b32.xlu0 %v2042, 64
    %v2049 = vpop.permute.xlu0 %2048
    %v2051 = vmul.f32 %v2042, %v2049
    %2053 = vrot.lane.b32.xlu0 %v2051, 32
    %v2054 = vpop.permute.xlu0 %2053
    %v2056 = vadd.f32 %v2046, %v2054
    %v2057 = vtanh.pop %v2056
    %2059 = vrot.lane.b32.xlu0 %v2057, 64
    %v2060 = vpop.permute.xlu0 %2059
    %v2062 = vmul.f32 %v2042, %v2060
    %2064 = vrot.lane.b32.xlu0 %v2000, 32
    %v2065 = vpop.permute.xlu0 %2064
    %v2066 = vsel %vm1340, %v2065, 0
    %2068 = vmatpush.msra.mxu0 0.0
    %2069 = vmatpush.msra.mxu0 0.0
    %2070 = vmatpush.msra.mxu0 0.0
    %2071 = vmatpush.msra.mxu0 0.0
    %2072 = vmatpush.msra.mxu0 0.0
    %2073 = vmatpush.msra.mxu0 0.0
    %2074 = vmatpush.msra.mxu0 0.0
    %2075 = vmatpush.msra.mxu0 0.0
    %2076 = vmatpush.msra.mxu0 0.0
    %2077 = vmatpush.msra.mxu0 0.0
    %2078 = vmatpush.msra.mxu0 0.0
    %2079 = vmatpush.msra.mxu0 0.0
    %2080 = vmatpush.msra.mxu0 %v1379
    %2081 = vmatpush.msra.mxu0 %v1378
    %2082 = vmatpush.msra.mxu0 %v1377
    %2083 = vmatpush.msra.mxu0 %v1376
    %2084 = vmatmul.f32.gmra.mxu0 %v2066
    %v2085 = vpop.f32.mrf.mxu0
    %v2086 = vadd.f32 0.0, %v2085
    %2087 = vdwg.mxu0
    %2089 = vrot.lane.b32.xlu0 %v2062, 32
    %v2090 = vpop.permute.xlu0 %2089
    %v2091 = vsel %vm1340, %v2090, 0
    %2093 = vmatpush.msra.mxu0 0.0
    %2094 = vmatpush.msra.mxu0 0.0
    %2095 = vmatpush.msra.mxu0 0.0
    %2096 = vmatpush.msra.mxu0 0.0
    %2097 = vmatpush.msra.mxu0 0.0
    %2098 = vmatpush.msra.mxu0 0.0
    %2099 = vmatpush.msra.mxu0 0.0
    %2100 = vmatpush.msra.mxu0 0.0
    %2101 = vmatpush.msra.mxu0 0.0
    %2102 = vmatpush.msra.mxu0 0.0
    %2103 = vmatpush.msra.mxu0 0.0
    %2104 = vmatpush.msra.mxu0 0.0
    %2105 = vmatpush.msra.mxu0 %v1375
    %2106 = vmatpush.msra.mxu0 %v1374
    %2107 = vmatpush.msra.mxu0 %v1373
    %2108 = vmatpush.msra.mxu0 %v1372
    %2109 = vmatmul.f32.gmra.mxu0 %v2091
    %v2110 = vpop.f32.mrf.mxu0
    %v2111 = vadd.f32 %v2086, %v2110
    %2112 = vdwg.mxu0
    %v2113 = vadd.f32 %v2111, %v1495
    %v2114 = vtanh.pop %v2113
    %v2115 = vxor.u32 %v2113, 2147483648
    %v2116 = vmul.f32 %v2115, 1.442695
    %v2117 = vpow.pop %v2116
    %v2118 = vadd.f32 %v2117, 1.0
    %v2119 = vrcp.pop %v2118
    %v2120 = vmul.f32 %v2118, %v2119
    %v2121 = vsub.f32 1.0, %v2120
    %v2122 = vmul.f32 %v2119, %v2121
    %v2123 = vadd.f32 %v2119, %v2122
    %vm2124 = vweird.f32 %v2118
    %vm2125 = vweird.f32 %v2119
    %vm2126 = vmor %vm2124, %vm2125
    %v2127 = vsel %vm2126, %v2119, %v2123
    %v2128 = vand.u32 2147483647, %v2118
    %vm2129 = vcmp.eq.f32.partialorder %v2128, 8.507059e+37
    %v2130 = vand.u32 %v2118, 2147483648
    %v2131 = vor.u32 1.1754944e-38, %v2130
    %v2132 = vsel %vm2129, %v2131, %v2127
    %v2133 = vmul.f32 1.0, %v2132
    %v2134 = vsel %vm1430, %v2114, %v2133
    %v2135 = vmul.f32 %v2134, %v1994
    %2137 = vrot.lane.b32.xlu0 %v2134, 64
    %v2138 = vpop.permute.xlu0 %2137
    %v2140 = vmul.f32 %v2134, %v2138
    %2142 = vrot.lane.b32.xlu0 %v2140, 32
    %v2143 = vpop.permute.xlu0 %2142
    %v2145 = vadd.f32 %v2135, %v2143
    %v2146 = vtanh.pop %v2145
    %2148 = vrot.lane.b32.xlu0 %v2146, 64
    %v2149 = vpop.permute.xlu0 %2148
    %v2151 = vmul.f32 %v2134, %v2149
    %2152 = vmatpush.msra.mxu0 0.0
    %2153 = vmatpush.msra.mxu0 0.0
    %2154 = vmatpush.msra.mxu0 0.0
    %2155 = vmatpush.msra.mxu0 0.0
    %2156 = vmatpush.msra.mxu0 0.0
    %2157 = vmatpush.msra.mxu0 0.0
    %2158 = vmatpush.msra.mxu0 0.0
    %2159 = vmatpush.msra.mxu0 0.0
    %2160 = vmatpush.msra.mxu0 0.0
    %2161 = vmatpush.msra.mxu0 0.0
    %2162 = vmatpush.msra.mxu0 0.0
    %2163 = vmatpush.msra.mxu0 0.0
    %2164 = vmatpush.msra.mxu0 %v1371
    %2165 = vmatpush.msra.mxu0 %v1370
    %2166 = vmatpush.msra.mxu0 %v1369
    %2167 = vmatpush.msra.mxu0 %v1368
    %2168 = vmatmul.f32.gmra.mxu0 %v2091
    %v2169 = vpop.f32.mrf.mxu0
    %v2170 = vadd.f32 0.0, %v2169
    %2171 = vdwg.mxu0
    %v2173 = vrot.slane %v2170, 6
    %v2175 = vadd.f32 %v1366, %v2173
    %v2176 = vtanh.pop %v2175
    %v2177 = vxor.u32 %v2175, 2147483648
    %v2178 = vmul.f32 %v2177, 1.442695
    %v2179 = vpow.pop %v2178
    %v2180 = vadd.f32 %v2179, 1.0
    %v2181 = vrcp.pop %v2180
    %v2182 = vmul.f32 %v2180, %v2181
    %v2183 = vsub.f32 1.0, %v2182
    %v2184 = vmul.f32 %v2181, %v2183
    %v2185 = vadd.f32 %v2181, %v2184
    %vm2186 = vweird.f32 %v2180
    %vm2187 = vweird.f32 %v2181
    %vm2188 = vmor %vm2186, %vm2187
    %v2189 = vsel %vm2188, %v2181, %v2185
    %v2190 = vand.u32 2147483647, %v2180
    %vm2191 = vcmp.eq.f32.partialorder %v2190, 8.507059e+37
    %v2192 = vand.u32 %v2180, 2147483648
    %v2193 = vor.u32 1.1754944e-38, %v2192
    %v2194 = vsel %vm2191, %v2193, %v2189
    %v2195 = vmul.f32 1.0, %v2194
    %v2196 = vsel %vm1430, %v2176, %v2195
    %v2198 = vrot.slane %v2056, 6
    %v2200 = vmul.f32 %v2196, %v2198
    %2202 = vrot.lane.b32.xlu0 %v2196, 64
    %v2203 = vpop.permute.xlu0 %2202
    %v2205 = vmul.f32 %v2196, %v2203
    %2207 = vrot.lane.b32.xlu0 %v2205, 32
    %v2208 = vpop.permute.xlu0 %2207
    %v2210 = vadd.f32 %v2200, %v2208
    %v2211 = vtanh.pop %v2210
    %2213 = vrot.lane.b32.xlu0 %v2211, 64
    %v2214 = vpop.permute.xlu0 %2213
    %v2216 = vmul.f32 %v2196, %v2214
    %2218 = vrot.lane.b32.xlu0 %v2151, 32
    %v2219 = vpop.permute.xlu0 %2218
    %v2220 = vsel %vm1340, %v2219, 0
    %2222 = vmatpush.msra.mxu0 0.0
    %2223 = vmatpush.msra.mxu0 0.0
    %2224 = vmatpush.msra.mxu0 0.0
    %2225 = vmatpush.msra.mxu0 0.0
    %2226 = vmatpush.msra.mxu0 0.0
    %2227 = vmatpush.msra.mxu0 0.0
    %2228 = vmatpush.msra.mxu0 0.0
    %2229 = vmatpush.msra.mxu0 0.0
    %2230 = vmatpush.msra.mxu0 0.0
    %2231 = vmatpush.msra.mxu0 0.0
    %2232 = vmatpush.msra.mxu0 0.0
    %2233 = vmatpush.msra.mxu0 0.0
    %2234 = vmatpush.msra.mxu0 %v1379
    %2235 = vmatpush.msra.mxu0 %v1378
    %2236 = vmatpush.msra.mxu0 %v1377
    %2237 = vmatpush.msra.mxu0 %v1376
    %2238 = vmatmul.f32.gmra.mxu0 %v2220
    %v2239 = vpop.f32.mrf.mxu0
    %v2240 = vadd.f32 0.0, %v2239
    %2241 = vdwg.mxu0
    %v2243 = vrot.slane %v2216, 2
    %2244 = vrot.lane.b32.xlu0 %v2243, 32
    %v2245 = vpop.permute.xlu0 %2244
    %v2246 = vsel %vm1340, %v2245, 0
    %2248 = vmatpush.msra.mxu0 0.0
    %2249 = vmatpush.msra.mxu0 0.0
    %2250 = vmatpush.msra.mxu0 0.0
    %2251 = vmatpush.msra.mxu0 0.0
    %2252 = vmatpush.msra.mxu0 0.0
    %2253 = vmatpush.msra.mxu0 0.0
    %2254 = vmatpush.msra.mxu0 0.0
    %2255 = vmatpush.msra.mxu0 0.0
    %2256 = vmatpush.msra.mxu0 0.0
    %2257 = vmatpush.msra.mxu0 0.0
    %2258 = vmatpush.msra.mxu0 0.0
    %2259 = vmatpush.msra.mxu0 0.0
    %2260 = vmatpush.msra.mxu0 %v1375
    %2261 = vmatpush.msra.mxu0 %v1374
    %2262 = vmatpush.msra.mxu0 %v1373
    %2263 = vmatpush.msra.mxu0 %v1372
    %2264 = vmatmul.f32.gmra.mxu0 %v2246
    %v2265 = vpop.f32.mrf.mxu0
    %v2266 = vadd.f32 %v2240, %v2265
    %2267 = vdwg.mxu0
    %v2268 = vadd.f32 %v2266, %v1495
    %v2269 = vtanh.pop %v2268
    %v2270 = vxor.u32 %v2268, 2147483648
    %v2271 = vmul.f32 %v2270, 1.442695
    %v2272 = vpow.pop %v2271
    %v2273 = vadd.f32 %v2272, 1.0
    %v2274 = vrcp.pop %v2273
    %v2275 = vmul.f32 %v2273, %v2274
    %v2276 = vsub.f32 1.0, %v2275
    %v2277 = vmul.f32 %v2274, %v2276
    %v2278 = vadd.f32 %v2274, %v2277
    %vm2279 = vweird.f32 %v2273
    %vm2280 = vweird.f32 %v2274
    %vm2281 = vmor %vm2279, %vm2280
    %v2282 = vsel %vm2281, %v2274, %v2278
    %v2283 = vand.u32 2147483647, %v2273
    %vm2284 = vcmp.eq.f32.partialorder %v2283, 8.507059e+37
    %v2285 = vand.u32 %v2273, 2147483648
    %v2286 = vor.u32 1.1754944e-38, %v2285
    %v2287 = vsel %vm2284, %v2286, %v2282
    %v2288 = vmul.f32 1.0, %v2287
    %v2289 = vsel %vm1430, %v2269, %v2288
    %v2290 = vmul.f32 %v2289, %v2145
    %2292 = vrot.lane.b32.xlu0 %v2289, 64
    %v2293 = vpop.permute.xlu0 %2292
    %v2295 = vmul.f32 %v2289, %v2293
    %2297 = vrot.lane.b32.xlu0 %v2295, 32
    %v2298 = vpop.permute.xlu0 %2297
    %v2300 = vadd.f32 %v2290, %v2298
    %v2301 = vtanh.pop %v2300
    %2303 = vrot.lane.b32.xlu0 %v2301, 64
    %v2304 = vpop.permute.xlu0 %2303
    %v2306 = vmul.f32 %v2289, %v2304
    %2307 = vmatpush.msra.mxu0 0.0
    %2308 = vmatpush.msra.mxu0 0.0
    %2309 = vmatpush.msra.mxu0 0.0
    %2310 = vmatpush.msra.mxu0 0.0
    %2311 = vmatpush.msra.mxu0 0.0
    %2312 = vmatpush.msra.mxu0 0.0
    %2313 = vmatpush.msra.mxu0 0.0
    %2314 = vmatpush.msra.mxu0 0.0
    %2315 = vmatpush.msra.mxu0 0.0
    %2316 = vmatpush.msra.mxu0 0.0
    %2317 = vmatpush.msra.mxu0 0.0
    %2318 = vmatpush.msra.mxu0 0.0
    %2319 = vmatpush.msra.mxu0 %v1371
    %2320 = vmatpush.msra.mxu0 %v1370
    %2321 = vmatpush.msra.mxu0 %v1369
    %2322 = vmatpush.msra.mxu0 %v1368
    %2323 = vmatmul.f32.gmra.mxu0 %v2246
    %v2324 = vpop.f32.mrf.mxu0
    %v2325 = vadd.f32 0.0, %v2324
    %2326 = vdwg.mxu0
    %v2328 = vrot.slane %v2325, 4
    %v2330 = vadd.f32 %v1366, %v2328
    %v2331 = vtanh.pop %v2330
    %v2332 = vxor.u32 %v2330, 2147483648
    %v2333 = vmul.f32 %v2332, 1.442695
    %v2334 = vpow.pop %v2333
    %v2335 = vadd.f32 %v2334, 1.0
    %v2336 = vrcp.pop %v2335
    %v2337 = vmul.f32 %v2335, %v2336
    %v2338 = vsub.f32 1.0, %v2337
    %v2339 = vmul.f32 %v2336, %v2338
    %v2340 = vadd.f32 %v2336, %v2339
    %vm2341 = vweird.f32 %v2335
    %vm2342 = vweird.f32 %v2336
    %vm2343 = vmor %vm2341, %vm2342
    %v2344 = vsel %vm2343, %v2336, %v2340
    %v2345 = vand.u32 2147483647, %v2335
    %vm2346 = vcmp.eq.f32.partialorder %v2345, 8.507059e+37
    %v2347 = vand.u32 %v2335, 2147483648
    %v2348 = vor.u32 1.1754944e-38, %v2347
    %v2349 = vsel %vm2346, %v2348, %v2344
    %v2350 = vmul.f32 1.0, %v2349
    %v2351 = vsel %vm1430, %v2331, %v2350
    %v2353 = vrot.slane %v2210, 6
    %v2355 = vmul.f32 %v2351, %v2353
    %2357 = vrot.lane.b32.xlu0 %v2351, 64
    %v2358 = vpop.permute.xlu0 %2357
    %v2360 = vmul.f32 %v2351, %v2358
    %2362 = vrot.lane.b32.xlu0 %v2360, 32
    %v2363 = vpop.permute.xlu0 %2362
    %v2365 = vadd.f32 %v2355, %v2363
    %v2366 = vtanh.pop %v2365
    %2368 = vrot.lane.b32.xlu0 %v2366, 64
    %v2369 = vpop.permute.xlu0 %2368
    %v2371 = vmul.f32 %v2351, %v2369
    %2373 = vrot.lane.b32.xlu0 %v2306, 32
    %v2374 = vpop.permute.xlu0 %2373
    %v2375 = vsel %vm1340, %v2374, 0
    %2377 = vmatpush.msra.mxu0 0.0
    %2378 = vmatpush.msra.mxu0 0.0
    %2379 = vmatpush.msra.mxu0 0.0
    %2380 = vmatpush.msra.mxu0 0.0
    %2381 = vmatpush.msra.mxu0 0.0
    %2382 = vmatpush.msra.mxu0 0.0
    %2383 = vmatpush.msra.mxu0 0.0
    %2384 = vmatpush.msra.mxu0 0.0
    %2385 = vmatpush.msra.mxu0 0.0
    %2386 = vmatpush.msra.mxu0 0.0
    %2387 = vmatpush.msra.mxu0 0.0
    %2388 = vmatpush.msra.mxu0 0.0
    %2389 = vmatpush.msra.mxu0 %v1379
    %2390 = vmatpush.msra.mxu0 %v1378
    %2391 = vmatpush.msra.mxu0 %v1377
    %2392 = vmatpush.msra.mxu0 %v1376
    %2393 = vmatmul.f32.gmra.mxu0 %v2375
    %v2394 = vpop.f32.mrf.mxu0
    %v2395 = vadd.f32 0.0, %v2394
    %2396 = vdwg.mxu0
    %v2398 = vrot.slane %v2371, 4
    %2399 = vrot.lane.b32.xlu0 %v2398, 32
    %v2400 = vpop.permute.xlu0 %2399
    %v2401 = vsel %vm1340, %v2400, 0
    %2403 = vmatpush.msra.mxu0 0.0
    %2404 = vmatpush.msra.mxu0 0.0
    %2405 = vmatpush.msra.mxu0 0.0
    %2406 = vmatpush.msra.mxu0 0.0
    %2407 = vmatpush.msra.mxu0 0.0
    %2408 = vmatpush.msra.mxu0 0.0
    %2409 = vmatpush.msra.mxu0 0.0
    %2410 = vmatpush.msra.mxu0 0.0
    %2411 = vmatpush.msra.mxu0 0.0
    %2412 = vmatpush.msra.mxu0 0.0
    %2413 = vmatpush.msra.mxu0 0.0
    %2414 = vmatpush.msra.mxu0 0.0
    %2415 = vmatpush.msra.mxu0 %v1375
    %2416 = vmatpush.msra.mxu0 %v1374
    %2417 = vmatpush.msra.mxu0 %v1373
    %2418 = vmatpush.msra.mxu0 %v1372
    %2419 = vmatmul.f32.gmra.mxu0 %v2401
    %v2420 = vpop.f32.mrf.mxu0
    %v2421 = vadd.f32 %v2395, %v2420
    %2422 = vdwg.mxu0
    %v2423 = vadd.f32 %v2421, %v1495
    %v2424 = vtanh.pop %v2423
    %v2425 = vxor.u32 %v2423, 2147483648
    %v2426 = vmul.f32 %v2425, 1.442695
    %v2427 = vpow.pop %v2426
    %v2428 = vadd.f32 %v2427, 1.0
    %v2429 = vrcp.pop %v2428
    %v2430 = vmul.f32 %v2428, %v2429
    %v2431 = vsub.f32 1.0, %v2430
    %v2432 = vmul.f32 %v2429, %v2431
    %v2433 = vadd.f32 %v2429, %v2432
    %vm2434 = vweird.f32 %v2428
    %vm2435 = vweird.f32 %v2429
    %vm2436 = vmor %vm2434, %vm2435
    %v2437 = vsel %vm2436, %v2429, %v2433
    %v2438 = vand.u32 2147483647, %v2428
    %vm2439 = vcmp.eq.f32.partialorder %v2438, 8.507059e+37
    %v2440 = vand.u32 %v2428, 2147483648
    %v2441 = vor.u32 1.1754944e-38, %v2440
    %v2442 = vsel %vm2439, %v2441, %v2437
    %v2443 = vmul.f32 1.0, %v2442
    %v2444 = vsel %vm1430, %v2424, %v2443
    %v2445 = vmul.f32 %v2444, %v2300
    %2447 = vrot.lane.b32.xlu0 %v2444, 64
    %v2448 = vpop.permute.xlu0 %2447
    %v2450 = vmul.f32 %v2444, %v2448
    %2452 = vrot.lane.b32.xlu0 %v2450, 32
    %v2453 = vpop.permute.xlu0 %2452
    %v2455 = vadd.f32 %v2445, %v2453
    %v2456 = vtanh.pop %v2455
    %2458 = vrot.lane.b32.xlu0 %v2456, 64
    %v2459 = vpop.permute.xlu0 %2458
    %v2461 = vmul.f32 %v2444, %v2459
    %2462 = vmatpush.msra.mxu0 0.0
    %2463 = vmatpush.msra.mxu0 0.0
    %2464 = vmatpush.msra.mxu0 0.0
    %2465 = vmatpush.msra.mxu0 0.0
    %2466 = vmatpush.msra.mxu0 0.0
    %2467 = vmatpush.msra.mxu0 0.0
    %2468 = vmatpush.msra.mxu0 0.0
    %2469 = vmatpush.msra.mxu0 0.0
    %2470 = vmatpush.msra.mxu0 0.0
    %2471 = vmatpush.msra.mxu0 0.0
    %2472 = vmatpush.msra.mxu0 0.0
    %2473 = vmatpush.msra.mxu0 0.0
    %2474 = vmatpush.msra.mxu0 %v1371
    %2475 = vmatpush.msra.mxu0 %v1370
    %2476 = vmatpush.msra.mxu0 %v1369
    %2477 = vmatpush.msra.mxu0 %v1368
    %2478 = vmatmul.f32.gmra.mxu0 %v2401
    %v2479 = vpop.f32.mrf.mxu0
    %v2480 = vadd.f32 0.0, %v2479
    %2481 = vdwg.mxu0
    %v2483 = vrot.slane %v2480, 2
    %v2485 = vadd.f32 %v1366, %v2483
    %v2486 = vtanh.pop %v2485
    %v2487 = vxor.u32 %v2485, 2147483648
    %v2488 = vmul.f32 %v2487, 1.442695
    %v2489 = vpow.pop %v2488
    %v2490 = vadd.f32 %v2489, 1.0
    %v2491 = vrcp.pop %v2490
    %v2492 = vmul.f32 %v2490, %v2491
    %v2493 = vsub.f32 1.0, %v2492
    %v2494 = vmul.f32 %v2491, %v2493
    %v2495 = vadd.f32 %v2491, %v2494
    %vm2496 = vweird.f32 %v2490
    %vm2497 = vweird.f32 %v2491
    %vm2498 = vmor %vm2496, %vm2497
    %v2499 = vsel %vm2498, %v2491, %v2495
    %v2500 = vand.u32 2147483647, %v2490
    %vm2501 = vcmp.eq.f32.partialorder %v2500, 8.507059e+37
    %v2502 = vand.u32 %v2490, 2147483648
    %v2503 = vor.u32 1.1754944e-38, %v2502
    %v2504 = vsel %vm2501, %v2503, %v2499
    %v2505 = vmul.f32 1.0, %v2504
    %v2506 = vsel %vm1430, %v2486, %v2505
    %v2508 = vrot.slane %v2365, 6
    %v2510 = vmul.f32 %v2506, %v2508
    %2512 = vrot.lane.b32.xlu0 %v2506, 64
    %v2513 = vpop.permute.xlu0 %2512
    %v2515 = vmul.f32 %v2506, %v2513
    %2517 = vrot.lane.b32.xlu0 %v2515, 32
    %v2518 = vpop.permute.xlu0 %2517
    %v2520 = vadd.f32 %v2510, %v2518
    %v2521 = vtanh.pop %v2520
    %2523 = vrot.lane.b32.xlu0 %v2521, 64
    %v2524 = vpop.permute.xlu0 %2523
    %v2526 = vmul.f32 %v2506, %v2524
    %2528 = vrot.lane.b32.xlu0 %v2461, 32
    %v2529 = vpop.permute.xlu0 %2528
    %v2530 = vsel %vm1340, %v2529, 0
    %2532 = vmatpush.msra.mxu0 0.0
    %2533 = vmatpush.msra.mxu0 0.0
    %2534 = vmatpush.msra.mxu0 0.0
    %2535 = vmatpush.msra.mxu0 0.0
    %2536 = vmatpush.msra.mxu0 0.0
    %2537 = vmatpush.msra.mxu0 0.0
    %2538 = vmatpush.msra.mxu0 0.0
    %2539 = vmatpush.msra.mxu0 0.0
    %2540 = vmatpush.msra.mxu0 0.0
    %2541 = vmatpush.msra.mxu0 0.0
    %2542 = vmatpush.msra.mxu0 0.0
    %2543 = vmatpush.msra.mxu0 0.0
    %2544 = vmatpush.msra.mxu0 %v1379
    %2545 = vmatpush.msra.mxu0 %v1378
    %2546 = vmatpush.msra.mxu0 %v1377
    %2547 = vmatpush.msra.mxu0 %v1376
    %2548 = vmatmul.f32.gmra.mxu0 %v2530
    %v2549 = vpop.f32.mrf.mxu0
    %v2550 = vadd.f32 0.0, %v2549
    %2551 = vdwg.mxu0
    %v2553 = vrot.slane %v2526, 6
    %2554 = vrot.lane.b32.xlu0 %v2553, 32
    %v2555 = vpop.permute.xlu0 %2554
    %v2556 = vsel %vm1340, %v2555, 0
    %2558 = vmatpush.msra.mxu0 0.0
    %2559 = vmatpush.msra.mxu0 0.0
    %2560 = vmatpush.msra.mxu0 0.0
    %2561 = vmatpush.msra.mxu0 0.0
    %2562 = vmatpush.msra.mxu0 0.0
    %2563 = vmatpush.msra.mxu0 0.0
    %2564 = vmatpush.msra.mxu0 0.0
    %2565 = vmatpush.msra.mxu0 0.0
    %2566 = vmatpush.msra.mxu0 0.0
    %2567 = vmatpush.msra.mxu0 0.0
    %2568 = vmatpush.msra.mxu0 0.0
    %2569 = vmatpush.msra.mxu0 0.0
    %2570 = vmatpush.msra.mxu0 %v1375
    %2571 = vmatpush.msra.mxu0 %v1374
    %2572 = vmatpush.msra.mxu0 %v1373
    %2573 = vmatpush.msra.mxu0 %v1372
    %2574 = vmatmul.f32.gmra.mxu0 %v2556
    %v2575 = vpop.f32.mrf.mxu0
    %v2576 = vadd.f32 %v2550, %v2575
    %2577 = vdwg.mxu0
    %v2578 = vadd.f32 %v2576, %v1495
    %v2579 = vtanh.pop %v2578
    %v2580 = vxor.u32 %v2578, 2147483648
    %v2581 = vmul.f32 %v2580, 1.442695
    %v2582 = vpow.pop %v2581
    %v2583 = vadd.f32 %v2582, 1.0
    %v2584 = vrcp.pop %v2583
    %v2585 = vmul.f32 %v2583, %v2584
    %v2586 = vsub.f32 1.0, %v2585
    %v2587 = vmul.f32 %v2584, %v2586
    %v2588 = vadd.f32 %v2584, %v2587
    %vm2589 = vweird.f32 %v2583
    %vm2590 = vweird.f32 %v2584
    %vm2591 = vmor %vm2589, %vm2590
    %v2592 = vsel %vm2591, %v2584, %v2588
    %v2593 = vand.u32 2147483647, %v2583
    %vm2594 = vcmp.eq.f32.partialorder %v2593, 8.507059e+37
    %v2595 = vand.u32 %v2583, 2147483648
    %v2596 = vor.u32 1.1754944e-38, %v2595
    %v2597 = vsel %vm2594, %v2596, %v2592
    %v2598 = vmul.f32 1.0, %v2597
    %v2599 = vsel %vm1430, %v2579, %v2598
    %v2600 = vmul.f32 %v2599, %v2455
    %2602 = vrot.lane.b32.xlu0 %v2599, 64
    %v2603 = vpop.permute.xlu0 %2602
    %v2605 = vmul.f32 %v2599, %v2603
    %2607 = vrot.lane.b32.xlu0 %v2605, 32
    %v2608 = vpop.permute.xlu0 %2607
    %v2610 = vadd.f32 %v2600, %v2608
    %v2611 = vtanh.pop %v2610
    %2613 = vrot.lane.b32.xlu0 %v2611, 64
    %v2614 = vpop.permute.xlu0 %2613
    %v2616 = vmul.f32 %v2599, %v2614
    %v2617 = vld [vmem:[%s11] sm:$0xff]
    %v2618 = vld [vmem:[%s11 + $0x8] sm:$0xff]
    %v2619 = vld [vmem:[%s11 + $0x10] sm:$0xff]
    %v2620 = vld [vmem:[%s11 + $0x18] sm:$0xff]
    %v2621 = vld [vmem:[%s12] sm:$0x1]
    %v2623 = vperm.slane %v2621, 0
    %2626 = vrot.lane.b32.xlu0 %v2616, 32
    %v2627 = vpop.permute.xlu0 %2626
    %v2628 = vsel %vm1340, %v2627, 0
    %2630 = vmatpush.msra.mxu0 0.0
    %2631 = vmatpush.msra.mxu0 0.0
    %2632 = vmatpush.msra.mxu0 0.0
    %2633 = vmatpush.msra.mxu0 0.0
    %2634 = vmatpush.msra.mxu0 0.0
    %2635 = vmatpush.msra.mxu0 0.0
    %2636 = vmatpush.msra.mxu0 0.0
    %2637 = vmatpush.msra.mxu0 0.0
    %2638 = vmatpush.msra.mxu0 0.0
    %2639 = vmatpush.msra.mxu0 0.0
    %2640 = vmatpush.msra.mxu0 0.0
    %2641 = vmatpush.msra.mxu0 0.0
    %2642 = vmatpush.msra.mxu0 %v2620
    %2643 = vmatpush.msra.mxu0 %v2619
    %2644 = vmatpush.msra.mxu0 %v2618
    %2645 = vmatpush.msra.mxu0 %v2617
    %2646 = vmatmul.f32.gmra.mxu0 %v2628
    %v2647 = vpop.f32.mrf.mxu0
    %v2648 = vadd.f32 %v2623, %v2647
    %2649 = vdwg.mxu0
    %vm2650 = vcmask 25600
    %2651 = vst.msk [vmem:[#allocation5] sm:$0x3] %vm2650, %v2648
    // Predicated region
    $region58: #{tpu_custom_call.1} parent=1 // pred_check
      _
    $region59: #{tpu_custom_call.1} parent=1 // pred_check_branch
      %2653 = sbr.rel (0) target = $region61
    $region60: #{tpu_custom_call.1} parent=1 // pred_region
      %2655 = vsyncadd [#allocation4], 0
      %s2657 = sshll.u32 [#allocation5], 4
      %s2658 = int_to_ptr.vmem [resolvable:$true] %s2657
      %s2659 = sshll.u32 %s13, 4
      %s2660 = int_to_ptr.hbm [resolvable:$true] %s2659
      %2662 = dma.vmem_to_hbm [thread:$0]  %s2658, 32, %s2660, [#allocation4]
    $region61: #{tpu_custom_call.1} parent=1 // pred_fallthru
      _
    // Predicated region
    $region62: #{tpu_custom_call.1} parent=1 // pred_check
      _
    $region63: #{tpu_custom_call.1} parent=1 // pred_check_branch
      %2664 = sbr.rel (0) target = $region65
    $region64: #{tpu_custom_call.1} parent=1 // pred_region
      %2666 = dma.done [#allocation4], 32
    $region65: #{tpu_custom_call.1} parent=1 // pred_fallthru
      _
    %2667 = vsyncpa [#allocation3], 1
    %2668 = vsyncpa [#allocation4], 1

</llo_original>
